<compile_context>
chip_gen: v7x
topology: tpu7x:2x2x1
jax: 0.10.0
libtpu: 0.0.40
codegen_flags: <defaults>
</compile_context>

<pallas_src>
import functools

import jax
import jax.numpy as jnp
from jax.experimental import pallas as pl
from jax.experimental.pallas import tpu as pltpu


# ---------------------------------------------------------------------------
# Pass 1: fused (upsample + conv) via phase-folded weights + partial BN stats.
# ---------------------------------------------------------------------------
def conv_phase_kernel(x0_ref, x1_ref, x2_ref, w_ref, o_ref, stats_ref, *,
                      W, Cin, C4, row_chunks):
    """One grid step == one (n, d) output depth slice.

    x{0,1,2}_ref : (1, 1, Hp, Wp, Cin) bf16  depth taps d, d+1, d+2 of the
                                             spatially zero-padded original-res input
    w_ref        : (27, Cin, C4)       bf16  phase-folded per-tap weights,
                                             tap index = kd*9 + kh*3 + kw,
                                             columns ordered (a, b, cout)
    o_ref        : (1, 1, H*W, C4)     bf16  conv output (4 phases in the lane dim)
    stats_ref    : (1, 1, 2, C4)       f32   per-slice [sum, sum_sq] partials
    """
    taps = (x0_ref, x1_ref, x2_ref)
    s1 = jnp.zeros((1, C4), jnp.float32)
    s2 = jnp.zeros((1, C4), jnp.float32)

    # Static row-chunk loop (ragged tail allowed) keeps per-chunk temporaries
    # small; for the shapes here it is a single iteration.
    for r0, th in row_chunks:
        acc = jnp.zeros((th * W, C4), jnp.float32)
        # Per-tap accumulating matmuls: 27 MXU pushes with K = Cin, N = C4.
        # TODO(synk): for Cin a multiple of 128 a single big-K im2col matmul is
        # the better MXU shape; per-tap avoids lane-offset concats for small Cin.
        for kd in range(3):
            xs = taps[kd]
            for kh in range(3):
                for kw in range(3):
                    win = xs[0, 0, r0 + kh:r0 + kh + th, kw:kw + W, :]
                    acc = acc + jnp.dot(
                        win.reshape(th * W, Cin),
                        w_ref[kd * 9 + kh * 3 + kw],
                        preferred_element_type=jnp.float32)
        # BN partials from the f32 accumulator (before bf16 downcast), inside
        # the chunk loop -> no re-read of o_ref afterwards.
        s1 = s1 + jnp.sum(acc, axis=0, keepdims=True)
        s2 = s2 + jnp.sum(acc * acc, axis=0, keepdims=True)
        o_ref[0, 0, r0 * W:(r0 + th) * W, :] = acc.astype(o_ref.dtype)

    stats_ref[0, 0, 0:1, :] = s1
    stats_ref[0, 0, 1:2, :] = s2


# ---------------------------------------------------------------------------
# Pass 2: normalize with precomputed per-channel scale/shift, then ReLU.
# ---------------------------------------------------------------------------
def bn_relu_kernel(y_ref, scale_ref, shift_ref, o_ref):
    z = y_ref[0, 0].astype(jnp.float32)     # bf16 -> f32 (v5e VPU has no bf16)
    o_ref[0, 0] = jnp.maximum(z * scale_ref[...] + shift_ref[...], 0.0)


# ---------------------------------------------------------------------------
# Helpers.
# ---------------------------------------------------------------------------
def _row_chunks(H, W, Cin, C4, cap_bytes=2 << 20):
    """Static (start, rows) chunks; ragged tail so awkward H never degrades."""
    per_row = 3 * W * (Cin * 2 + C4 * 4)          # window + acc temporaries
    th = max(1, min(H, cap_bytes // max(per_row, 1)))
    return tuple((r, min(th, H - r)) for r in range(0, H, th))


def _vmem_limit(working_set_bytes):
    """Working-set-derived scoped-VMEM limit, capped for v7x (64 MiB physical)."""
    return int(min(max(2 * working_set_bytes + (4 << 20), 8 << 20), 32 << 20))


# ---------------------------------------------------------------------------
# Wrapper.
# ---------------------------------------------------------------------------
def upblock3d_forward(x_ncdhw, weight, bias, gamma, beta, eps=1e-5):
    """x_ncdhw: (N, Cin, D, H, W); weight: (Cout, Cin, 3, 3, 3). groups=1 only."""
    del bias  # absorbed exactly by training-mode BatchNorm mean subtraction
    N, Cin, D, H, W = x_ncdhw.shape
    Cout = weight.shape[0]
    C4 = 4 * Cout                       # 4 upsample phases packed in the lane dim
    Hp, Wp, HW = H + 2, W + 2, H * W
    row_chunks = _row_chunks(H, W, Cin, C4)

    # NCDHW -> NDHWC at ORIGINAL resolution, bf16 for the MXU, zero-pad (D,H,W).
    # (The wrapper pad costs one extra HBM trip of the *small* input; folding it
    #  into the kernel with pl.when halos is a further optimization.)
    xt = jnp.transpose(x_ncdhw, (0, 2, 3, 4, 1)).astype(jnp.bfloat16)
    x_pad = jnp.pad(xt, ((0, 0), (1, 1), (1, 1), (1, 1), (0, 0)))

    # Phase transform: conv-on-nearest-2x-upsampled == 4 phase convs on the
    # original-resolution (padded) input with recombined taps:
    #   phase a=0: effective H taps [w0, w1 + w2, 0]
    #   phase a=1: effective H taps [0, w0 + w1, w2]      (identically along W)
    T = jnp.array([[[1., 0., 0.], [0., 1., 1.], [0., 0., 0.]],
                   [[0., 0., 0.], [1., 1., 0.], [0., 0., 1.]]], jnp.float32)
    w = weight.astype(jnp.float32)                        # (Cout, Cin, 3, 3, 3)
    weff = jnp.einsum('aeh,bfw,oidhw->abefdio', T, T, w)  # (a,b,eh,ew,kd,ci,co)
    w_taps = jnp.transpose(weff, (4, 2, 3, 5, 0, 1, 6))   # (kd,eh,ew,ci,a,b,co)
    w_taps = w_taps.reshape(27, Cin, C4).astype(jnp.bfloat16)

    def x_spec(kd):
        return pl.BlockSpec((1, 1, Hp, Wp, Cin),
                            lambda n, d, kd=kd: (n, d + kd, 0, 0, 0))

    ws1 = (3 * 2 * Hp * Wp * Cin * 2 + 2 * 27 * Cin * C4 * 2
           + 2 * HW * C4 * 2 + 2 * 2 * C4 * 4)
    kernel = functools.partial(conv_phase_kernel, W=W, Cin=Cin, C4=C4,
                               row_chunks=row_chunks)
    conv_out, part = pl.pallas_call(
        kernel,
        grid=(N, D),
        in_specs=[x_spec(0), x_spec(1), x_spec(2),
                  pl.BlockSpec((27, Cin, C4), lambda n, d: (0, 0, 0))],
        out_specs=(pl.BlockSpec((1, 1, HW, C4), lambda n, d: (n, d, 0, 0)),
                   pl.BlockSpec((1, 1, 2, C4), lambda n, d: (n, d, 0, 0))),
        out_shape=(jax.ShapeDtypeStruct((N, D, HW, C4), jnp.bfloat16),
                   jax.ShapeDtypeStruct((N, D, 2, C4), jnp.float32)),
        compiler_params=pltpu.CompilerParams(
            dimension_semantics=("parallel", "parallel"),
            vmem_limit_bytes=_vmem_limit(ws1)),
        cost_estimate=pl.CostEstimate(
            flops=2 * N * D * HW * 27 * Cin * C4,
            transcendentals=0,
            bytes_accessed=(3 * N * D * Hp * Wp * Cin * 2 + 27 * Cin * C4 * 2
                            + N * D * HW * C4 * 2 + N * D * 2 * C4 * 4)),
    )(x_pad, x_pad, x_pad, w_taps)

    # ---- global BatchNorm statistics (training mode, biased variance) -------
    # Partials are f32; E[x^2]-E[x]^2 cancellation is negligible at these counts
    # (a Welford-style combine is safer if N*D*H*W gets very large).
    sums = jnp.sum(part[:, :, 0, :], axis=(0, 1)).reshape(4, Cout).sum(axis=0)
    sumsq = jnp.sum(part[:, :, 1, :], axis=(0, 1)).reshape(4, Cout).sum(axis=0)
    count = N * D * HW * 4
    mean = sums / count
    var = jnp.maximum(sumsq / count - mean * mean, 0.0)
    inv = jax.lax.rsqrt(var + eps)
    scale_c = gamma.astype(jnp.float32) * inv
    shift_c = beta.astype(jnp.float32) - mean * scale_c
    scale = jnp.tile(scale_c, 4).reshape(1, C4)
    shift = jnp.tile(shift_c, 4).reshape(1, C4)
    # TODO(synk): BatchNorm3d running_mean/running_var buffer updates (module
    # state side-effect) are not surfaced; forward matches training mode.

    # ---- pass 2: BN + ReLU (bf16 in, f32 out), no padded lanes touch HBM ----
    ws2 = 2 * HW * C4 * 2 + 2 * HW * C4 * 4 + 4 * C4 * 4
    y = pl.pallas_call(
        bn_relu_kernel,
        grid=(N, D),
        in_specs=[pl.BlockSpec((1, 1, HW, C4), lambda n, d: (n, d, 0, 0)),
                  pl.BlockSpec((1, C4), lambda n, d: (0, 0)),
                  pl.BlockSpec((1, C4), lambda n, d: (0, 0))],
        out_specs=pl.BlockSpec((1, 1, HW, C4), lambda n, d: (n, d, 0, 0)),
        out_shape=jax.ShapeDtypeStruct((N, D, HW, C4), jnp.float32),
        compiler_params=pltpu.CompilerParams(
            dimension_semantics=("parallel", "parallel"),
            vmem_limit_bytes=_vmem_limit(ws2)),
    )(conv_out, scale, shift)

    # Single remaining XLA layout pass: phase de-interleave + NDHWC-ish -> NCDHW.
    # reshape (bitcast) -> transpose -> reshape (bitcast) fuses into ONE copy.
    y = y.reshape(N, D, H, W, 2, 2, Cout)                 # (n, d, i, j, a, b, co)
    y = jnp.transpose(y, (0, 6, 1, 2, 4, 3, 5))           # (n, co, d, i, a, j, b)
    return y.reshape(N, Cout, D, 2 * H, 2 * W)            # NCDHW


# ---------------------------------------------------------------------------
# Pure-JAX reference (independent path; keeps the conv bias on purpose — it is
# removed exactly by the training-mode BatchNorm).
# ---------------------------------------------------------------------------
def upblock3d_reference(x_ncdhw, weight, bias, gamma, beta, eps=1e-5):
    x = jnp.repeat(x_ncdhw, 2, axis=3)
    x = jnp.repeat(x, 2, axis=4)
    x_ndhwc = jnp.transpose(x, (0, 2, 3, 4, 1))
    w = jnp.transpose(weight, (2, 3, 4, 1, 0))
    y = jax.lax.conv_general_dilated(
        x_ndhwc, w, window_strides=(1, 1, 1),
        padding=((1, 1), (1, 1), (1, 1)),
        dimension_numbers=("NDHWC", "DHWIO", "NDHWC"))
    y = y + bias
    mean = jnp.mean(y, axis=(0, 1, 2, 3))
    var = jnp.mean((y - mean) ** 2, axis=(0, 1, 2, 3))
    y = (y - mean) * jax.lax.rsqrt(var + eps) * gamma + beta
    y = jnp.maximum(y, 0.0)
    return jnp.transpose(y, (0, 4, 1, 2, 3))


if __name__ == "__main__":
    key = jax.random.PRNGKey(0)
    k_x, k_w, k_b, k_g, k_be = jax.random.split(key, 5)

    N, Cin, Cout = 2, 4, 8
    D, H, W = 4, 8, 8

    x = jax.random.normal(k_x, (N, Cin, D, H, W), dtype=jnp.float32)
    weight = 0.1 * jax.random.normal(k_w, (Cout, Cin, 3, 3, 3), dtype=jnp.float32)
    bias = 0.1 * jax.random.normal(k_b, (Cout,), dtype=jnp.float32)
    gamma = 1.0 + 0.1 * jax.random.normal(k_g, (Cout,), dtype=jnp.float32)
    beta = 0.1 * jax.random.normal(k_be, (Cout,), dtype=jnp.float32)

    out = jax.block_until_ready(upblock3d_forward(x, weight, bias, gamma, beta))
    ref = upblock3d_reference(x, weight, bias, gamma, beta)

    assert out.shape == (N, Cout, D, 2 * H, 2 * W), out.shape
    max_err = float(jnp.max(jnp.abs(out - ref)))
    # bf16 MXU inputs + bf16 conv intermediate vs a pure f32 reference:
    # expected error ~1e-2; a structural bug (tap/phase misalignment) is O(1).
    assert jnp.allclose(out, ref, atol=5e-2, rtol=5e-2), max_err

    print("KERNEL_OK")
</pallas_src>

<mosaic_0001>
module attributes {stable_mosaic.version = 11 : i64} {
  func.func @conv_phase_kernel(%arg0: i32, %arg1: i32, %arg2: memref<1x1x10x10x4xbf16, #tpu.memory_space<vmem>>, %arg3: memref<1x1x10x10x4xbf16, #tpu.memory_space<vmem>>, %arg4: memref<1x1x10x10x4xbf16, #tpu.memory_space<vmem>>, %arg5: memref<27x4x32xbf16, #tpu.memory_space<vmem>>, %arg6: memref<1x1x64x32xbf16, #tpu.memory_space<vmem>>, %arg7: memref<1x1x2x32xf32, #tpu.memory_space<vmem>>) attributes {dimension_semantics = [#tpu.dimension_semantics<parallel>, #tpu.dimension_semantics<parallel>], iteration_bounds = array<i64: 2, 4>, scalar_prefetch = 0 : i64, scratch_operands = 0 : i64, tpu.core_type = #tpu.core_type<tc>, window_params = [{transform_indices = @transform_0, window_bounds = array<i64: 1, 1, 10, 10, 4>}, {transform_indices = @transform_1, window_bounds = array<i64: 1, 1, 10, 10, 4>}, {transform_indices = @transform_2, window_bounds = array<i64: 1, 1, 10, 10, 4>}, {pipeline_mode = #tpu.pipeline_mode<synchronous>, transform_indices = @transform_3, window_bounds = array<i64: 27, 4, 32>}, {transform_indices = @transform_4, window_bounds = array<i64: 1, 1, 64, 32>}, {transform_indices = @transform_5, window_bounds = array<i64: 1, 1, 2, 32>}]} {
    %cst = arith.constant 0.000000e+00 : f32
    %0 = vector.broadcast %cst : f32 to vector<1x32xf32>
    %cst_0 = arith.constant 0.000000e+00 : f32
    %1 = vector.broadcast %cst_0 : f32 to vector<1x32xf32>
    %cst_1 = arith.constant 0.000000e+00 : f32
    %2 = vector.broadcast %cst_1 : f32 to vector<64x32xf32>
    %c0 = arith.constant 0 : index
    %c0_2 = arith.constant 0 : index
    %c0_3 = arith.constant 0 : index
    %c0_4 = arith.constant 0 : index
    %c0_5 = arith.constant 0 : index
    %3 = vector.load %arg2[%c0, %c0_2, %c0_3, %c0_4, %c0_5] : memref<1x1x10x10x4xbf16, #tpu.memory_space<vmem>>, vector<1x1x8x8x4xbf16>
    %4 = vector.shape_cast %3 : vector<1x1x8x8x4xbf16> to vector<8x8x4xbf16>
    %5 = vector.shape_cast %4 : vector<8x8x4xbf16> to vector<64x4xbf16>
    %c0_6 = arith.constant 0 : index
    %c0_7 = arith.constant 0 : index
    %c0_8 = arith.constant 0 : index
    %6 = vector.load %arg5[%c0_6, %c0_7, %c0_8] : memref<27x4x32xbf16, #tpu.memory_space<vmem>>, vector<1x4x32xbf16>
    %7 = vector.shape_cast %6 : vector<1x4x32xbf16> to vector<4x32xbf16>
    %cst_9 = arith.constant dense<0.000000e+00> : vector<64x32xf32>
    %8 = tpu.matmul %5, %7, %cst_9 {dimension_numbers = #tpu.dot_dimension_numbers<[1], [0], [0], [1], [0, 0, 1, 1], [], []>} : vector<64x4xbf16>, vector<4x32xbf16>, vector<64x32xf32> -> vector<64x32xf32>
    %9 = arith.addf %2, %8 : vector<64x32xf32>
    %c0_10 = arith.constant 0 : index
    %c0_11 = arith.constant 0 : index
    %c0_12 = arith.constant 0 : index
    %c1 = arith.constant 1 : index
    %c0_13 = arith.constant 0 : index
    %10 = vector.load %arg2[%c0_10, %c0_11, %c0_12, %c1, %c0_13] : memref<1x1x10x10x4xbf16, #tpu.memory_space<vmem>>, vector<1x1x8x8x4xbf16>
    %11 = vector.shape_cast %10 : vector<1x1x8x8x4xbf16> to vector<8x8x4xbf16>
    %12 = vector.shape_cast %11 : vector<8x8x4xbf16> to vector<64x4xbf16>
    %c1_14 = arith.constant 1 : index
    %c0_15 = arith.constant 0 : index
    %c0_16 = arith.constant 0 : index
    %13 = vector.load %arg5[%c1_14, %c0_15, %c0_16] : memref<27x4x32xbf16, #tpu.memory_space<vmem>>, vector<1x4x32xbf16>
    %14 = vector.shape_cast %13 : vector<1x4x32xbf16> to vector<4x32xbf16>
    %cst_17 = arith.constant dense<0.000000e+00> : vector<64x32xf32>
    %15 = tpu.matmul %12, %14, %cst_17 {dimension_numbers = #tpu.dot_dimension_numbers<[1], [0], [0], [1], [0, 0, 1, 1], [], []>} : vector<64x4xbf16>, vector<4x32xbf16>, vector<64x32xf32> -> vector<64x32xf32>
    %16 = arith.addf %9, %15 : vector<64x32xf32>
    %c0_18 = arith.constant 0 : index
    %c0_19 = arith.constant 0 : index
    %c0_20 = arith.constant 0 : index
    %c2 = arith.constant 2 : index
    %c0_21 = arith.constant 0 : index
    %17 = vector.load %arg2[%c0_18, %c0_19, %c0_20, %c2, %c0_21] : memref<1x1x10x10x4xbf16, #tpu.memory_space<vmem>>, vector<1x1x8x8x4xbf16>
    %18 = vector.shape_cast %17 : vector<1x1x8x8x4xbf16> to vector<8x8x4xbf16>
    %19 = vector.shape_cast %18 : vector<8x8x4xbf16> to vector<64x4xbf16>
    %c2_22 = arith.constant 2 : index
    %c0_23 = arith.constant 0 : index
    %c0_24 = arith.constant 0 : index
    %20 = vector.load %arg5[%c2_22, %c0_23, %c0_24] : memref<27x4x32xbf16, #tpu.memory_space<vmem>>, vector<1x4x32xbf16>
    %21 = vector.shape_cast %20 : vector<1x4x32xbf16> to vector<4x32xbf16>
    %cst_25 = arith.constant dense<0.000000e+00> : vector<64x32xf32>
    %22 = tpu.matmul %19, %21, %cst_25 {dimension_numbers = #tpu.dot_dimension_numbers<[1], [0], [0], [1], [0, 0, 1, 1], [], []>} : vector<64x4xbf16>, vector<4x32xbf16>, vector<64x32xf32> -> vector<64x32xf32>
    %23 = arith.addf %16, %22 : vector<64x32xf32>
    %c0_26 = arith.constant 0 : index
    %c0_27 = arith.constant 0 : index
    %c1_28 = arith.constant 1 : index
    %c0_29 = arith.constant 0 : index
    %c0_30 = arith.constant 0 : index
    %24 = vector.load %arg2[%c0_26, %c0_27, %c1_28, %c0_29, %c0_30] : memref<1x1x10x10x4xbf16, #tpu.memory_space<vmem>>, vector<1x1x8x8x4xbf16>
    %25 = vector.shape_cast %24 : vector<1x1x8x8x4xbf16> to vector<8x8x4xbf16>
    %26 = vector.shape_cast %25 : vector<8x8x4xbf16> to vector<64x4xbf16>
    %c3 = arith.constant 3 : index
    %c0_31 = arith.constant 0 : index
    %c0_32 = arith.constant 0 : index
    %27 = vector.load %arg5[%c3, %c0_31, %c0_32] : memref<27x4x32xbf16, #tpu.memory_space<vmem>>, vector<1x4x32xbf16>
    %28 = vector.shape_cast %27 : vector<1x4x32xbf16> to vector<4x32xbf16>
    %cst_33 = arith.constant dense<0.000000e+00> : vector<64x32xf32>
    %29 = tpu.matmul %26, %28, %cst_33 {dimension_numbers = #tpu.dot_dimension_numbers<[1], [0], [0], [1], [0, 0, 1, 1], [], []>} : vector<64x4xbf16>, vector<4x32xbf16>, vector<64x32xf32> -> vector<64x32xf32>
    %30 = arith.addf %23, %29 : vector<64x32xf32>
    %c0_34 = arith.constant 0 : index
    %c0_35 = arith.constant 0 : index
    %c1_36 = arith.constant 1 : index
    %c1_37 = arith.constant 1 : index
    %c0_38 = arith.constant 0 : index
    %31 = vector.load %arg2[%c0_34, %c0_35, %c1_36, %c1_37, %c0_38] : memref<1x1x10x10x4xbf16, #tpu.memory_space<vmem>>, vector<1x1x8x8x4xbf16>
    %32 = vector.shape_cast %31 : vector<1x1x8x8x4xbf16> to vector<8x8x4xbf16>
    %33 = vector.shape_cast %32 : vector<8x8x4xbf16> to vector<64x4xbf16>
    %c4 = arith.constant 4 : index
    %c0_39 = arith.constant 0 : index
    %c0_40 = arith.constant 0 : index
    %34 = vector.load %arg5[%c4, %c0_39, %c0_40] : memref<27x4x32xbf16, #tpu.memory_space<vmem>>, vector<1x4x32xbf16>
    %35 = vector.shape_cast %34 : vector<1x4x32xbf16> to vector<4x32xbf16>
    %cst_41 = arith.constant dense<0.000000e+00> : vector<64x32xf32>
    %36 = tpu.matmul %33, %35, %cst_41 {dimension_numbers = #tpu.dot_dimension_numbers<[1], [0], [0], [1], [0, 0, 1, 1], [], []>} : vector<64x4xbf16>, vector<4x32xbf16>, vector<64x32xf32> -> vector<64x32xf32>
    %37 = arith.addf %30, %36 : vector<64x32xf32>
    %c0_42 = arith.constant 0 : index
    %c0_43 = arith.constant 0 : index
    %c1_44 = arith.constant 1 : index
    %c2_45 = arith.constant 2 : index
    %c0_46 = arith.constant 0 : index
    %38 = vector.load %arg2[%c0_42, %c0_43, %c1_44, %c2_45, %c0_46] : memref<1x1x10x10x4xbf16, #tpu.memory_space<vmem>>, vector<1x1x8x8x4xbf16>
    %39 = vector.shape_cast %38 : vector<1x1x8x8x4xbf16> to vector<8x8x4xbf16>
    %40 = vector.shape_cast %39 : vector<8x8x4xbf16> to vector<64x4xbf16>
    %c5 = arith.constant 5 : index
    %c0_47 = arith.constant 0 : index
    %c0_48 = arith.constant 0 : index
    %41 = vector.load %arg5[%c5, %c0_47, %c0_48] : memref<27x4x32xbf16, #tpu.memory_space<vmem>>, vector<1x4x32xbf16>
    %42 = vector.shape_cast %41 : vector<1x4x32xbf16> to vector<4x32xbf16>
    %cst_49 = arith.constant dense<0.000000e+00> : vector<64x32xf32>
    %43 = tpu.matmul %40, %42, %cst_49 {dimension_numbers = #tpu.dot_dimension_numbers<[1], [0], [0], [1], [0, 0, 1, 1], [], []>} : vector<64x4xbf16>, vector<4x32xbf16>, vector<64x32xf32> -> vector<64x32xf32>
    %44 = arith.addf %37, %43 : vector<64x32xf32>
    %c0_50 = arith.constant 0 : index
    %c0_51 = arith.constant 0 : index
    %c2_52 = arith.constant 2 : index
    %c0_53 = arith.constant 0 : index
    %c0_54 = arith.constant 0 : index
    %45 = vector.load %arg2[%c0_50, %c0_51, %c2_52, %c0_53, %c0_54] : memref<1x1x10x10x4xbf16, #tpu.memory_space<vmem>>, vector<1x1x8x8x4xbf16>
    %46 = vector.shape_cast %45 : vector<1x1x8x8x4xbf16> to vector<8x8x4xbf16>
    %47 = vector.shape_cast %46 : vector<8x8x4xbf16> to vector<64x4xbf16>
    %c6 = arith.constant 6 : index
    %c0_55 = arith.constant 0 : index
    %c0_56 = arith.constant 0 : index
    %48 = vector.load %arg5[%c6, %c0_55, %c0_56] : memref<27x4x32xbf16, #tpu.memory_space<vmem>>, vector<1x4x32xbf16>
    %49 = vector.shape_cast %48 : vector<1x4x32xbf16> to vector<4x32xbf16>
    %cst_57 = arith.constant dense<0.000000e+00> : vector<64x32xf32>
    %50 = tpu.matmul %47, %49, %cst_57 {dimension_numbers = #tpu.dot_dimension_numbers<[1], [0], [0], [1], [0, 0, 1, 1], [], []>} : vector<64x4xbf16>, vector<4x32xbf16>, vector<64x32xf32> -> vector<64x32xf32>
    %51 = arith.addf %44, %50 : vector<64x32xf32>
    %c0_58 = arith.constant 0 : index
    %c0_59 = arith.constant 0 : index
    %c2_60 = arith.constant 2 : index
    %c1_61 = arith.constant 1 : index
    %c0_62 = arith.constant 0 : index
    %52 = vector.load %arg2[%c0_58, %c0_59, %c2_60, %c1_61, %c0_62] : memref<1x1x10x10x4xbf16, #tpu.memory_space<vmem>>, vector<1x1x8x8x4xbf16>
    %53 = vector.shape_cast %52 : vector<1x1x8x8x4xbf16> to vector<8x8x4xbf16>
    %54 = vector.shape_cast %53 : vector<8x8x4xbf16> to vector<64x4xbf16>
    %c7 = arith.constant 7 : index
    %c0_63 = arith.constant 0 : index
    %c0_64 = arith.constant 0 : index
    %55 = vector.load %arg5[%c7, %c0_63, %c0_64] : memref<27x4x32xbf16, #tpu.memory_space<vmem>>, vector<1x4x32xbf16>
    %56 = vector.shape_cast %55 : vector<1x4x32xbf16> to vector<4x32xbf16>
    %cst_65 = arith.constant dense<0.000000e+00> : vector<64x32xf32>
    %57 = tpu.matmul %54, %56, %cst_65 {dimension_numbers = #tpu.dot_dimension_numbers<[1], [0], [0], [1], [0, 0, 1, 1], [], []>} : vector<64x4xbf16>, vector<4x32xbf16>, vector<64x32xf32> -> vector<64x32xf32>
    %58 = arith.addf %51, %57 : vector<64x32xf32>
    %c0_66 = arith.constant 0 : index
    %c0_67 = arith.constant 0 : index
    %c2_68 = arith.constant 2 : index
    %c2_69 = arith.constant 2 : index
    %c0_70 = arith.constant 0 : index
    %59 = vector.load %arg2[%c0_66, %c0_67, %c2_68, %c2_69, %c0_70] : memref<1x1x10x10x4xbf16, #tpu.memory_space<vmem>>, vector<1x1x8x8x4xbf16>
    %60 = vector.shape_cast %59 : vector<1x1x8x8x4xbf16> to vector<8x8x4xbf16>
    %61 = vector.shape_cast %60 : vector<8x8x4xbf16> to vector<64x4xbf16>
    %c8 = arith.constant 8 : index
    %c0_71 = arith.constant 0 : index
    %c0_72 = arith.constant 0 : index
    %62 = vector.load %arg5[%c8, %c0_71, %c0_72] : memref<27x4x32xbf16, #tpu.memory_space<vmem>>, vector<1x4x32xbf16>
    %63 = vector.shape_cast %62 : vector<1x4x32xbf16> to vector<4x32xbf16>
    %cst_73 = arith.constant dense<0.000000e+00> : vector<64x32xf32>
    %64 = tpu.matmul %61, %63, %cst_73 {dimension_numbers = #tpu.dot_dimension_numbers<[1], [0], [0], [1], [0, 0, 1, 1], [], []>} : vector<64x4xbf16>, vector<4x32xbf16>, vector<64x32xf32> -> vector<64x32xf32>
    %65 = arith.addf %58, %64 : vector<64x32xf32>
    %c0_74 = arith.constant 0 : index
    %c0_75 = arith.constant 0 : index
    %c0_76 = arith.constant 0 : index
    %c0_77 = arith.constant 0 : index
    %c0_78 = arith.constant 0 : index
    %66 = vector.load %arg3[%c0_74, %c0_75, %c0_76, %c0_77, %c0_78] : memref<1x1x10x10x4xbf16, #tpu.memory_space<vmem>>, vector<1x1x8x8x4xbf16>
    %67 = vector.shape_cast %66 : vector<1x1x8x8x4xbf16> to vector<8x8x4xbf16>
    %68 = vector.shape_cast %67 : vector<8x8x4xbf16> to vector<64x4xbf16>
    %c9 = arith.constant 9 : index
    %c0_79 = arith.constant 0 : index
    %c0_80 = arith.constant 0 : index
    %69 = vector.load %arg5[%c9, %c0_79, %c0_80] : memref<27x4x32xbf16, #tpu.memory_space<vmem>>, vector<1x4x32xbf16>
    %70 = vector.shape_cast %69 : vector<1x4x32xbf16> to vector<4x32xbf16>
    %cst_81 = arith.constant dense<0.000000e+00> : vector<64x32xf32>
    %71 = tpu.matmul %68, %70, %cst_81 {dimension_numbers = #tpu.dot_dimension_numbers<[1], [0], [0], [1], [0, 0, 1, 1], [], []>} : vector<64x4xbf16>, vector<4x32xbf16>, vector<64x32xf32> -> vector<64x32xf32>
    %72 = arith.addf %65, %71 : vector<64x32xf32>
    %c0_82 = arith.constant 0 : index
    %c0_83 = arith.constant 0 : index
    %c0_84 = arith.constant 0 : index
    %c1_85 = arith.constant 1 : index
    %c0_86 = arith.constant 0 : index
    %73 = vector.load %arg3[%c0_82, %c0_83, %c0_84, %c1_85, %c0_86] : memref<1x1x10x10x4xbf16, #tpu.memory_space<vmem>>, vector<1x1x8x8x4xbf16>
    %74 = vector.shape_cast %73 : vector<1x1x8x8x4xbf16> to vector<8x8x4xbf16>
    %75 = vector.shape_cast %74 : vector<8x8x4xbf16> to vector<64x4xbf16>
    %c10 = arith.constant 10 : index
    %c0_87 = arith.constant 0 : index
    %c0_88 = arith.constant 0 : index
    %76 = vector.load %arg5[%c10, %c0_87, %c0_88] : memref<27x4x32xbf16, #tpu.memory_space<vmem>>, vector<1x4x32xbf16>
    %77 = vector.shape_cast %76 : vector<1x4x32xbf16> to vector<4x32xbf16>
    %cst_89 = arith.constant dense<0.000000e+00> : vector<64x32xf32>
    %78 = tpu.matmul %75, %77, %cst_89 {dimension_numbers = #tpu.dot_dimension_numbers<[1], [0], [0], [1], [0, 0, 1, 1], [], []>} : vector<64x4xbf16>, vector<4x32xbf16>, vector<64x32xf32> -> vector<64x32xf32>
    %79 = arith.addf %72, %78 : vector<64x32xf32>
    %c0_90 = arith.constant 0 : index
    %c0_91 = arith.constant 0 : index
    %c0_92 = arith.constant 0 : index
    %c2_93 = arith.constant 2 : index
    %c0_94 = arith.constant 0 : index
    %80 = vector.load %arg3[%c0_90, %c0_91, %c0_92, %c2_93, %c0_94] : memref<1x1x10x10x4xbf16, #tpu.memory_space<vmem>>, vector<1x1x8x8x4xbf16>
    %81 = vector.shape_cast %80 : vector<1x1x8x8x4xbf16> to vector<8x8x4xbf16>
    %82 = vector.shape_cast %81 : vector<8x8x4xbf16> to vector<64x4xbf16>
    %c11 = arith.constant 11 : index
    %c0_95 = arith.constant 0 : index
    %c0_96 = arith.constant 0 : index
    %83 = vector.load %arg5[%c11, %c0_95, %c0_96] : memref<27x4x32xbf16, #tpu.memory_space<vmem>>, vector<1x4x32xbf16>
    %84 = vector.shape_cast %83 : vector<1x4x32xbf16> to vector<4x32xbf16>
    %cst_97 = arith.constant dense<0.000000e+00> : vector<64x32xf32>
    %85 = tpu.matmul %82, %84, %cst_97 {dimension_numbers = #tpu.dot_dimension_numbers<[1], [0], [0], [1], [0, 0, 1, 1], [], []>} : vector<64x4xbf16>, vector<4x32xbf16>, vector<64x32xf32> -> vector<64x32xf32>
    %86 = arith.addf %79, %85 : vector<64x32xf32>
    %c0_98 = arith.constant 0 : index
    %c0_99 = arith.constant 0 : index
    %c1_100 = arith.constant 1 : index
    %c0_101 = arith.constant 0 : index
    %c0_102 = arith.constant 0 : index
    %87 = vector.load %arg3[%c0_98, %c0_99, %c1_100, %c0_101, %c0_102] : memref<1x1x10x10x4xbf16, #tpu.memory_space<vmem>>, vector<1x1x8x8x4xbf16>
    %88 = vector.shape_cast %87 : vector<1x1x8x8x4xbf16> to vector<8x8x4xbf16>
    %89 = vector.shape_cast %88 : vector<8x8x4xbf16> to vector<64x4xbf16>
    %c12 = arith.constant 12 : index
    %c0_103 = arith.constant 0 : index
    %c0_104 = arith.constant 0 : index
    %90 = vector.load %arg5[%c12, %c0_103, %c0_104] : memref<27x4x32xbf16, #tpu.memory_space<vmem>>, vector<1x4x32xbf16>
    %91 = vector.shape_cast %90 : vector<1x4x32xbf16> to vector<4x32xbf16>
    %cst_105 = arith.constant dense<0.000000e+00> : vector<64x32xf32>
    %92 = tpu.matmul %89, %91, %cst_105 {dimension_numbers = #tpu.dot_dimension_numbers<[1], [0], [0], [1], [0, 0, 1, 1], [], []>} : vector<64x4xbf16>, vector<4x32xbf16>, vector<64x32xf32> -> vector<64x32xf32>
    %93 = arith.addf %86, %92 : vector<64x32xf32>
    %c0_106 = arith.constant 0 : index
    %c0_107 = arith.constant 0 : index
    %c1_108 = arith.constant 1 : index
    %c1_109 = arith.constant 1 : index
    %c0_110 = arith.constant 0 : index
    %94 = vector.load %arg3[%c0_106, %c0_107, %c1_108, %c1_109, %c0_110] : memref<1x1x10x10x4xbf16, #tpu.memory_space<vmem>>, vector<1x1x8x8x4xbf16>
    %95 = vector.shape_cast %94 : vector<1x1x8x8x4xbf16> to vector<8x8x4xbf16>
    %96 = vector.shape_cast %95 : vector<8x8x4xbf16> to vector<64x4xbf16>
    %c13 = arith.constant 13 : index
    %c0_111 = arith.constant 0 : index
    %c0_112 = arith.constant 0 : index
    %97 = vector.load %arg5[%c13, %c0_111, %c0_112] : memref<27x4x32xbf16, #tpu.memory_space<vmem>>, vector<1x4x32xbf16>
    %98 = vector.shape_cast %97 : vector<1x4x32xbf16> to vector<4x32xbf16>
    %cst_113 = arith.constant dense<0.000000e+00> : vector<64x32xf32>
    %99 = tpu.matmul %96, %98, %cst_113 {dimension_numbers = #tpu.dot_dimension_numbers<[1], [0], [0], [1], [0, 0, 1, 1], [], []>} : vector<64x4xbf16>, vector<4x32xbf16>, vector<64x32xf32> -> vector<64x32xf32>
    %100 = arith.addf %93, %99 : vector<64x32xf32>
    %c0_114 = arith.constant 0 : index
    %c0_115 = arith.constant 0 : index
    %c1_116 = arith.constant 1 : index
    %c2_117 = arith.constant 2 : index
    %c0_118 = arith.constant 0 : index
    %101 = vector.load %arg3[%c0_114, %c0_115, %c1_116, %c2_117, %c0_118] : memref<1x1x10x10x4xbf16, #tpu.memory_space<vmem>>, vector<1x1x8x8x4xbf16>
    %102 = vector.shape_cast %101 : vector<1x1x8x8x4xbf16> to vector<8x8x4xbf16>
    %103 = vector.shape_cast %102 : vector<8x8x4xbf16> to vector<64x4xbf16>
    %c14 = arith.constant 14 : index
    %c0_119 = arith.constant 0 : index
    %c0_120 = arith.constant 0 : index
    %104 = vector.load %arg5[%c14, %c0_119, %c0_120] : memref<27x4x32xbf16, #tpu.memory_space<vmem>>, vector<1x4x32xbf16>
    %105 = vector.shape_cast %104 : vector<1x4x32xbf16> to vector<4x32xbf16>
    %cst_121 = arith.constant dense<0.000000e+00> : vector<64x32xf32>
    %106 = tpu.matmul %103, %105, %cst_121 {dimension_numbers = #tpu.dot_dimension_numbers<[1], [0], [0], [1], [0, 0, 1, 1], [], []>} : vector<64x4xbf16>, vector<4x32xbf16>, vector<64x32xf32> -> vector<64x32xf32>
    %107 = arith.addf %100, %106 : vector<64x32xf32>
    %c0_122 = arith.constant 0 : index
    %c0_123 = arith.constant 0 : index
    %c2_124 = arith.constant 2 : index
    %c0_125 = arith.constant 0 : index
    %c0_126 = arith.constant 0 : index
    %108 = vector.load %arg3[%c0_122, %c0_123, %c2_124, %c0_125, %c0_126] : memref<1x1x10x10x4xbf16, #tpu.memory_space<vmem>>, vector<1x1x8x8x4xbf16>
    %109 = vector.shape_cast %108 : vector<1x1x8x8x4xbf16> to vector<8x8x4xbf16>
    %110 = vector.shape_cast %109 : vector<8x8x4xbf16> to vector<64x4xbf16>
    %c15 = arith.constant 15 : index
    %c0_127 = arith.constant 0 : index
    %c0_128 = arith.constant 0 : index
    %111 = vector.load %arg5[%c15, %c0_127, %c0_128] : memref<27x4x32xbf16, #tpu.memory_space<vmem>>, vector<1x4x32xbf16>
    %112 = vector.shape_cast %111 : vector<1x4x32xbf16> to vector<4x32xbf16>
    %cst_129 = arith.constant dense<0.000000e+00> : vector<64x32xf32>
    %113 = tpu.matmul %110, %112, %cst_129 {dimension_numbers = #tpu.dot_dimension_numbers<[1], [0], [0], [1], [0, 0, 1, 1], [], []>} : vector<64x4xbf16>, vector<4x32xbf16>, vector<64x32xf32> -> vector<64x32xf32>
    %114 = arith.addf %107, %113 : vector<64x32xf32>
    %c0_130 = arith.constant 0 : index
    %c0_131 = arith.constant 0 : index
    %c2_132 = arith.constant 2 : index
    %c1_133 = arith.constant 1 : index
    %c0_134 = arith.constant 0 : index
    %115 = vector.load %arg3[%c0_130, %c0_131, %c2_132, %c1_133, %c0_134] : memref<1x1x10x10x4xbf16, #tpu.memory_space<vmem>>, vector<1x1x8x8x4xbf16>
    %116 = vector.shape_cast %115 : vector<1x1x8x8x4xbf16> to vector<8x8x4xbf16>
    %117 = vector.shape_cast %116 : vector<8x8x4xbf16> to vector<64x4xbf16>
    %c16 = arith.constant 16 : index
    %c0_135 = arith.constant 0 : index
    %c0_136 = arith.constant 0 : index
    %118 = vector.load %arg5[%c16, %c0_135, %c0_136] : memref<27x4x32xbf16, #tpu.memory_space<vmem>>, vector<1x4x32xbf16>
    %119 = vector.shape_cast %118 : vector<1x4x32xbf16> to vector<4x32xbf16>
    %cst_137 = arith.constant dense<0.000000e+00> : vector<64x32xf32>
    %120 = tpu.matmul %117, %119, %cst_137 {dimension_numbers = #tpu.dot_dimension_numbers<[1], [0], [0], [1], [0, 0, 1, 1], [], []>} : vector<64x4xbf16>, vector<4x32xbf16>, vector<64x32xf32> -> vector<64x32xf32>
    %121 = arith.addf %114, %120 : vector<64x32xf32>
    %c0_138 = arith.constant 0 : index
    %c0_139 = arith.constant 0 : index
    %c2_140 = arith.constant 2 : index
    %c2_141 = arith.constant 2 : index
    %c0_142 = arith.constant 0 : index
    %122 = vector.load %arg3[%c0_138, %c0_139, %c2_140, %c2_141, %c0_142] : memref<1x1x10x10x4xbf16, #tpu.memory_space<vmem>>, vector<1x1x8x8x4xbf16>
    %123 = vector.shape_cast %122 : vector<1x1x8x8x4xbf16> to vector<8x8x4xbf16>
    %124 = vector.shape_cast %123 : vector<8x8x4xbf16> to vector<64x4xbf16>
    %c17 = arith.constant 17 : index
    %c0_143 = arith.constant 0 : index
    %c0_144 = arith.constant 0 : index
    %125 = vector.load %arg5[%c17, %c0_143, %c0_144] : memref<27x4x32xbf16, #tpu.memory_space<vmem>>, vector<1x4x32xbf16>
    %126 = vector.shape_cast %125 : vector<1x4x32xbf16> to vector<4x32xbf16>
    %cst_145 = arith.constant dense<0.000000e+00> : vector<64x32xf32>
    %127 = tpu.matmul %124, %126, %cst_145 {dimension_numbers = #tpu.dot_dimension_numbers<[1], [0], [0], [1], [0, 0, 1, 1], [], []>} : vector<64x4xbf16>, vector<4x32xbf16>, vector<64x32xf32> -> vector<64x32xf32>
    %128 = arith.addf %121, %127 : vector<64x32xf32>
    %c0_146 = arith.constant 0 : index
    %c0_147 = arith.constant 0 : index
    %c0_148 = arith.constant 0 : index
    %c0_149 = arith.constant 0 : index
    %c0_150 = arith.constant 0 : index
    %129 = vector.load %arg4[%c0_146, %c0_147, %c0_148, %c0_149, %c0_150] : memref<1x1x10x10x4xbf16, #tpu.memory_space<vmem>>, vector<1x1x8x8x4xbf16>
    %130 = vector.shape_cast %129 : vector<1x1x8x8x4xbf16> to vector<8x8x4xbf16>
    %131 = vector.shape_cast %130 : vector<8x8x4xbf16> to vector<64x4xbf16>
    %c18 = arith.constant 18 : index
    %c0_151 = arith.constant 0 : index
    %c0_152 = arith.constant 0 : index
    %132 = vector.load %arg5[%c18, %c0_151, %c0_152] : memref<27x4x32xbf16, #tpu.memory_space<vmem>>, vector<1x4x32xbf16>
    %133 = vector.shape_cast %132 : vector<1x4x32xbf16> to vector<4x32xbf16>
    %cst_153 = arith.constant dense<0.000000e+00> : vector<64x32xf32>
    %134 = tpu.matmul %131, %133, %cst_153 {dimension_numbers = #tpu.dot_dimension_numbers<[1], [0], [0], [1], [0, 0, 1, 1], [], []>} : vector<64x4xbf16>, vector<4x32xbf16>, vector<64x32xf32> -> vector<64x32xf32>
    %135 = arith.addf %128, %134 : vector<64x32xf32>
    %c0_154 = arith.constant 0 : index
    %c0_155 = arith.constant 0 : index
    %c0_156 = arith.constant 0 : index
    %c1_157 = arith.constant 1 : index
    %c0_158 = arith.constant 0 : index
    %136 = vector.load %arg4[%c0_154, %c0_155, %c0_156, %c1_157, %c0_158] : memref<1x1x10x10x4xbf16, #tpu.memory_space<vmem>>, vector<1x1x8x8x4xbf16>
    %137 = vector.shape_cast %136 : vector<1x1x8x8x4xbf16> to vector<8x8x4xbf16>
    %138 = vector.shape_cast %137 : vector<8x8x4xbf16> to vector<64x4xbf16>
    %c19 = arith.constant 19 : index
    %c0_159 = arith.constant 0 : index
    %c0_160 = arith.constant 0 : index
    %139 = vector.load %arg5[%c19, %c0_159, %c0_160] : memref<27x4x32xbf16, #tpu.memory_space<vmem>>, vector<1x4x32xbf16>
    %140 = vector.shape_cast %139 : vector<1x4x32xbf16> to vector<4x32xbf16>
    %cst_161 = arith.constant dense<0.000000e+00> : vector<64x32xf32>
    %141 = tpu.matmul %138, %140, %cst_161 {dimension_numbers = #tpu.dot_dimension_numbers<[1], [0], [0], [1], [0, 0, 1, 1], [], []>} : vector<64x4xbf16>, vector<4x32xbf16>, vector<64x32xf32> -> vector<64x32xf32>
    %142 = arith.addf %135, %141 : vector<64x32xf32>
    %c0_162 = arith.constant 0 : index
    %c0_163 = arith.constant 0 : index
    %c0_164 = arith.constant 0 : index
    %c2_165 = arith.constant 2 : index
    %c0_166 = arith.constant 0 : index
    %143 = vector.load %arg4[%c0_162, %c0_163, %c0_164, %c2_165, %c0_166] : memref<1x1x10x10x4xbf16, #tpu.memory_space<vmem>>, vector<1x1x8x8x4xbf16>
    %144 = vector.shape_cast %143 : vector<1x1x8x8x4xbf16> to vector<8x8x4xbf16>
    %145 = vector.shape_cast %144 : vector<8x8x4xbf16> to vector<64x4xbf16>
    %c20 = arith.constant 20 : index
    %c0_167 = arith.constant 0 : index
    %c0_168 = arith.constant 0 : index
    %146 = vector.load %arg5[%c20, %c0_167, %c0_168] : memref<27x4x32xbf16, #tpu.memory_space<vmem>>, vector<1x4x32xbf16>
    %147 = vector.shape_cast %146 : vector<1x4x32xbf16> to vector<4x32xbf16>
    %cst_169 = arith.constant dense<0.000000e+00> : vector<64x32xf32>
    %148 = tpu.matmul %145, %147, %cst_169 {dimension_numbers = #tpu.dot_dimension_numbers<[1], [0], [0], [1], [0, 0, 1, 1], [], []>} : vector<64x4xbf16>, vector<4x32xbf16>, vector<64x32xf32> -> vector<64x32xf32>
    %149 = arith.addf %142, %148 : vector<64x32xf32>
    %c0_170 = arith.constant 0 : index
    %c0_171 = arith.constant 0 : index
    %c1_172 = arith.constant 1 : index
    %c0_173 = arith.constant 0 : index
    %c0_174 = arith.constant 0 : index
    %150 = vector.load %arg4[%c0_170, %c0_171, %c1_172, %c0_173, %c0_174] : memref<1x1x10x10x4xbf16, #tpu.memory_space<vmem>>, vector<1x1x8x8x4xbf16>
    %151 = vector.shape_cast %150 : vector<1x1x8x8x4xbf16> to vector<8x8x4xbf16>
    %152 = vector.shape_cast %151 : vector<8x8x4xbf16> to vector<64x4xbf16>
    %c21 = arith.constant 21 : index
    %c0_175 = arith.constant 0 : index
    %c0_176 = arith.constant 0 : index
    %153 = vector.load %arg5[%c21, %c0_175, %c0_176] : memref<27x4x32xbf16, #tpu.memory_space<vmem>>, vector<1x4x32xbf16>
    %154 = vector.shape_cast %153 : vector<1x4x32xbf16> to vector<4x32xbf16>
    %cst_177 = arith.constant dense<0.000000e+00> : vector<64x32xf32>
    %155 = tpu.matmul %152, %154, %cst_177 {dimension_numbers = #tpu.dot_dimension_numbers<[1], [0], [0], [1], [0, 0, 1, 1], [], []>} : vector<64x4xbf16>, vector<4x32xbf16>, vector<64x32xf32> -> vector<64x32xf32>
    %156 = arith.addf %149, %155 : vector<64x32xf32>
    %c0_178 = arith.constant 0 : index
    %c0_179 = arith.constant 0 : index
    %c1_180 = arith.constant 1 : index
    %c1_181 = arith.constant 1 : index
    %c0_182 = arith.constant 0 : index
    %157 = vector.load %arg4[%c0_178, %c0_179, %c1_180, %c1_181, %c0_182] : memref<1x1x10x10x4xbf16, #tpu.memory_space<vmem>>, vector<1x1x8x8x4xbf16>
    %158 = vector.shape_cast %157 : vector<1x1x8x8x4xbf16> to vector<8x8x4xbf16>
    %159 = vector.shape_cast %158 : vector<8x8x4xbf16> to vector<64x4xbf16>
    %c22 = arith.constant 22 : index
    %c0_183 = arith.constant 0 : index
    %c0_184 = arith.constant 0 : index
    %160 = vector.load %arg5[%c22, %c0_183, %c0_184] : memref<27x4x32xbf16, #tpu.memory_space<vmem>>, vector<1x4x32xbf16>
    %161 = vector.shape_cast %160 : vector<1x4x32xbf16> to vector<4x32xbf16>
    %cst_185 = arith.constant dense<0.000000e+00> : vector<64x32xf32>
    %162 = tpu.matmul %159, %161, %cst_185 {dimension_numbers = #tpu.dot_dimension_numbers<[1], [0], [0], [1], [0, 0, 1, 1], [], []>} : vector<64x4xbf16>, vector<4x32xbf16>, vector<64x32xf32> -> vector<64x32xf32>
    %163 = arith.addf %156, %162 : vector<64x32xf32>
    %c0_186 = arith.constant 0 : index
    %c0_187 = arith.constant 0 : index
    %c1_188 = arith.constant 1 : index
    %c2_189 = arith.constant 2 : index
    %c0_190 = arith.constant 0 : index
    %164 = vector.load %arg4[%c0_186, %c0_187, %c1_188, %c2_189, %c0_190] : memref<1x1x10x10x4xbf16, #tpu.memory_space<vmem>>, vector<1x1x8x8x4xbf16>
    %165 = vector.shape_cast %164 : vector<1x1x8x8x4xbf16> to vector<8x8x4xbf16>
    %166 = vector.shape_cast %165 : vector<8x8x4xbf16> to vector<64x4xbf16>
    %c23 = arith.constant 23 : index
    %c0_191 = arith.constant 0 : index
    %c0_192 = arith.constant 0 : index
    %167 = vector.load %arg5[%c23, %c0_191, %c0_192] : memref<27x4x32xbf16, #tpu.memory_space<vmem>>, vector<1x4x32xbf16>
    %168 = vector.shape_cast %167 : vector<1x4x32xbf16> to vector<4x32xbf16>
    %cst_193 = arith.constant dense<0.000000e+00> : vector<64x32xf32>
    %169 = tpu.matmul %166, %168, %cst_193 {dimension_numbers = #tpu.dot_dimension_numbers<[1], [0], [0], [1], [0, 0, 1, 1], [], []>} : vector<64x4xbf16>, vector<4x32xbf16>, vector<64x32xf32> -> vector<64x32xf32>
    %170 = arith.addf %163, %169 : vector<64x32xf32>
    %c0_194 = arith.constant 0 : index
    %c0_195 = arith.constant 0 : index
    %c2_196 = arith.constant 2 : index
    %c0_197 = arith.constant 0 : index
    %c0_198 = arith.constant 0 : index
    %171 = vector.load %arg4[%c0_194, %c0_195, %c2_196, %c0_197, %c0_198] : memref<1x1x10x10x4xbf16, #tpu.memory_space<vmem>>, vector<1x1x8x8x4xbf16>
    %172 = vector.shape_cast %171 : vector<1x1x8x8x4xbf16> to vector<8x8x4xbf16>
    %173 = vector.shape_cast %172 : vector<8x8x4xbf16> to vector<64x4xbf16>
    %c24 = arith.constant 24 : index
    %c0_199 = arith.constant 0 : index
    %c0_200 = arith.constant 0 : index
    %174 = vector.load %arg5[%c24, %c0_199, %c0_200] : memref<27x4x32xbf16, #tpu.memory_space<vmem>>, vector<1x4x32xbf16>
    %175 = vector.shape_cast %174 : vector<1x4x32xbf16> to vector<4x32xbf16>
    %cst_201 = arith.constant dense<0.000000e+00> : vector<64x32xf32>
    %176 = tpu.matmul %173, %175, %cst_201 {dimension_numbers = #tpu.dot_dimension_numbers<[1], [0], [0], [1], [0, 0, 1, 1], [], []>} : vector<64x4xbf16>, vector<4x32xbf16>, vector<64x32xf32> -> vector<64x32xf32>
    %177 = arith.addf %170, %176 : vector<64x32xf32>
    %c0_202 = arith.constant 0 : index
    %c0_203 = arith.constant 0 : index
    %c2_204 = arith.constant 2 : index
    %c1_205 = arith.constant 1 : index
    %c0_206 = arith.constant 0 : index
    %178 = vector.load %arg4[%c0_202, %c0_203, %c2_204, %c1_205, %c0_206] : memref<1x1x10x10x4xbf16, #tpu.memory_space<vmem>>, vector<1x1x8x8x4xbf16>
    %179 = vector.shape_cast %178 : vector<1x1x8x8x4xbf16> to vector<8x8x4xbf16>
    %180 = vector.shape_cast %179 : vector<8x8x4xbf16> to vector<64x4xbf16>
    %c25 = arith.constant 25 : index
    %c0_207 = arith.constant 0 : index
    %c0_208 = arith.constant 0 : index
    %181 = vector.load %arg5[%c25, %c0_207, %c0_208] : memref<27x4x32xbf16, #tpu.memory_space<vmem>>, vector<1x4x32xbf16>
    %182 = vector.shape_cast %181 : vector<1x4x32xbf16> to vector<4x32xbf16>
    %cst_209 = arith.constant dense<0.000000e+00> : vector<64x32xf32>
    %183 = tpu.matmul %180, %182, %cst_209 {dimension_numbers = #tpu.dot_dimension_numbers<[1], [0], [0], [1], [0, 0, 1, 1], [], []>} : vector<64x4xbf16>, vector<4x32xbf16>, vector<64x32xf32> -> vector<64x32xf32>
    %184 = arith.addf %177, %183 : vector<64x32xf32>
    %c0_210 = arith.constant 0 : index
    %c0_211 = arith.constant 0 : index
    %c2_212 = arith.constant 2 : index
    %c2_213 = arith.constant 2 : index
    %c0_214 = arith.constant 0 : index
    %185 = vector.load %arg4[%c0_210, %c0_211, %c2_212, %c2_213, %c0_214] : memref<1x1x10x10x4xbf16, #tpu.memory_space<vmem>>, vector<1x1x8x8x4xbf16>
    %186 = vector.shape_cast %185 : vector<1x1x8x8x4xbf16> to vector<8x8x4xbf16>
    %187 = vector.shape_cast %186 : vector<8x8x4xbf16> to vector<64x4xbf16>
    %c26 = arith.constant 26 : index
    %c0_215 = arith.constant 0 : index
    %c0_216 = arith.constant 0 : index
    %188 = vector.load %arg5[%c26, %c0_215, %c0_216] : memref<27x4x32xbf16, #tpu.memory_space<vmem>>, vector<1x4x32xbf16>
    %189 = vector.shape_cast %188 : vector<1x4x32xbf16> to vector<4x32xbf16>
    %cst_217 = arith.constant dense<0.000000e+00> : vector<64x32xf32>
    %190 = tpu.matmul %187, %189, %cst_217 {dimension_numbers = #tpu.dot_dimension_numbers<[1], [0], [0], [1], [0, 0, 1, 1], [], []>} : vector<64x4xbf16>, vector<4x32xbf16>, vector<64x32xf32> -> vector<64x32xf32>
    %191 = arith.addf %184, %190 : vector<64x32xf32>
    %cst_218 = arith.constant dense<0.000000e+00> : vector<32xf32>
    %192 = vector.multi_reduction <add>, %191, %cst_218 [0] : vector<64x32xf32> to vector<32xf32>
    %193 = vector.shape_cast %192 : vector<32xf32> to vector<1x32xf32>
    %194 = arith.addf %0, %193 : vector<1x32xf32>
    %195 = arith.mulf %191, %191 : vector<64x32xf32>
    %cst_219 = arith.constant dense<0.000000e+00> : vector<32xf32>
    %196 = vector.multi_reduction <add>, %195, %cst_219 [0] : vector<64x32xf32> to vector<32xf32>
    %197 = vector.shape_cast %196 : vector<32xf32> to vector<1x32xf32>
    %198 = arith.addf %1, %197 : vector<1x32xf32>
    %199 = arith.truncf %191 : vector<64x32xf32> to vector<64x32xbf16>
    %c0_220 = arith.constant 0 : index
    %c0_221 = arith.constant 0 : index
    %c0_222 = arith.constant 0 : index
    %c0_223 = arith.constant 0 : index
    %200 = vector.load %arg6[%c0_220, %c0_221, %c0_222, %c0_223] : memref<1x1x64x32xbf16, #tpu.memory_space<vmem>>, vector<1x1x64x32xbf16>
    %201 = vector.shape_cast %200 : vector<1x1x64x32xbf16> to vector<64x32xbf16>
    %202 = vector.shape_cast %199 : vector<64x32xbf16> to vector<1x1x64x32xbf16>
    tpu.vector_store %arg6[%c0_220, %c0_221, %c0_222, %c0_223], %202 {strides = array<i32>} : memref<1x1x64x32xbf16, #tpu.memory_space<vmem>>, vector<1x1x64x32xbf16>,
    %c0_224 = arith.constant 0 : index
    %c0_225 = arith.constant 0 : index
    %c0_226 = arith.constant 0 : index
    %c0_227 = arith.constant 0 : index
    %203 = vector.load %arg7[%c0_224, %c0_225, %c0_226, %c0_227] : memref<1x1x2x32xf32, #tpu.memory_space<vmem>>, vector<1x1x1x32xf32>
    %204 = vector.shape_cast %203 : vector<1x1x1x32xf32> to vector<1x32xf32>
    %205 = vector.shape_cast %194 : vector<1x32xf32> to vector<1x1x1x32xf32>
    tpu.vector_store %arg7[%c0_224, %c0_225, %c0_226, %c0_227], %205 {strides = array<i32>} : memref<1x1x2x32xf32, #tpu.memory_space<vmem>>, vector<1x1x1x32xf32>,
    %c0_228 = arith.constant 0 : index
    %c0_229 = arith.constant 0 : index
    %c1_230 = arith.constant 1 : index
    %c0_231 = arith.constant 0 : index
    %206 = vector.load %arg7[%c0_228, %c0_229, %c1_230, %c0_231] : memref<1x1x2x32xf32, #tpu.memory_space<vmem>>, vector<1x1x1x32xf32>
    %207 = vector.shape_cast %206 : vector<1x1x1x32xf32> to vector<1x32xf32>
    %208 = vector.shape_cast %198 : vector<1x32xf32> to vector<1x1x1x32xf32>
    tpu.vector_store %arg7[%c0_228, %c0_229, %c1_230, %c0_231], %208 {strides = array<i32>} : memref<1x1x2x32xf32, #tpu.memory_space<vmem>>, vector<1x1x1x32xf32>,
    return
  }
  func.func @transform_0(%arg0: i32, %arg1: i32) -> (i32, i32, i32, i32, i32) {
    %c0_i32 = arith.constant 0 : i32
    %0 = arith.addi %arg1, %c0_i32 : i32
    %c0_i32_0 = arith.constant 0 : i32
    %c0_i32_1 = arith.constant 0 : i32
    %c0_i32_2 = arith.constant 0 : i32
    %c0_i32_3 = arith.constant 0 : i32
    return %arg0, %0, %c0_i32_0, %c0_i32_1, %c0_i32_2 : i32, i32, i32, i32, i32
  }
  func.func @transform_1(%arg0: i32, %arg1: i32) -> (i32, i32, i32, i32, i32) {
    %c1_i32 = arith.constant 1 : i32
    %0 = arith.addi %arg1, %c1_i32 : i32
    %c0_i32 = arith.constant 0 : i32
    %c0_i32_0 = arith.constant 0 : i32
    %c0_i32_1 = arith.constant 0 : i32
    %c0_i32_2 = arith.constant 0 : i32
    return %arg0, %0, %c0_i32, %c0_i32_0, %c0_i32_1 : i32, i32, i32, i32, i32
  }
  func.func @transform_2(%arg0: i32, %arg1: i32) -> (i32, i32, i32, i32, i32) {
    %c2_i32 = arith.constant 2 : i32
    %0 = arith.addi %arg1, %c2_i32 : i32
    %c0_i32 = arith.constant 0 : i32
    %c0_i32_0 = arith.constant 0 : i32
    %c0_i32_1 = arith.constant 0 : i32
    %c0_i32_2 = arith.constant 0 : i32
    return %arg0, %0, %c0_i32, %c0_i32_0, %c0_i32_1 : i32, i32, i32, i32, i32
  }
  func.func @transform_3(%arg0: i32, %arg1: i32) -> (i32, i32, i32) {
    %c0_i32 = arith.constant 0 : i32
    %c0_i32_0 = arith.constant 0 : i32
    %c0_i32_1 = arith.constant 0 : i32
    %c0_i32_2 = arith.constant 0 : i32
    return %c0_i32, %c0_i32_0, %c0_i32_1 : i32, i32, i32
  }
  func.func @transform_4(%arg0: i32, %arg1: i32) -> (i32, i32, i32, i32) {
    %c0_i32 = arith.constant 0 : i32
    %c0_i32_0 = arith.constant 0 : i32
    %c0_i32_1 = arith.constant 0 : i32
    return %arg0, %arg1, %c0_i32, %c0_i32_0 : i32, i32, i32, i32
  }
  func.func @transform_5(%arg0: i32, %arg1: i32) -> (i32, i32, i32, i32) {
    %c0_i32 = arith.constant 0 : i32
    %c0_i32_0 = arith.constant 0 : i32
    %c0_i32_1 = arith.constant 0 : i32
    return %arg0, %arg1, %c0_i32, %c0_i32_0 : i32, i32, i32, i32
  }
}

</mosaic_0001>

<llo_original>
// kernel: tpu_custom_call.1
$region0: #{tpu_custom_call.1}
  #allocation0 [shape = 'u32[]', space=smem, size = 0x4, offset = 0x4, fixed_abs, tag = 'smem constant byte address 0x4 - core index']
  #allocation1 [shape = 'u32[144,128]{1,0:T(1,128)}', space=vmem, size = 0x12000, scoped, tag = 'internal scratch']
  %s0 = inlined_call_operand.vmem [shape: bf16[2,6,10,10,4], index: 0, kind: input, shape index: {}]
  %s1 = inlined_call_operand.vmem [shape: bf16[2,6,10,10,4], index: 1, kind: input, shape index: {}]
  %s2 = inlined_call_operand.vmem [shape: bf16[2,6,10,10,4], index: 2, kind: input, shape index: {}]
  %s3 = inlined_call_operand.vmem [shape: bf16[27,4,32], index: 3, kind: input, shape index: {}]
  %s4 = inlined_call_operand.vmem [shape: bf16[2,4,64,32], index: 4, kind: output, shape index: {0}]
  %s5 = inlined_call_operand.hbm [shape: f32[2,4,2,32], index: 5, kind: output, shape index: {1}]
  %6 = xla_tuple %s4, %s5
  %s7 = sld [smem:[#allocation0]]
  $region57: #{tpu_custom_call.1} parent=0
    _
  %s9 = ssub.s32 1, %s7
  %s10 = scalar_select 0, %s9, %s7
  $region1: #{tpu_custom_call.1} parent=0
    #allocation2 [shape = 'u8[2048]{0}', space=vmem, size = 0x800, scoped, tag = 'output window, operand 1']
    #allocation3 [shape = 's32[2]{0}', space=sflag, size = 0x8, scoped, tag = 'scoped memory for tpu_custom_call.1']
    %11 = vsyncpa [#allocation3], 0
    %s12 = scalar_lea.sflag [#allocation3], 1
    %13 = vsyncpa %s12, 0
    loop: start=0, step=1, limit=10
    $region2: #{tpu_custom_call.1} parent=1 // loop_pre_header
      _
    $region3: #{tpu_custom_call.1} parent=1 // loop_header
      %s15 = sphi 0, %s19
      %p16 = scmp.ge.s32.totalorder %s15, 10
      %s22 = sphi 0, %s34
      %s23 = sphi 0, %s30
      %s24 = sphi 0, %s22
      %s25 = sphi 0, %s23
      %s26 = sphi 0, %s24
      %s27 = sphi 0, %s25
      %s39 = sphi 0, %s41
      %s42 = sphi 0, %s39
      %s43 = sphi 0, %s42
      %s59 = sphi 0, %s43
      %s69 = sphi 0, %s71
      %s72 = sphi 0, %s69
      %s73 = sphi 0, %s72
      %s89 = sphi 0, %s73
      %s99 = sphi 0, %s101
      %s102 = sphi 0, %s99
      %s103 = sphi 0, %s102
      %s119 = sphi 0, %s103
      %s123 = sphi 0, %s123
      %s125 = sphi 0, %s123
      %s126 = sphi 0, %s125
      %s140 = sphi 0, %s126
      %s148 = sphi 0, %s150
      %s151 = sphi 0, %s148
      %s152 = sphi 0, %s151
      %s168 = sphi 0, %s152
      %s176 = sphi 0, %s178
      %s179 = sphi 0, %s176
      %s180 = sphi 0, %s179
      %s196 = sphi 0, %s180
    $region4: #{tpu_custom_call.1} parent=1 // loop_header_branch
      %18 = sbr.rel (%p16) target = $region8
    $region5: #{tpu_custom_call.1} parent=1 // loop_body
      %s20 = ssub.s32 %s15, 1
      %s21 = ssub.s32 %s15, 2
      %s28 = sadd.s32 1, %s23
      %p29 = scmp.ge.s32.totalorder %s28, 4
      %s30 = scalar_select %p29, 0, %s28
      %s31 = sadd.s32 1, %s22
      %s32 = scalar_select %p29, %s31, %s22
      %p33 = scmp.ge.s32.totalorder %s32, 2
      %s34 = scalar_select %p33, 0, %s32
      %s35 = ssub.s32 %s22, %s34
      %s36 = ssub.s32 %s23, %s30
      %s37 = sor.u32 %s35, %s36
      %p38 = scmp.eq.s32.totalorder %s37, 0
      %s40 = sadd.s32 %s39, 1
      %s41 = scalar_select %p38, %s39, %s40
      %p44 = pneg %p38
      %p45 = scmp.eq.s32.totalorder %s15, 7
      %p46 = por %p44, %p45
      %p47 = scmp.ne.s32.totalorder %s39, %s42
      %p48 = scmp.eq.s32.totalorder %s15, 0
      %p49 = por %p47, %p48
      %p50 = scmp.ne.s32.totalorder %s39, %s42
      %p51 = scmp.eq.s32.totalorder %s20, 7
      %p52 = por %p50, %p51
      %p53 = scmp.ne.s32.totalorder %s42, %s43
      %p54 = scmp.eq.s32.totalorder %s20, 0
      %p55 = por %p53, %p54
      %p56 = scmp.ne.s32.totalorder %s42, %s43
      %p57 = scmp.eq.s32.totalorder %s21, 7
      %p58 = por %p56, %p57
      %p60 = scmp.ne.s32.totalorder %s43, %s59
      %p61 = scmp.eq.s32.totalorder %s21, 0
      %p62 = por %p60, %p61
      %s63 = sadd.s32 %s23, 1
      %s64 = sadd.s32 %s30, 1
      %s65 = ssub.s32 %s22, %s34
      %s66 = ssub.s32 %s63, %s64
      %s67 = sor.u32 %s65, %s66
      %p68 = scmp.eq.s32.totalorder %s67, 0
      %s70 = sadd.s32 %s69, 1
      %s71 = scalar_select %p68, %s69, %s70
      %p74 = pneg %p68
      %p75 = scmp.eq.s32.totalorder %s15, 7
      %p76 = por %p74, %p75
      %p77 = scmp.ne.s32.totalorder %s69, %s72
      %p78 = scmp.eq.s32.totalorder %s15, 0
      %p79 = por %p77, %p78
      %p80 = scmp.ne.s32.totalorder %s69, %s72
      %p81 = scmp.eq.s32.totalorder %s20, 7
      %p82 = por %p80, %p81
      %p83 = scmp.ne.s32.totalorder %s72, %s73
      %p84 = scmp.eq.s32.totalorder %s20, 0
      %p85 = por %p83, %p84
      %p86 = scmp.ne.s32.totalorder %s72, %s73
      %p87 = scmp.eq.s32.totalorder %s21, 7
      %p88 = por %p86, %p87
      %p90 = scmp.ne.s32.totalorder %s73, %s89
      %p91 = scmp.eq.s32.totalorder %s21, 0
      %p92 = por %p90, %p91
      %s93 = sadd.s32 %s23, 2
      %s94 = sadd.s32 %s30, 2
      %s95 = ssub.s32 %s22, %s34
      %s96 = ssub.s32 %s93, %s94
      %s97 = sor.u32 %s95, %s96
      %p98 = scmp.eq.s32.totalorder %s97, 0
      %s100 = sadd.s32 %s99, 1
      %s101 = scalar_select %p98, %s99, %s100
      %p104 = pneg %p98
      %p105 = scmp.eq.s32.totalorder %s15, 7
      %p106 = por %p104, %p105
      %p107 = scmp.ne.s32.totalorder %s99, %s102
      %p108 = scmp.eq.s32.totalorder %s15, 0
      %p109 = por %p107, %p108
      %p110 = scmp.ne.s32.totalorder %s99, %s102
      %p111 = scmp.eq.s32.totalorder %s20, 7
      %p112 = por %p110, %p111
      %p113 = scmp.ne.s32.totalorder %s102, %s103
      %p114 = scmp.eq.s32.totalorder %s20, 0
      %p115 = por %p113, %p114
      %p116 = scmp.ne.s32.totalorder %s102, %s103
      %p117 = scmp.eq.s32.totalorder %s21, 7
      %p118 = por %p116, %p117
      %p120 = scmp.ne.s32.totalorder %s103, %s119
      %p121 = scmp.eq.s32.totalorder %s21, 0
      %p122 = por %p120, %p121
      %s124 = sadd.s32 %s123, 1
      %p127 = scmp.eq.s32.totalorder %s15, 7
      %p128 = scmp.ne.s32.totalorder %s123, %s125
      %p129 = scmp.eq.s32.totalorder %s15, 0
      %p130 = por %p128, %p129
      %p131 = scmp.ne.s32.totalorder %s123, %s125
      %p132 = scmp.eq.s32.totalorder %s20, 7
      %p133 = por %p131, %p132
      %p134 = scmp.ne.s32.totalorder %s125, %s126
      %p135 = scmp.eq.s32.totalorder %s20, 0
      %p136 = por %p134, %p135
      %p137 = scmp.ne.s32.totalorder %s125, %s126
      %p138 = scmp.eq.s32.totalorder %s21, 7
      %p139 = por %p137, %p138
      %p141 = scmp.ne.s32.totalorder %s126, %s140
      %p142 = scmp.eq.s32.totalorder %s21, 0
      %p143 = por %p141, %p142
      %s144 = ssub.s32 %s22, %s34
      %s145 = ssub.s32 %s23, %s30
      %s146 = sor.u32 %s144, %s145
      %p147 = scmp.eq.s32.totalorder %s146, 0
      %s149 = sadd.s32 %s148, 1
      %s150 = scalar_select %p147, %s148, %s149
      %p153 = pneg %p147
      %p154 = scmp.eq.s32.totalorder %s15, 7
      %p155 = por %p153, %p154
      %p156 = scmp.ne.s32.totalorder %s148, %s151
      %p157 = scmp.eq.s32.totalorder %s15, 0
      %p158 = por %p156, %p157
      %p159 = scmp.ne.s32.totalorder %s148, %s151
      %p160 = scmp.eq.s32.totalorder %s20, 7
      %p161 = por %p159, %p160
      %p162 = scmp.ne.s32.totalorder %s151, %s152
      %p163 = scmp.eq.s32.totalorder %s20, 0
      %p164 = por %p162, %p163
      %p165 = scmp.ne.s32.totalorder %s151, %s152
      %p166 = scmp.eq.s32.totalorder %s21, 7
      %p167 = por %p165, %p166
      %p169 = scmp.ne.s32.totalorder %s152, %s168
      %p170 = scmp.eq.s32.totalorder %s21, 0
      %p171 = por %p169, %p170
      %s172 = ssub.s32 %s22, %s34
      %s173 = ssub.s32 %s23, %s30
      %s174 = sor.u32 %s172, %s173
      %p175 = scmp.eq.s32.totalorder %s174, 0
      %s177 = sadd.s32 %s176, 1
      %s178 = scalar_select %p175, %s176, %s177
      %p181 = pneg %p175
      %p182 = scmp.eq.s32.totalorder %s15, 7
      %p183 = por %p181, %p182
      %p184 = scmp.ne.s32.totalorder %s176, %s179
      %p185 = scmp.eq.s32.totalorder %s15, 0
      %p186 = por %p184, %p185
      %p187 = scmp.ne.s32.totalorder %s176, %s179
      %p188 = scmp.eq.s32.totalorder %s20, 7
      %p189 = por %p187, %p188
      %p190 = scmp.ne.s32.totalorder %s179, %s180
      %p191 = scmp.eq.s32.totalorder %s20, 0
      %p192 = por %p190, %p191
      %p193 = scmp.ne.s32.totalorder %s179, %s180
      %p194 = scmp.eq.s32.totalorder %s21, 7
      %p195 = por %p193, %p194
      %p197 = scmp.ne.s32.totalorder %s180, %s196
      %p198 = scmp.eq.s32.totalorder %s21, 0
      %p199 = por %p197, %p198
      %p200 = scmp.le.s32.totalorder 1, %s15
      %p201 = scmp.lt.s32.totalorder %s15, 9
      %p202 = pnand %p200, %p201
      %p203 = pneg %p202
      // Predicated region
      $region9: #{tpu_custom_call.1} parent=5 // pred_check
        _
      $region10: #{tpu_custom_call.1} parent=5 // pred_check_branch
        %205 = sbr.rel (%p202) target = $region12
      $region11: #{tpu_custom_call.1} parent=5 // pred_region
        %s206 = ssub.s32 %s15, 1
        // Predicated region
        $region13: #{tpu_custom_call.1} parent=11 // pred_check
          %p207 = pneg %p136
        $region14: #{tpu_custom_call.1} parent=11 // pred_check_branch
          %209 = sbr.rel (%p207) target = $region16
        $region15: #{tpu_custom_call.1} parent=11 // pred_region
          _
        $region16: #{tpu_custom_call.1} parent=11 // pred_fallthru
          _
      $region12: #{tpu_custom_call.1} parent=5 // pred_fallthru
        _
      %p210 = scmp.lt.s32.totalorder %s15, 8
      // Predicated region
      $region17: #{tpu_custom_call.1} parent=5 // pred_check
        %p211 = pneg %p210
      $region18: #{tpu_custom_call.1} parent=5 // pred_check_branch
        %213 = sbr.rel (%p211) target = $region20
      $region19: #{tpu_custom_call.1} parent=5 // pred_region
        // Predicated region
        $region21: #{tpu_custom_call.1} parent=19 // pred_check
          %p214 = pneg %p49
        $region22: #{tpu_custom_call.1} parent=19 // pred_check_branch
          %216 = sbr.rel (%p214) target = $region24
        $region23: #{tpu_custom_call.1} parent=19 // pred_region
          %p217 = scmp.lt.s32.totalorder %s22, 1
          %s218 = scalar_select %p217, %s22, 1
          %p219 = scmp.lt.s32.totalorder %s23, 5
          %s220 = scalar_select %p219, %s23, 5
          %s221 = smul.addr %s220, 20
          %s222 = smul.addr %s218, 120
          %s223 = sadd.s32 %s221, %s222
          %s224 = smul.addr %s223, 4
          %s225 = scalar_lea.vmem %s0, %s224
        $region24: #{tpu_custom_call.1} parent=19 // pred_fallthru
          _
        // Predicated region
        $region25: #{tpu_custom_call.1} parent=19 // pred_check
          %p226 = pneg %p79
        $region26: #{tpu_custom_call.1} parent=19 // pred_check_branch
          %228 = sbr.rel (%p226) target = $region28
        $region27: #{tpu_custom_call.1} parent=19 // pred_region
          %s229 = sadd.s32 %s23, 1
          %p230 = scmp.lt.s32.totalorder %s22, 1
          %s231 = scalar_select %p230, %s22, 1
          %p232 = scmp.lt.s32.totalorder %s229, 5
          %s233 = scalar_select %p232, %s229, 5
          %s234 = smul.addr %s233, 20
          %s235 = smul.addr %s231, 120
          %s236 = sadd.s32 %s234, %s235
          %s237 = smul.addr %s236, 4
          %s238 = scalar_lea.vmem %s1, %s237
          %s239 = sadd.s32 %s23, 1
        $region28: #{tpu_custom_call.1} parent=19 // pred_fallthru
          _
        // Predicated region
        $region29: #{tpu_custom_call.1} parent=19 // pred_check
          %p240 = pneg %p109
        $region30: #{tpu_custom_call.1} parent=19 // pred_check_branch
          %242 = sbr.rel (%p240) target = $region32
        $region31: #{tpu_custom_call.1} parent=19 // pred_region
          %s243 = sadd.s32 %s23, 2
          %p244 = scmp.lt.s32.totalorder %s22, 1
          %s245 = scalar_select %p244, %s22, 1
          %p246 = scmp.lt.s32.totalorder %s243, 5
          %s247 = scalar_select %p246, %s243, 5
          %s248 = smul.addr %s247, 20
          %s249 = smul.addr %s245, 120
          %s250 = sadd.s32 %s248, %s249
          %s251 = smul.addr %s250, 4
          %s252 = scalar_lea.vmem %s2, %s251
          %s253 = sadd.s32 %s23, 2
        $region32: #{tpu_custom_call.1} parent=19 // pred_fallthru
          _
      $region20: #{tpu_custom_call.1} parent=5 // pred_fallthru
        _
      %p254 = scmp.le.s32.totalorder 1, %s15
      %p255 = scmp.lt.s32.totalorder %s15, 9
      %p256 = pnand %p254, %p255
      %p257 = pneg %p256
      // Predicated region
      $region33: #{tpu_custom_call.1} parent=5 // pred_check
        _
      $region34: #{tpu_custom_call.1} parent=5 // pred_check_branch
        %259 = sbr.rel (%p256) target = $region36
      $region35: #{tpu_custom_call.1} parent=5 // pred_region
        %s260 = ssub.s32 %s15, 1
        %p261 = scmp.lt.s32.totalorder %s24, 1
        %s262 = scalar_select %p261, %s24, 1
        %p263 = scmp.lt.s32.totalorder %s25, 5
        %s264 = scalar_select %p263, %s25, 5
        %s265 = smul.addr %s264, 20
        %s266 = smul.addr %s262, 120
        %s267 = sadd.s32 %s265, %s266
        %s268 = smul.addr %s267, 4
        %s269 = scalar_lea.vmem %s0, %s268
        %p270 = pneg %p55
        %p271 = pneg %p52
        %s272 = sadd.s32 %s25, 1
        %p273 = scmp.lt.s32.totalorder %s24, 1
        %s274 = scalar_select %p273, %s24, 1
        %p275 = scmp.lt.s32.totalorder %s272, 5
        %s276 = scalar_select %p275, %s272, 5
        %s277 = smul.addr %s276, 20
        %s278 = smul.addr %s274, 120
        %s279 = sadd.s32 %s277, %s278
        %s280 = smul.addr %s279, 4
        %s281 = scalar_lea.vmem %s1, %s280
        %p282 = pneg %p85
        %p283 = pneg %p82
        %s284 = sadd.s32 %s25, 2
        %p285 = scmp.lt.s32.totalorder %s24, 1
        %s286 = scalar_select %p285, %s24, 1
        %p287 = scmp.lt.s32.totalorder %s284, 5
        %s288 = scalar_select %p287, %s284, 5
        %s289 = smul.addr %s288, 20
        %s290 = smul.addr %s286, 120
        %s291 = sadd.s32 %s289, %s290
        %s292 = smul.addr %s291, 4
        %s293 = scalar_lea.vmem %s2, %s292
        %p294 = pneg %p115
        %p295 = pneg %p112
        %p296 = pneg %p136
        %p297 = pneg %p133
        %p298 = pneg %p164
        %p299 = pneg %p161
        %p300 = scmp.lt.s32.totalorder %s24, 1
        %s301 = scalar_select %p300, %s24, 1
        %p302 = scmp.lt.s32.totalorder %s25, 3
        %s303 = scalar_select %p302, %s25, 3
        %s304 = smul.addr %s303, 8
        %s305 = smul.addr %s301, 32
        %s306 = sadd.s32 %s304, %s305
        %s307 = smul.addr %s306, 4
        %s308 = scalar_lea.vmem %s4, %s307
        %p309 = pneg %p192
        %p310 = pneg %p189
        %s311 = sand.u32 %s179, 1
        %s312 = scalar_lea.sflag [#allocation3], %s311
        %s313 = sand.u32 %s179, 1
        %s314 = smul.addr %s313, 2
        %s315 = scalar_lea.vmem [#allocation2], %s314
        %p316 = scmp.lt.s32.totalorder %s24, 1
        %s317 = scalar_select %p316, %s24, 1
        %p318 = scmp.lt.s32.totalorder %s25, 5
        %s319 = scalar_select %p318, %s25, 5
        %s320 = smul.addr %s319, 20
        %s321 = smul.addr %s317, 120
        %s322 = sadd.s32 %s320, %s321
        %s323 = smul.addr %s322, 4
        %s324 = scalar_lea.vmem %s0, %s323
        %s325 = sadd.s32 %s25, 1
        %p326 = scmp.lt.s32.totalorder %s24, 1
        %s327 = scalar_select %p326, %s24, 1
        %p328 = scmp.lt.s32.totalorder %s325, 5
        %s329 = scalar_select %p328, %s325, 5
        %s330 = smul.addr %s329, 20
        %s331 = smul.addr %s327, 120
        %s332 = sadd.s32 %s330, %s331
        %s333 = smul.addr %s332, 4
        %s334 = scalar_lea.vmem %s1, %s333
        %s335 = sadd.s32 %s25, 1
        %s336 = sadd.s32 %s25, 2
        %p337 = scmp.lt.s32.totalorder %s24, 1
        %s338 = scalar_select %p337, %s24, 1
        %p339 = scmp.lt.s32.totalorder %s336, 5
        %s340 = scalar_select %p339, %s336, 5
        %s341 = smul.addr %s340, 20
        %s342 = smul.addr %s338, 120
        %s343 = sadd.s32 %s341, %s342
        %s344 = smul.addr %s343, 4
        %s345 = scalar_lea.vmem %s2, %s344
        %s346 = sadd.s32 %s25, 2
        %p347 = scmp.lt.s32.totalorder %s24, 1
        %s348 = scalar_select %p347, %s24, 1
        %p349 = scmp.lt.s32.totalorder %s25, 3
        %s350 = scalar_select %p349, %s25, 3
        %s351 = smul.addr %s350, 8
        %s352 = smul.addr %s348, 32
        %s353 = sadd.s32 %s351, %s352
        %s354 = smul.addr %s353, 4
        %s355 = scalar_lea.vmem %s4, %s354
        %v357 = vld [vmem:[%s324] sm:$0xf]
        %v358 = vld [vmem:[%s324 + $0x8] sm:$0xf]
        %v359 = vld [vmem:[%s324 + $0x10] sm:$0xf]
        %v360 = vld [vmem:[%s324 + $0x18] sm:$0xf]
        %v361 = vld [vmem:[%s324 + $0x20] sm:$0xf]
        %v362 = vld [vmem:[%s324 + $0x28] sm:$0xf]
        %v363 = vld [vmem:[%s324 + $0x30] sm:$0xf]
        %v364 = vld [vmem:[%s324 + $0x38] sm:$0xf]
        %v365 = vld [vmem:[%s3] sm:$0x3]
        %v366 = vld [vmem:[%s324 + $0x4] sm:$0x1]
        %v367 = vld [vmem:[%s324 + $0xc] sm:$0x1]
        %v368 = vld [vmem:[%s324 + $0x14] sm:$0x1]
        %v369 = vld [vmem:[%s324 + $0x1c] sm:$0x1]
        %v370 = vld [vmem:[%s324 + $0x24] sm:$0x1]
        %v371 = vld [vmem:[%s324 + $0x2c] sm:$0x1]
        %v372 = vld [vmem:[%s324 + $0x34] sm:$0x1]
        %v373 = vld [vmem:[%s324 + $0x3c] sm:$0x1]
        %vm374 = vsmask.f32 3328
        %vm375 = vsmask.f32 7440
        %vm376 = vmor %vm374, %vm375
        %v378 = vshrl.u32 %v357, 16
        %v380 = vrot.slane %v378, 4
        %v381 = vshll.u32 %v357, 16
        %v383 = vrot.slane %v381, 5
        %v384 = vor.u32 %v380, %v383
        %v385 = vrot.slane %v384, 4
        %v387 = vshll.u32 %v366, 16
        %v389 = vrot.slane %v387, 5
        %v390 = vsel %vm376, %v385, %v389
        %v392 = vshrl.u32 %v358, 16
        %v394 = vrot.slane %v392, 4
        %v395 = vshll.u32 %v358, 16
        %v397 = vrot.slane %v395, 5
        %v398 = vor.u32 %v394, %v397
        %v399 = vrot.slane %v398, 4
        %v401 = vshll.u32 %v367, 16
        %v403 = vrot.slane %v401, 5
        %v404 = vsel %vm376, %v399, %v403
        %v406 = vshrl.u32 %v359, 16
        %v408 = vrot.slane %v406, 4
        %v409 = vshll.u32 %v359, 16
        %v411 = vrot.slane %v409, 5
        %v412 = vor.u32 %v408, %v411
        %v413 = vrot.slane %v412, 4
        %v415 = vshll.u32 %v368, 16
        %v417 = vrot.slane %v415, 5
        %v418 = vsel %vm376, %v413, %v417
        %v420 = vshrl.u32 %v360, 16
        %v422 = vrot.slane %v420, 4
        %v423 = vshll.u32 %v360, 16
        %v425 = vrot.slane %v423, 5
        %v426 = vor.u32 %v422, %v425
        %v427 = vrot.slane %v426, 4
        %v429 = vshll.u32 %v369, 16
        %v431 = vrot.slane %v429, 5
        %v432 = vsel %vm376, %v427, %v431
        %v434 = vshrl.u32 %v361, 16
        %v436 = vrot.slane %v434, 4
        %v437 = vshll.u32 %v361, 16
        %v439 = vrot.slane %v437, 5
        %v440 = vor.u32 %v436, %v439
        %v441 = vrot.slane %v440, 4
        %v443 = vshll.u32 %v370, 16
        %v445 = vrot.slane %v443, 5
        %v446 = vsel %vm376, %v441, %v445
        %v448 = vshrl.u32 %v362, 16
        %v450 = vrot.slane %v448, 4
        %v451 = vshll.u32 %v362, 16
        %v453 = vrot.slane %v451, 5
        %v454 = vor.u32 %v450, %v453
        %v455 = vrot.slane %v454, 4
        %v457 = vshll.u32 %v371, 16
        %v459 = vrot.slane %v457, 5
        %v460 = vsel %vm376, %v455, %v459
        %v462 = vshrl.u32 %v363, 16
        %v464 = vrot.slane %v462, 4
        %v465 = vshll.u32 %v363, 16
        %v467 = vrot.slane %v465, 5
        %v468 = vor.u32 %v464, %v467
        %v469 = vrot.slane %v468, 4
        %v471 = vshll.u32 %v372, 16
        %v473 = vrot.slane %v471, 5
        %v474 = vsel %vm376, %v469, %v473
        %v476 = vshrl.u32 %v364, 16
        %v478 = vrot.slane %v476, 4
        %v479 = vshll.u32 %v364, 16
        %v481 = vrot.slane %v479, 5
        %v482 = vor.u32 %v478, %v481
        %v483 = vrot.slane %v482, 4
        %v485 = vshll.u32 %v373, 16
        %v487 = vrot.slane %v485, 5
        %v488 = vsel %vm376, %v483, %v487
        %s489 = scalar_lea.vmem %s3, 2
        %v490 = vld [vmem:[%s489] sm:$0x3]
        %v491 = vunpack.c.l.b16 %v390
        %v492 = vunpack.c.l.b16 %v404
        %v493 = vunpack.c.l.b16 %v418
        %v494 = vunpack.c.l.b16 %v432
        %v495 = vunpack.c.l.b16 %v446
        %v496 = vunpack.c.l.b16 %v460
        %v497 = vunpack.c.l.b16 %v474
        %v498 = vunpack.c.l.b16 %v488
        %v499 = vpack.c.b16 %v492, %v491
        %v500 = vpack.c.b16 %v494, %v493
        %v501 = vpack.c.b16 %v496, %v495
        %v502 = vpack.c.b16 %v498, %v497
        %vm503 = vcmask 31744
        %v505 = vsel %vm503, %v499, 0
        %v508 = vsel %vm503, %v500, 0
        %v511 = vsel %vm503, %v501, 0
        %v514 = vsel %vm503, %v502, 0
        %vm516 = vcmask 1041408
        %v518 = vsel %vm516, %v490, 0
        %520 = vmatprep.subr.bf16.mxu0 0
        %521 = vmatpush1.bf16.msra.mxu0 %v518
        %522 = vmatprep.subr.bf16.mxu0 0
        %523 = vmatpush1.bf16.msra.mxu0 0
        %524 = vmatprep.subr.bf16.mxu0 0
        %525 = vmatpush1.bf16.msra.mxu0 0
        %526 = vmatprep.subr.bf16.mxu0 0
        %527 = vmatpush1.bf16.msra.mxu0 0
        %528 = vmatprep.subr.bf16.mxu0 0
        %529 = vmatpush1.bf16.msra.mxu0 0
        %530 = vmatprep.subr.bf16.mxu0 0
        %531 = vmatpush1.bf16.msra.mxu0 0
        %532 = vmatprep.subr.bf16.mxu0 0
        %533 = vmatpush1.bf16.msra.mxu0 0
        %534 = vmatprep.subr.bf16.mxu0 0
        %535 = vmatpush1.bf16.msra.mxu0 0
        %536 = vmatprep.subr.bf16.mxu0 0
        %537 = vmatpush1.bf16.msra.mxu0 0
        %538 = vmatprep.subr.bf16.mxu0 0
        %539 = vmatpush1.bf16.msra.mxu0 0
        %540 = vmatprep.subr.bf16.mxu0 0
        %541 = vmatpush1.bf16.msra.mxu0 0
        %542 = vmatprep.subr.bf16.mxu0 0
        %543 = vmatpush1.bf16.msra.mxu0 0
        %544 = vmatprep.subr.bf16.mxu0 0
        %545 = vmatpush1.bf16.msra.mxu0 0
        %546 = vmatprep.subr.bf16.mxu0 0
        %547 = vmatpush1.bf16.msra.mxu0 0
        %548 = vmatprep.subr.bf16.mxu0 0
        %549 = vmatpush1.bf16.msra.mxu0 0
        %550 = vmatprep.subr.bf16.mxu0 0
        %551 = vmatpush1.bf16.msra.mxu0 0
        %552 = vmatprep.mubr.bf16.mxu0 0
        %553 = vmatmul.mubr.bf16.gmra.mrb[0].mxu0 %v505
        %v554 = vpop.f32.mrb[0].mxu0
        %v555 = vadd.f32 0.0, %v554
        %v556 = vpop.f32.mrb[0].mxu0
        %v557 = vpop.f32.mrb[0].mxu0
        %v558 = vadd.f32 0.0, %v557
        %v559 = vpop.f32.mrb[0].mxu0
        %560 = vmatprep.mubr.bf16.mxu0 0
        %561 = vmatmul.mubr.bf16.gmra.mrb[0].mxu0 %v508
        %v562 = vpop.f32.mrb[0].mxu0
        %v563 = vadd.f32 0.0, %v562
        %v564 = vpop.f32.mrb[0].mxu0
        %v565 = vpop.f32.mrb[0].mxu0
        %v566 = vadd.f32 0.0, %v565
        %v567 = vpop.f32.mrb[0].mxu0
        %568 = vmatprep.mubr.bf16.mxu0 0
        %569 = vmatmul.mubr.bf16.gmra.mrb[0].mxu0 %v511
        %v570 = vpop.f32.mrb[0].mxu0
        %v571 = vadd.f32 0.0, %v570
        %v572 = vpop.f32.mrb[0].mxu0
        %v573 = vpop.f32.mrb[0].mxu0
        %v574 = vadd.f32 0.0, %v573
        %v575 = vpop.f32.mrb[0].mxu0
        %576 = vmatprep.mubr.bf16.mxu0 0
        %577 = vmatmul.mubr.bf16.gmra.mrb[0].mxu0 %v514
        %v578 = vpop.f32.mrb[0].mxu0
        %v579 = vadd.f32 0.0, %v578
        %v580 = vpop.f32.mrb[0].mxu0
        %v581 = vpop.f32.mrb[0].mxu0
        %v582 = vadd.f32 0.0, %v581
        %v583 = vpop.f32.mrb[0].mxu0
        %584 = vdwg.mxu0
        %v593 = vunpack.c.l.b16 %v357
        %v594 = vunpack.c.l.b16 %v358
        %v595 = vunpack.c.l.b16 %v359
        %v596 = vunpack.c.l.b16 %v360
        %v597 = vunpack.c.l.b16 %v361
        %v598 = vunpack.c.l.b16 %v362
        %v599 = vunpack.c.l.b16 %v363
        %v600 = vunpack.c.l.b16 %v364
        %v601 = vpack.c.b16 %v594, %v593
        %v602 = vpack.c.b16 %v596, %v595
        %v603 = vpack.c.b16 %v598, %v597
        %v604 = vpack.c.b16 %v600, %v599
        %v606 = vsel %vm503, %v601, 0
        %v609 = vsel %vm503, %v602, 0
        %v612 = vsel %vm503, %v603, 0
        %v615 = vsel %vm503, %v604, 0
        %v618 = vsel %vm516, %v365, 0
        %620 = vmatprep.subr.bf16.mxu0 0
        %621 = vmatpush1.bf16.msra.mxu0 %v618
        %622 = vmatprep.subr.bf16.mxu0 0
        %623 = vmatpush1.bf16.msra.mxu0 0
        %624 = vmatprep.subr.bf16.mxu0 0
        %625 = vmatpush1.bf16.msra.mxu0 0
        %626 = vmatprep.subr.bf16.mxu0 0
        %627 = vmatpush1.bf16.msra.mxu0 0
        %628 = vmatprep.subr.bf16.mxu0 0
        %629 = vmatpush1.bf16.msra.mxu0 0
        %630 = vmatprep.subr.bf16.mxu0 0
        %631 = vmatpush1.bf16.msra.mxu0 0
        %632 = vmatprep.subr.bf16.mxu0 0
        %633 = vmatpush1.bf16.msra.mxu0 0
        %634 = vmatprep.subr.bf16.mxu0 0
        %635 = vmatpush1.bf16.msra.mxu0 0
        %636 = vmatprep.subr.bf16.mxu0 0
        %637 = vmatpush1.bf16.msra.mxu0 0
        %638 = vmatprep.subr.bf16.mxu0 0
        %639 = vmatpush1.bf16.msra.mxu0 0
        %640 = vmatprep.subr.bf16.mxu0 0
        %641 = vmatpush1.bf16.msra.mxu0 0
        %642 = vmatprep.subr.bf16.mxu0 0
        %643 = vmatpush1.bf16.msra.mxu0 0
        %644 = vmatprep.subr.bf16.mxu0 0
        %645 = vmatpush1.bf16.msra.mxu0 0
        %646 = vmatprep.subr.bf16.mxu0 0
        %647 = vmatpush1.bf16.msra.mxu0 0
        %648 = vmatprep.subr.bf16.mxu0 0
        %649 = vmatpush1.bf16.msra.mxu0 0
        %650 = vmatprep.subr.bf16.mxu0 0
        %651 = vmatpush1.bf16.msra.mxu0 0
        %652 = vmatprep.mubr.bf16.mxu0 0
        %653 = vmatmul.mubr.bf16.gmra.mrb[0].mxu0 %v606
        %v654 = vpop.f32.mrb[0].mxu0
        %v655 = vadd.f32 %v555, %v654
        %v656 = vpop.f32.mrb[0].mxu0
        %v657 = vpop.f32.mrb[0].mxu0
        %v658 = vadd.f32 %v558, %v657
        %v659 = vpop.f32.mrb[0].mxu0
        %660 = vmatprep.mubr.bf16.mxu0 0
        %661 = vmatmul.mubr.bf16.gmra.mrb[0].mxu0 %v609
        %v662 = vpop.f32.mrb[0].mxu0
        %v663 = vadd.f32 %v563, %v662
        %v664 = vpop.f32.mrb[0].mxu0
        %v665 = vpop.f32.mrb[0].mxu0
        %v666 = vadd.f32 %v566, %v665
        %v667 = vpop.f32.mrb[0].mxu0
        %668 = vmatprep.mubr.bf16.mxu0 0
        %669 = vmatmul.mubr.bf16.gmra.mrb[0].mxu0 %v612
        %v670 = vpop.f32.mrb[0].mxu0
        %v671 = vadd.f32 %v571, %v670
        %v672 = vpop.f32.mrb[0].mxu0
        %v673 = vpop.f32.mrb[0].mxu0
        %v674 = vadd.f32 %v574, %v673
        %v675 = vpop.f32.mrb[0].mxu0
        %676 = vmatprep.mubr.bf16.mxu0 0
        %677 = vmatmul.mubr.bf16.gmra.mrb[0].mxu0 %v615
        %v678 = vpop.f32.mrb[0].mxu0
        %v679 = vadd.f32 %v579, %v678
        %v680 = vpop.f32.mrb[0].mxu0
        %v681 = vpop.f32.mrb[0].mxu0
        %v682 = vadd.f32 %v582, %v681
        %v683 = vpop.f32.mrb[0].mxu0
        %684 = vdwg.mxu0
        %v685 = vld [vmem:[%s324] sm:$0xe]
        %v686 = vld [vmem:[%s324 + $0x8] sm:$0xe]
        %v687 = vld [vmem:[%s324 + $0x10] sm:$0xe]
        %v688 = vld [vmem:[%s324 + $0x18] sm:$0xe]
        %v689 = vld [vmem:[%s324 + $0x20] sm:$0xe]
        %v690 = vld [vmem:[%s324 + $0x28] sm:$0xe]
        %v691 = vld [vmem:[%s324 + $0x30] sm:$0xe]
        %v692 = vld [vmem:[%s324 + $0x38] sm:$0xe]
        %vm709 = vcmask 1042432
        %vm710 = vcmask 1046532
        %vm711 = vmor %vm709, %vm710
        %v712 = vrot.slane %v685, 5
        %v713 = vrot.slane %v712, 4
        %v714 = vrot.slane %v366, 5
        %v715 = vsel %vm711, %v713, %v714
        %v716 = vrot.slane %v686, 5
        %v717 = vrot.slane %v716, 4
        %v718 = vrot.slane %v367, 5
        %v719 = vsel %vm711, %v717, %v718
        %v720 = vrot.slane %v687, 5
        %v721 = vrot.slane %v720, 4
        %v722 = vrot.slane %v368, 5
        %v723 = vsel %vm711, %v721, %v722
        %v724 = vrot.slane %v688, 5
        %v725 = vrot.slane %v724, 4
        %v726 = vrot.slane %v369, 5
        %v727 = vsel %vm711, %v725, %v726
        %v728 = vrot.slane %v689, 5
        %v729 = vrot.slane %v728, 4
        %v730 = vrot.slane %v370, 5
        %v731 = vsel %vm711, %v729, %v730
        %v732 = vrot.slane %v690, 5
        %v733 = vrot.slane %v732, 4
        %v734 = vrot.slane %v371, 5
        %v735 = vsel %vm711, %v733, %v734
        %v736 = vrot.slane %v691, 5
        %v737 = vrot.slane %v736, 4
        %v738 = vrot.slane %v372, 5
        %v739 = vsel %vm711, %v737, %v738
        %v740 = vrot.slane %v692, 5
        %v741 = vrot.slane %v740, 4
        %v742 = vrot.slane %v373, 5
        %v743 = vsel %vm711, %v741, %v742
        %s744 = scalar_lea.vmem %s3, 4
        %v745 = vld [vmem:[%s744] sm:$0x3]
        %v746 = vunpack.c.l.b16 %v715
        %v747 = vunpack.c.l.b16 %v719
        %v748 = vunpack.c.l.b16 %v723
        %v749 = vunpack.c.l.b16 %v727
        %v750 = vunpack.c.l.b16 %v731
        %v751 = vunpack.c.l.b16 %v735
        %v752 = vunpack.c.l.b16 %v739
        %v753 = vunpack.c.l.b16 %v743
        %v754 = vpack.c.b16 %v747, %v746
        %v755 = vpack.c.b16 %v749, %v748
        %v756 = vpack.c.b16 %v751, %v750
        %v757 = vpack.c.b16 %v753, %v752
        %v759 = vsel %vm503, %v754, 0
        %v762 = vsel %vm503, %v755, 0
        %v765 = vsel %vm503, %v756, 0
        %v768 = vsel %vm503, %v757, 0
        %v771 = vsel %vm516, %v745, 0
        %773 = vmatprep.subr.bf16.mxu0 0
        %774 = vmatpush1.bf16.msra.mxu0 %v771
        %775 = vmatprep.subr.bf16.mxu0 0
        %776 = vmatpush1.bf16.msra.mxu0 0
        %777 = vmatprep.subr.bf16.mxu0 0
        %778 = vmatpush1.bf16.msra.mxu0 0
        %779 = vmatprep.subr.bf16.mxu0 0
        %780 = vmatpush1.bf16.msra.mxu0 0
        %781 = vmatprep.subr.bf16.mxu0 0
        %782 = vmatpush1.bf16.msra.mxu0 0
        %783 = vmatprep.subr.bf16.mxu0 0
        %784 = vmatpush1.bf16.msra.mxu0 0
        %785 = vmatprep.subr.bf16.mxu0 0
        %786 = vmatpush1.bf16.msra.mxu0 0
        %787 = vmatprep.subr.bf16.mxu0 0
        %788 = vmatpush1.bf16.msra.mxu0 0
        %789 = vmatprep.subr.bf16.mxu0 0
        %790 = vmatpush1.bf16.msra.mxu0 0
        %791 = vmatprep.subr.bf16.mxu0 0
        %792 = vmatpush1.bf16.msra.mxu0 0
        %793 = vmatprep.subr.bf16.mxu0 0
        %794 = vmatpush1.bf16.msra.mxu0 0
        %795 = vmatprep.subr.bf16.mxu0 0
        %796 = vmatpush1.bf16.msra.mxu0 0
        %797 = vmatprep.subr.bf16.mxu0 0
        %798 = vmatpush1.bf16.msra.mxu0 0
        %799 = vmatprep.subr.bf16.mxu0 0
        %800 = vmatpush1.bf16.msra.mxu0 0
        %801 = vmatprep.subr.bf16.mxu0 0
        %802 = vmatpush1.bf16.msra.mxu0 0
        %803 = vmatprep.subr.bf16.mxu0 0
        %804 = vmatpush1.bf16.msra.mxu0 0
        %805 = vmatprep.mubr.bf16.mxu0 0
        %806 = vmatmul.mubr.bf16.gmra.mrb[0].mxu0 %v759
        %v807 = vpop.f32.mrb[0].mxu0
        %v808 = vadd.f32 0.0, %v807
        %v809 = vpop.f32.mrb[0].mxu0
        %v810 = vpop.f32.mrb[0].mxu0
        %v811 = vadd.f32 0.0, %v810
        %v812 = vpop.f32.mrb[0].mxu0
        %813 = vmatprep.mubr.bf16.mxu0 0
        %814 = vmatmul.mubr.bf16.gmra.mrb[0].mxu0 %v762
        %v815 = vpop.f32.mrb[0].mxu0
        %v816 = vadd.f32 0.0, %v815
        %v817 = vpop.f32.mrb[0].mxu0
        %v818 = vpop.f32.mrb[0].mxu0
        %v819 = vadd.f32 0.0, %v818
        %v820 = vpop.f32.mrb[0].mxu0
        %821 = vmatprep.mubr.bf16.mxu0 0
        %822 = vmatmul.mubr.bf16.gmra.mrb[0].mxu0 %v765
        %v823 = vpop.f32.mrb[0].mxu0
        %v824 = vadd.f32 0.0, %v823
        %v825 = vpop.f32.mrb[0].mxu0
        %v826 = vpop.f32.mrb[0].mxu0
        %v827 = vadd.f32 0.0, %v826
        %v828 = vpop.f32.mrb[0].mxu0
        %829 = vmatprep.mubr.bf16.mxu0 0
        %830 = vmatmul.mubr.bf16.gmra.mrb[0].mxu0 %v768
        %v831 = vpop.f32.mrb[0].mxu0
        %v832 = vadd.f32 0.0, %v831
        %v833 = vpop.f32.mrb[0].mxu0
        %v834 = vpop.f32.mrb[0].mxu0
        %v835 = vadd.f32 0.0, %v834
        %v836 = vpop.f32.mrb[0].mxu0
        %837 = vdwg.mxu0
        %v838 = vadd.f32 %v655, %v808
        %v839 = vadd.f32 %v658, %v811
        %v840 = vadd.f32 %v663, %v816
        %v841 = vadd.f32 %v666, %v819
        %v842 = vadd.f32 %v671, %v824
        %v843 = vadd.f32 %v674, %v827
        %v844 = vadd.f32 %v679, %v832
        %v845 = vadd.f32 %v682, %v835
        %s846 = scalar_lea.vmem %s324, 8
        %v847 = vld [vmem:[%s846] sm:$0xf]
        %v848 = vld [vmem:[%s846 + $0x8] sm:$0xf]
        %v849 = vld [vmem:[%s846 + $0x10] sm:$0xf]
        %v850 = vld [vmem:[%s846 + $0x18] sm:$0xf]
        %v851 = vld [vmem:[%s846 + $0x20] sm:$0xf]
        %v852 = vld [vmem:[%s846 + $0x28] sm:$0xf]
        %v853 = vld [vmem:[%s846 + $0x30] sm:$0xf]
        %v854 = vld [vmem:[%s846 + $0x38] sm:$0xf]
        %s855 = scalar_lea.vmem %s3, 6
        %v856 = vld [vmem:[%s855] sm:$0x3]
        %v865 = vunpack.c.l.b16 %v847
        %v866 = vunpack.c.l.b16 %v848
        %v867 = vunpack.c.l.b16 %v849
        %v868 = vunpack.c.l.b16 %v850
        %v869 = vunpack.c.l.b16 %v851
        %v870 = vunpack.c.l.b16 %v852
        %v871 = vunpack.c.l.b16 %v853
        %v872 = vunpack.c.l.b16 %v854
        %v873 = vpack.c.b16 %v866, %v865
        %v874 = vpack.c.b16 %v868, %v867
        %v875 = vpack.c.b16 %v870, %v869
        %v876 = vpack.c.b16 %v872, %v871
        %v878 = vsel %vm503, %v873, 0
        %v881 = vsel %vm503, %v874, 0
        %v884 = vsel %vm503, %v875, 0
        %v887 = vsel %vm503, %v876, 0
        %v890 = vsel %vm516, %v856, 0
        %892 = vmatprep.subr.bf16.mxu0 0
        %893 = vmatpush1.bf16.msra.mxu0 %v890
        %894 = vmatprep.subr.bf16.mxu0 0
        %895 = vmatpush1.bf16.msra.mxu0 0
        %896 = vmatprep.subr.bf16.mxu0 0
        %897 = vmatpush1.bf16.msra.mxu0 0
        %898 = vmatprep.subr.bf16.mxu0 0
        %899 = vmatpush1.bf16.msra.mxu0 0
        %900 = vmatprep.subr.bf16.mxu0 0
        %901 = vmatpush1.bf16.msra.mxu0 0
        %902 = vmatprep.subr.bf16.mxu0 0
        %903 = vmatpush1.bf16.msra.mxu0 0
        %904 = vmatprep.subr.bf16.mxu0 0
        %905 = vmatpush1.bf16.msra.mxu0 0
        %906 = vmatprep.subr.bf16.mxu0 0
        %907 = vmatpush1.bf16.msra.mxu0 0
        %908 = vmatprep.subr.bf16.mxu0 0
        %909 = vmatpush1.bf16.msra.mxu0 0
        %910 = vmatprep.subr.bf16.mxu0 0
        %911 = vmatpush1.bf16.msra.mxu0 0
        %912 = vmatprep.subr.bf16.mxu0 0
        %913 = vmatpush1.bf16.msra.mxu0 0
        %914 = vmatprep.subr.bf16.mxu0 0
        %915 = vmatpush1.bf16.msra.mxu0 0
        %916 = vmatprep.subr.bf16.mxu0 0
        %917 = vmatpush1.bf16.msra.mxu0 0
        %918 = vmatprep.subr.bf16.mxu0 0
        %919 = vmatpush1.bf16.msra.mxu0 0
        %920 = vmatprep.subr.bf16.mxu0 0
        %921 = vmatpush1.bf16.msra.mxu0 0
        %922 = vmatprep.subr.bf16.mxu0 0
        %923 = vmatpush1.bf16.msra.mxu0 0
        %924 = vmatprep.mubr.bf16.mxu0 0
        %925 = vmatmul.mubr.bf16.gmra.mrb[0].mxu0 %v878
        %v926 = vpop.f32.mrb[0].mxu0
        %v927 = vadd.f32 0.0, %v926
        %v928 = vpop.f32.mrb[0].mxu0
        %v929 = vpop.f32.mrb[0].mxu0
        %v930 = vadd.f32 0.0, %v929
        %v931 = vpop.f32.mrb[0].mxu0
        %932 = vmatprep.mubr.bf16.mxu0 0
        %933 = vmatmul.mubr.bf16.gmra.mrb[0].mxu0 %v881
        %v934 = vpop.f32.mrb[0].mxu0
        %v935 = vadd.f32 0.0, %v934
        %v936 = vpop.f32.mrb[0].mxu0
        %v937 = vpop.f32.mrb[0].mxu0
        %v938 = vadd.f32 0.0, %v937
        %v939 = vpop.f32.mrb[0].mxu0
        %940 = vmatprep.mubr.bf16.mxu0 0
        %941 = vmatmul.mubr.bf16.gmra.mrb[0].mxu0 %v884
        %v942 = vpop.f32.mrb[0].mxu0
        %v943 = vadd.f32 0.0, %v942
        %v944 = vpop.f32.mrb[0].mxu0
        %v945 = vpop.f32.mrb[0].mxu0
        %v946 = vadd.f32 0.0, %v945
        %v947 = vpop.f32.mrb[0].mxu0
        %948 = vmatprep.mubr.bf16.mxu0 0
        %949 = vmatmul.mubr.bf16.gmra.mrb[0].mxu0 %v887
        %v950 = vpop.f32.mrb[0].mxu0
        %v951 = vadd.f32 0.0, %v950
        %v952 = vpop.f32.mrb[0].mxu0
        %v953 = vpop.f32.mrb[0].mxu0
        %v954 = vadd.f32 0.0, %v953
        %v955 = vpop.f32.mrb[0].mxu0
        %956 = vdwg.mxu0
        %v957 = vadd.f32 %v838, %v927
        %v958 = vadd.f32 %v839, %v930
        %v959 = vadd.f32 %v840, %v935
        %v960 = vadd.f32 %v841, %v938
        %v961 = vadd.f32 %v842, %v943
        %v962 = vadd.f32 %v843, %v946
        %v963 = vadd.f32 %v844, %v951
        %v964 = vadd.f32 %v845, %v954
        %v965 = vld [vmem:[%s846] sm:$0xf]
        %v966 = vld [vmem:[%s846 + $0x4] sm:$0x1]
        %v967 = vld [vmem:[%s846 + $0x8] sm:$0xf]
        %v968 = vld [vmem:[%s846 + $0xc] sm:$0x1]
        %v969 = vld [vmem:[%s846 + $0x10] sm:$0xf]
        %v970 = vld [vmem:[%s846 + $0x14] sm:$0x1]
        %v971 = vld [vmem:[%s846 + $0x18] sm:$0xf]
        %v972 = vld [vmem:[%s846 + $0x1c] sm:$0x1]
        %v973 = vld [vmem:[%s846 + $0x20] sm:$0xf]
        %v974 = vld [vmem:[%s846 + $0x24] sm:$0x1]
        %v975 = vld [vmem:[%s846 + $0x28] sm:$0xf]
        %v976 = vld [vmem:[%s846 + $0x2c] sm:$0x1]
        %v977 = vld [vmem:[%s846 + $0x30] sm:$0xf]
        %v978 = vld [vmem:[%s846 + $0x34] sm:$0x1]
        %v979 = vld [vmem:[%s846 + $0x38] sm:$0xf]
        %v980 = vld [vmem:[%s846 + $0x3c] sm:$0x1]
        %v982 = vshrl.u32 %v965, 16
        %v984 = vrot.slane %v982, 4
        %v985 = vshll.u32 %v965, 16
        %v987 = vrot.slane %v985, 5
        %v988 = vor.u32 %v984, %v987
        %v989 = vrot.slane %v988, 4
        %v991 = vshll.u32 %v966, 16
        %v993 = vrot.slane %v991, 5
        %v994 = vsel %vm376, %v989, %v993
        %v996 = vshrl.u32 %v967, 16
        %v998 = vrot.slane %v996, 4
        %v999 = vshll.u32 %v967, 16
        %v1001 = vrot.slane %v999, 5
        %v1002 = vor.u32 %v998, %v1001
        %v1003 = vrot.slane %v1002, 4
        %v1005 = vshll.u32 %v968, 16
        %v1007 = vrot.slane %v1005, 5
        %v1008 = vsel %vm376, %v1003, %v1007
        %v1010 = vshrl.u32 %v969, 16
        %v1012 = vrot.slane %v1010, 4
        %v1013 = vshll.u32 %v969, 16
        %v1015 = vrot.slane %v1013, 5
        %v1016 = vor.u32 %v1012, %v1015
        %v1017 = vrot.slane %v1016, 4
        %v1019 = vshll.u32 %v970, 16
        %v1021 = vrot.slane %v1019, 5
        %v1022 = vsel %vm376, %v1017, %v1021
        %v1024 = vshrl.u32 %v971, 16
        %v1026 = vrot.slane %v1024, 4
        %v1027 = vshll.u32 %v971, 16
        %v1029 = vrot.slane %v1027, 5
        %v1030 = vor.u32 %v1026, %v1029
        %v1031 = vrot.slane %v1030, 4
        %v1033 = vshll.u32 %v972, 16
        %v1035 = vrot.slane %v1033, 5
        %v1036 = vsel %vm376, %v1031, %v1035
        %v1038 = vshrl.u32 %v973, 16
        %v1040 = vrot.slane %v1038, 4
        %v1041 = vshll.u32 %v973, 16
        %v1043 = vrot.slane %v1041, 5
        %v1044 = vor.u32 %v1040, %v1043
        %v1045 = vrot.slane %v1044, 4
        %v1047 = vshll.u32 %v974, 16
        %v1049 = vrot.slane %v1047, 5
        %v1050 = vsel %vm376, %v1045, %v1049
        %v1052 = vshrl.u32 %v975, 16
        %v1054 = vrot.slane %v1052, 4
        %v1055 = vshll.u32 %v975, 16
        %v1057 = vrot.slane %v1055, 5
        %v1058 = vor.u32 %v1054, %v1057
        %v1059 = vrot.slane %v1058, 4
        %v1061 = vshll.u32 %v976, 16
        %v1063 = vrot.slane %v1061, 5
        %v1064 = vsel %vm376, %v1059, %v1063
        %v1066 = vshrl.u32 %v977, 16
        %v1068 = vrot.slane %v1066, 4
        %v1069 = vshll.u32 %v977, 16
        %v1071 = vrot.slane %v1069, 5
        %v1072 = vor.u32 %v1068, %v1071
        %v1073 = vrot.slane %v1072, 4
        %v1075 = vshll.u32 %v978, 16
        %v1077 = vrot.slane %v1075, 5
        %v1078 = vsel %vm376, %v1073, %v1077
        %v1080 = vshrl.u32 %v979, 16
        %v1082 = vrot.slane %v1080, 4
        %v1083 = vshll.u32 %v979, 16
        %v1085 = vrot.slane %v1083, 5
        %v1086 = vor.u32 %v1082, %v1085
        %v1087 = vrot.slane %v1086, 4
        %v1089 = vshll.u32 %v980, 16
        %v1091 = vrot.slane %v1089, 5
        %v1092 = vsel %vm376, %v1087, %v1091
        %s1093 = scalar_lea.vmem %s3, 8
        %v1094 = vld [vmem:[%s1093] sm:$0x3]
        %v1095 = vunpack.c.l.b16 %v994
        %v1096 = vunpack.c.l.b16 %v1008
        %v1097 = vunpack.c.l.b16 %v1022
        %v1098 = vunpack.c.l.b16 %v1036
        %v1099 = vunpack.c.l.b16 %v1050
        %v1100 = vunpack.c.l.b16 %v1064
        %v1101 = vunpack.c.l.b16 %v1078
        %v1102 = vunpack.c.l.b16 %v1092
        %v1103 = vpack.c.b16 %v1096, %v1095
        %v1104 = vpack.c.b16 %v1098, %v1097
        %v1105 = vpack.c.b16 %v1100, %v1099
        %v1106 = vpack.c.b16 %v1102, %v1101
        %v1108 = vsel %vm503, %v1103, 0
        %v1111 = vsel %vm503, %v1104, 0
        %v1114 = vsel %vm503, %v1105, 0
        %v1117 = vsel %vm503, %v1106, 0
        %v1120 = vsel %vm516, %v1094, 0
        %1122 = vmatprep.subr.bf16.mxu0 0
        %1123 = vmatpush1.bf16.msra.mxu0 %v1120
        %1124 = vmatprep.subr.bf16.mxu0 0
        %1125 = vmatpush1.bf16.msra.mxu0 0
        %1126 = vmatprep.subr.bf16.mxu0 0
        %1127 = vmatpush1.bf16.msra.mxu0 0
        %1128 = vmatprep.subr.bf16.mxu0 0
        %1129 = vmatpush1.bf16.msra.mxu0 0
        %1130 = vmatprep.subr.bf16.mxu0 0
        %1131 = vmatpush1.bf16.msra.mxu0 0
        %1132 = vmatprep.subr.bf16.mxu0 0
        %1133 = vmatpush1.bf16.msra.mxu0 0
        %1134 = vmatprep.subr.bf16.mxu0 0
        %1135 = vmatpush1.bf16.msra.mxu0 0
        %1136 = vmatprep.subr.bf16.mxu0 0
        %1137 = vmatpush1.bf16.msra.mxu0 0
        %1138 = vmatprep.subr.bf16.mxu0 0
        %1139 = vmatpush1.bf16.msra.mxu0 0
        %1140 = vmatprep.subr.bf16.mxu0 0
        %1141 = vmatpush1.bf16.msra.mxu0 0
        %1142 = vmatprep.subr.bf16.mxu0 0
        %1143 = vmatpush1.bf16.msra.mxu0 0
        %1144 = vmatprep.subr.bf16.mxu0 0
        %1145 = vmatpush1.bf16.msra.mxu0 0
        %1146 = vmatprep.subr.bf16.mxu0 0
        %1147 = vmatpush1.bf16.msra.mxu0 0
        %1148 = vmatprep.subr.bf16.mxu0 0
        %1149 = vmatpush1.bf16.msra.mxu0 0
        %1150 = vmatprep.subr.bf16.mxu0 0
        %1151 = vmatpush1.bf16.msra.mxu0 0
        %1152 = vmatprep.subr.bf16.mxu0 0
        %1153 = vmatpush1.bf16.msra.mxu0 0
        %1154 = vmatprep.mubr.bf16.mxu0 0
        %1155 = vmatmul.mubr.bf16.gmra.mrb[0].mxu0 %v1108
        %v1156 = vpop.f32.mrb[0].mxu0
        %v1157 = vadd.f32 0.0, %v1156
        %v1158 = vpop.f32.mrb[0].mxu0
        %v1159 = vpop.f32.mrb[0].mxu0
        %v1160 = vadd.f32 0.0, %v1159
        %v1161 = vpop.f32.mrb[0].mxu0
        %1162 = vmatprep.mubr.bf16.mxu0 0
        %1163 = vmatmul.mubr.bf16.gmra.mrb[0].mxu0 %v1111
        %v1164 = vpop.f32.mrb[0].mxu0
        %v1165 = vadd.f32 0.0, %v1164
        %v1166 = vpop.f32.mrb[0].mxu0
        %v1167 = vpop.f32.mrb[0].mxu0
        %v1168 = vadd.f32 0.0, %v1167
        %v1169 = vpop.f32.mrb[0].mxu0
        %1170 = vmatprep.mubr.bf16.mxu0 0
        %1171 = vmatmul.mubr.bf16.gmra.mrb[0].mxu0 %v1114
        %v1172 = vpop.f32.mrb[0].mxu0
        %v1173 = vadd.f32 0.0, %v1172
        %v1174 = vpop.f32.mrb[0].mxu0
        %v1175 = vpop.f32.mrb[0].mxu0
        %v1176 = vadd.f32 0.0, %v1175
        %v1177 = vpop.f32.mrb[0].mxu0
        %1178 = vmatprep.mubr.bf16.mxu0 0
        %1179 = vmatmul.mubr.bf16.gmra.mrb[0].mxu0 %v1117
        %v1180 = vpop.f32.mrb[0].mxu0
        %v1181 = vadd.f32 0.0, %v1180
        %v1182 = vpop.f32.mrb[0].mxu0
        %v1183 = vpop.f32.mrb[0].mxu0
        %v1184 = vadd.f32 0.0, %v1183
        %v1185 = vpop.f32.mrb[0].mxu0
        %1186 = vdwg.mxu0
        %v1187 = vadd.f32 %v957, %v1157
        %v1188 = vadd.f32 %v958, %v1160
        %v1189 = vadd.f32 %v959, %v1165
        %v1190 = vadd.f32 %v960, %v1168
        %v1191 = vadd.f32 %v961, %v1173
        %v1192 = vadd.f32 %v962, %v1176
        %v1193 = vadd.f32 %v963, %v1181
        %v1194 = vadd.f32 %v964, %v1184
        %v1195 = vld [vmem:[%s846] sm:$0xe]
        %v1196 = vld [vmem:[%s846 + $0x8] sm:$0xe]
        %v1197 = vld [vmem:[%s846 + $0x10] sm:$0xe]
        %v1198 = vld [vmem:[%s846 + $0x18] sm:$0xe]
        %v1199 = vld [vmem:[%s846 + $0x20] sm:$0xe]
        %v1200 = vld [vmem:[%s846 + $0x28] sm:$0xe]
        %v1201 = vld [vmem:[%s846 + $0x30] sm:$0xe]
        %v1202 = vld [vmem:[%s846 + $0x38] sm:$0xe]
        %v1219 = vrot.slane %v1195, 5
        %v1220 = vrot.slane %v1219, 4
        %v1221 = vrot.slane %v966, 5
        %v1222 = vsel %vm711, %v1220, %v1221
        %v1223 = vrot.slane %v1196, 5
        %v1224 = vrot.slane %v1223, 4
        %v1225 = vrot.slane %v968, 5
        %v1226 = vsel %vm711, %v1224, %v1225
        %v1227 = vrot.slane %v1197, 5
        %v1228 = vrot.slane %v1227, 4
        %v1229 = vrot.slane %v970, 5
        %v1230 = vsel %vm711, %v1228, %v1229
        %v1231 = vrot.slane %v1198, 5
        %v1232 = vrot.slane %v1231, 4
        %v1233 = vrot.slane %v972, 5
        %v1234 = vsel %vm711, %v1232, %v1233
        %v1235 = vrot.slane %v1199, 5
        %v1236 = vrot.slane %v1235, 4
        %v1237 = vrot.slane %v974, 5
        %v1238 = vsel %vm711, %v1236, %v1237
        %v1239 = vrot.slane %v1200, 5
        %v1240 = vrot.slane %v1239, 4
        %v1241 = vrot.slane %v976, 5
        %v1242 = vsel %vm711, %v1240, %v1241
        %v1243 = vrot.slane %v1201, 5
        %v1244 = vrot.slane %v1243, 4
        %v1245 = vrot.slane %v978, 5
        %v1246 = vsel %vm711, %v1244, %v1245
        %v1247 = vrot.slane %v1202, 5
        %v1248 = vrot.slane %v1247, 4
        %v1249 = vrot.slane %v980, 5
        %v1250 = vsel %vm711, %v1248, %v1249
        %s1251 = scalar_lea.vmem %s3, 10
        %v1252 = vld [vmem:[%s1251] sm:$0x3]
        %v1253 = vunpack.c.l.b16 %v1222
        %v1254 = vunpack.c.l.b16 %v1226
        %v1255 = vunpack.c.l.b16 %v1230
        %v1256 = vunpack.c.l.b16 %v1234
        %v1257 = vunpack.c.l.b16 %v1238
        %v1258 = vunpack.c.l.b16 %v1242
        %v1259 = vunpack.c.l.b16 %v1246
        %v1260 = vunpack.c.l.b16 %v1250
        %v1261 = vpack.c.b16 %v1254, %v1253
        %v1262 = vpack.c.b16 %v1256, %v1255
        %v1263 = vpack.c.b16 %v1258, %v1257
        %v1264 = vpack.c.b16 %v1260, %v1259
        %v1266 = vsel %vm503, %v1261, 0
        %v1269 = vsel %vm503, %v1262, 0
        %v1272 = vsel %vm503, %v1263, 0
        %v1275 = vsel %vm503, %v1264, 0
        %v1278 = vsel %vm516, %v1252, 0
        %1280 = vmatprep.subr.bf16.mxu0 0
        %1281 = vmatpush1.bf16.msra.mxu0 %v1278
        %1282 = vmatprep.subr.bf16.mxu0 0
        %1283 = vmatpush1.bf16.msra.mxu0 0
        %1284 = vmatprep.subr.bf16.mxu0 0
        %1285 = vmatpush1.bf16.msra.mxu0 0
        %1286 = vmatprep.subr.bf16.mxu0 0
        %1287 = vmatpush1.bf16.msra.mxu0 0
        %1288 = vmatprep.subr.bf16.mxu0 0
        %1289 = vmatpush1.bf16.msra.mxu0 0
        %1290 = vmatprep.subr.bf16.mxu0 0
        %1291 = vmatpush1.bf16.msra.mxu0 0
        %1292 = vmatprep.subr.bf16.mxu0 0
        %1293 = vmatpush1.bf16.msra.mxu0 0
        %1294 = vmatprep.subr.bf16.mxu0 0
        %1295 = vmatpush1.bf16.msra.mxu0 0
        %1296 = vmatprep.subr.bf16.mxu0 0
        %1297 = vmatpush1.bf16.msra.mxu0 0
        %1298 = vmatprep.subr.bf16.mxu0 0
        %1299 = vmatpush1.bf16.msra.mxu0 0
        %1300 = vmatprep.subr.bf16.mxu0 0
        %1301 = vmatpush1.bf16.msra.mxu0 0
        %1302 = vmatprep.subr.bf16.mxu0 0
        %1303 = vmatpush1.bf16.msra.mxu0 0
        %1304 = vmatprep.subr.bf16.mxu0 0
        %1305 = vmatpush1.bf16.msra.mxu0 0
        %1306 = vmatprep.subr.bf16.mxu0 0
        %1307 = vmatpush1.bf16.msra.mxu0 0
        %1308 = vmatprep.subr.bf16.mxu0 0
        %1309 = vmatpush1.bf16.msra.mxu0 0
        %1310 = vmatprep.subr.bf16.mxu0 0
        %1311 = vmatpush1.bf16.msra.mxu0 0
        %1312 = vmatprep.mubr.bf16.mxu0 0
        %1313 = vmatmul.mubr.bf16.gmra.mrb[0].mxu0 %v1266
        %v1314 = vpop.f32.mrb[0].mxu0
        %v1315 = vadd.f32 0.0, %v1314
        %v1316 = vpop.f32.mrb[0].mxu0
        %v1317 = vpop.f32.mrb[0].mxu0
        %v1318 = vadd.f32 0.0, %v1317
        %v1319 = vpop.f32.mrb[0].mxu0
        %1320 = vmatprep.mubr.bf16.mxu0 0
        %1321 = vmatmul.mubr.bf16.gmra.mrb[0].mxu0 %v1269
        %v1322 = vpop.f32.mrb[0].mxu0
        %v1323 = vadd.f32 0.0, %v1322
        %v1324 = vpop.f32.mrb[0].mxu0
        %v1325 = vpop.f32.mrb[0].mxu0
        %v1326 = vadd.f32 0.0, %v1325
        %v1327 = vpop.f32.mrb[0].mxu0
        %1328 = vmatprep.mubr.bf16.mxu0 0
        %1329 = vmatmul.mubr.bf16.gmra.mrb[0].mxu0 %v1272
        %v1330 = vpop.f32.mrb[0].mxu0
        %v1331 = vadd.f32 0.0, %v1330
        %v1332 = vpop.f32.mrb[0].mxu0
        %v1333 = vpop.f32.mrb[0].mxu0
        %v1334 = vadd.f32 0.0, %v1333
        %v1335 = vpop.f32.mrb[0].mxu0
        %1336 = vmatprep.mubr.bf16.mxu0 0
        %1337 = vmatmul.mubr.bf16.gmra.mrb[0].mxu0 %v1275
        %v1338 = vpop.f32.mrb[0].mxu0
        %v1339 = vadd.f32 0.0, %v1338
        %v1340 = vpop.f32.mrb[0].mxu0
        %v1341 = vpop.f32.mrb[0].mxu0
        %v1342 = vadd.f32 0.0, %v1341
        %v1343 = vpop.f32.mrb[0].mxu0
        %1344 = vdwg.mxu0
        %v1345 = vadd.f32 %v1187, %v1315
        %v1346 = vadd.f32 %v1188, %v1318
        %v1347 = vadd.f32 %v1189, %v1323
        %v1348 = vadd.f32 %v1190, %v1326
        %v1349 = vadd.f32 %v1191, %v1331
        %v1350 = vadd.f32 %v1192, %v1334
        %v1351 = vadd.f32 %v1193, %v1339
        %v1352 = vadd.f32 %v1194, %v1342
        %s1353 = scalar_lea.vmem %s324, 16
        %v1354 = vld [vmem:[%s1353] sm:$0xf]
        %v1355 = vld [vmem:[%s1353 + $0x8] sm:$0xf]
        %v1356 = vld [vmem:[%s1353 + $0x10] sm:$0xf]
        %v1357 = vld [vmem:[%s1353 + $0x18] sm:$0xf]
        %v1358 = vld [vmem:[%s1353 + $0x20] sm:$0xf]
        %v1359 = vld [vmem:[%s1353 + $0x28] sm:$0xf]
        %v1360 = vld [vmem:[%s1353 + $0x30] sm:$0xf]
        %v1361 = vld [vmem:[%s1353 + $0x38] sm:$0xf]
        %s1362 = scalar_lea.vmem %s3, 12
        %v1363 = vld [vmem:[%s1362] sm:$0x3]
        %v1372 = vunpack.c.l.b16 %v1354
        %v1373 = vunpack.c.l.b16 %v1355
        %v1374 = vunpack.c.l.b16 %v1356
        %v1375 = vunpack.c.l.b16 %v1357
        %v1376 = vunpack.c.l.b16 %v1358
        %v1377 = vunpack.c.l.b16 %v1359
        %v1378 = vunpack.c.l.b16 %v1360
        %v1379 = vunpack.c.l.b16 %v1361
        %v1380 = vpack.c.b16 %v1373, %v1372
        %v1381 = vpack.c.b16 %v1375, %v1374
        %v1382 = vpack.c.b16 %v1377, %v1376
        %v1383 = vpack.c.b16 %v1379, %v1378
        %v1385 = vsel %vm503, %v1380, 0
        %v1388 = vsel %vm503, %v1381, 0
        %v1391 = vsel %vm503, %v1382, 0
        %v1394 = vsel %vm503, %v1383, 0
        %v1397 = vsel %vm516, %v1363, 0
        %1399 = vmatprep.subr.bf16.mxu0 0
        %1400 = vmatpush1.bf16.msra.mxu0 %v1397
        %1401 = vmatprep.subr.bf16.mxu0 0
        %1402 = vmatpush1.bf16.msra.mxu0 0
        %1403 = vmatprep.subr.bf16.mxu0 0
        %1404 = vmatpush1.bf16.msra.mxu0 0
        %1405 = vmatprep.subr.bf16.mxu0 0
        %1406 = vmatpush1.bf16.msra.mxu0 0
        %1407 = vmatprep.subr.bf16.mxu0 0
        %1408 = vmatpush1.bf16.msra.mxu0 0
        %1409 = vmatprep.subr.bf16.mxu0 0
        %1410 = vmatpush1.bf16.msra.mxu0 0
        %1411 = vmatprep.subr.bf16.mxu0 0
        %1412 = vmatpush1.bf16.msra.mxu0 0
        %1413 = vmatprep.subr.bf16.mxu0 0
        %1414 = vmatpush1.bf16.msra.mxu0 0
        %1415 = vmatprep.subr.bf16.mxu0 0
        %1416 = vmatpush1.bf16.msra.mxu0 0
        %1417 = vmatprep.subr.bf16.mxu0 0
        %1418 = vmatpush1.bf16.msra.mxu0 0
        %1419 = vmatprep.subr.bf16.mxu0 0
        %1420 = vmatpush1.bf16.msra.mxu0 0
        %1421 = vmatprep.subr.bf16.mxu0 0
        %1422 = vmatpush1.bf16.msra.mxu0 0
        %1423 = vmatprep.subr.bf16.mxu0 0
        %1424 = vmatpush1.bf16.msra.mxu0 0
        %1425 = vmatprep.subr.bf16.mxu0 0
        %1426 = vmatpush1.bf16.msra.mxu0 0
        %1427 = vmatprep.subr.bf16.mxu0 0
        %1428 = vmatpush1.bf16.msra.mxu0 0
        %1429 = vmatprep.subr.bf16.mxu0 0
        %1430 = vmatpush1.bf16.msra.mxu0 0
        %1431 = vmatprep.mubr.bf16.mxu0 0
        %1432 = vmatmul.mubr.bf16.gmra.mrb[0].mxu0 %v1385
        %v1433 = vpop.f32.mrb[0].mxu0
        %v1434 = vadd.f32 0.0, %v1433
        %v1435 = vpop.f32.mrb[0].mxu0
        %v1436 = vpop.f32.mrb[0].mxu0
        %v1437 = vadd.f32 0.0, %v1436
        %v1438 = vpop.f32.mrb[0].mxu0
        %1439 = vmatprep.mubr.bf16.mxu0 0
        %1440 = vmatmul.mubr.bf16.gmra.mrb[0].mxu0 %v1388
        %v1441 = vpop.f32.mrb[0].mxu0
        %v1442 = vadd.f32 0.0, %v1441
        %v1443 = vpop.f32.mrb[0].mxu0
        %v1444 = vpop.f32.mrb[0].mxu0
        %v1445 = vadd.f32 0.0, %v1444
        %v1446 = vpop.f32.mrb[0].mxu0
        %1447 = vmatprep.mubr.bf16.mxu0 0
        %1448 = vmatmul.mubr.bf16.gmra.mrb[0].mxu0 %v1391
        %v1449 = vpop.f32.mrb[0].mxu0
        %v1450 = vadd.f32 0.0, %v1449
        %v1451 = vpop.f32.mrb[0].mxu0
        %v1452 = vpop.f32.mrb[0].mxu0
        %v1453 = vadd.f32 0.0, %v1452
        %v1454 = vpop.f32.mrb[0].mxu0
        %1455 = vmatprep.mubr.bf16.mxu0 0
        %1456 = vmatmul.mubr.bf16.gmra.mrb[0].mxu0 %v1394
        %v1457 = vpop.f32.mrb[0].mxu0
        %v1458 = vadd.f32 0.0, %v1457
        %v1459 = vpop.f32.mrb[0].mxu0
        %v1460 = vpop.f32.mrb[0].mxu0
        %v1461 = vadd.f32 0.0, %v1460
        %v1462 = vpop.f32.mrb[0].mxu0
        %1463 = vdwg.mxu0
        %v1464 = vadd.f32 %v1345, %v1434
        %v1465 = vadd.f32 %v1346, %v1437
        %v1466 = vadd.f32 %v1347, %v1442
        %v1467 = vadd.f32 %v1348, %v1445
        %v1468 = vadd.f32 %v1349, %v1450
        %v1469 = vadd.f32 %v1350, %v1453
        %v1470 = vadd.f32 %v1351, %v1458
        %v1471 = vadd.f32 %v1352, %v1461
        %v1472 = vld [vmem:[%s1353] sm:$0xf]
        %v1473 = vld [vmem:[%s1353 + $0x4] sm:$0x1]
        %v1474 = vld [vmem:[%s1353 + $0x8] sm:$0xf]
        %v1475 = vld [vmem:[%s1353 + $0xc] sm:$0x1]
        %v1476 = vld [vmem:[%s1353 + $0x10] sm:$0xf]
        %v1477 = vld [vmem:[%s1353 + $0x14] sm:$0x1]
        %v1478 = vld [vmem:[%s1353 + $0x18] sm:$0xf]
        %v1479 = vld [vmem:[%s1353 + $0x1c] sm:$0x1]
        %v1480 = vld [vmem:[%s1353 + $0x20] sm:$0xf]
        %v1481 = vld [vmem:[%s1353 + $0x24] sm:$0x1]
        %v1482 = vld [vmem:[%s1353 + $0x28] sm:$0xf]
        %v1483 = vld [vmem:[%s1353 + $0x2c] sm:$0x1]
        %v1484 = vld [vmem:[%s1353 + $0x30] sm:$0xf]
        %v1485 = vld [vmem:[%s1353 + $0x34] sm:$0x1]
        %v1486 = vld [vmem:[%s1353 + $0x38] sm:$0xf]
        %v1487 = vld [vmem:[%s1353 + $0x3c] sm:$0x1]
        %v1489 = vshrl.u32 %v1472, 16
        %v1491 = vrot.slane %v1489, 4
        %v1492 = vshll.u32 %v1472, 16
        %v1494 = vrot.slane %v1492, 5
        %v1495 = vor.u32 %v1491, %v1494
        %v1496 = vrot.slane %v1495, 4
        %v1498 = vshll.u32 %v1473, 16
        %v1500 = vrot.slane %v1498, 5
        %v1501 = vsel %vm376, %v1496, %v1500
        %v1503 = vshrl.u32 %v1474, 16
        %v1505 = vrot.slane %v1503, 4
        %v1506 = vshll.u32 %v1474, 16
        %v1508 = vrot.slane %v1506, 5
        %v1509 = vor.u32 %v1505, %v1508
        %v1510 = vrot.slane %v1509, 4
        %v1512 = vshll.u32 %v1475, 16
        %v1514 = vrot.slane %v1512, 5
        %v1515 = vsel %vm376, %v1510, %v1514
        %v1517 = vshrl.u32 %v1476, 16
        %v1519 = vrot.slane %v1517, 4
        %v1520 = vshll.u32 %v1476, 16
        %v1522 = vrot.slane %v1520, 5
        %v1523 = vor.u32 %v1519, %v1522
        %v1524 = vrot.slane %v1523, 4
        %v1526 = vshll.u32 %v1477, 16
        %v1528 = vrot.slane %v1526, 5
        %v1529 = vsel %vm376, %v1524, %v1528
        %v1531 = vshrl.u32 %v1478, 16
        %v1533 = vrot.slane %v1531, 4
        %v1534 = vshll.u32 %v1478, 16
        %v1536 = vrot.slane %v1534, 5
        %v1537 = vor.u32 %v1533, %v1536
        %v1538 = vrot.slane %v1537, 4
        %v1540 = vshll.u32 %v1479, 16
        %v1542 = vrot.slane %v1540, 5
        %v1543 = vsel %vm376, %v1538, %v1542
        %v1545 = vshrl.u32 %v1480, 16
        %v1547 = vrot.slane %v1545, 4
        %v1548 = vshll.u32 %v1480, 16
        %v1550 = vrot.slane %v1548, 5
        %v1551 = vor.u32 %v1547, %v1550
        %v1552 = vrot.slane %v1551, 4
        %v1554 = vshll.u32 %v1481, 16
        %v1556 = vrot.slane %v1554, 5
        %v1557 = vsel %vm376, %v1552, %v1556
        %v1559 = vshrl.u32 %v1482, 16
        %v1561 = vrot.slane %v1559, 4
        %v1562 = vshll.u32 %v1482, 16
        %v1564 = vrot.slane %v1562, 5
        %v1565 = vor.u32 %v1561, %v1564
        %v1566 = vrot.slane %v1565, 4
        %v1568 = vshll.u32 %v1483, 16
        %v1570 = vrot.slane %v1568, 5
        %v1571 = vsel %vm376, %v1566, %v1570
        %v1573 = vshrl.u32 %v1484, 16
        %v1575 = vrot.slane %v1573, 4
        %v1576 = vshll.u32 %v1484, 16
        %v1578 = vrot.slane %v1576, 5
        %v1579 = vor.u32 %v1575, %v1578
        %v1580 = vrot.slane %v1579, 4
        %v1582 = vshll.u32 %v1485, 16
        %v1584 = vrot.slane %v1582, 5
        %v1585 = vsel %vm376, %v1580, %v1584
        %v1587 = vshrl.u32 %v1486, 16
        %v1589 = vrot.slane %v1587, 4
        %v1590 = vshll.u32 %v1486, 16
        %v1592 = vrot.slane %v1590, 5
        %v1593 = vor.u32 %v1589, %v1592
        %v1594 = vrot.slane %v1593, 4
        %v1596 = vshll.u32 %v1487, 16
        %v1598 = vrot.slane %v1596, 5
        %v1599 = vsel %vm376, %v1594, %v1598
        %s1600 = scalar_lea.vmem %s3, 14
        %v1601 = vld [vmem:[%s1600] sm:$0x3]
        %v1602 = vunpack.c.l.b16 %v1501
        %v1603 = vunpack.c.l.b16 %v1515
        %v1604 = vunpack.c.l.b16 %v1529
        %v1605 = vunpack.c.l.b16 %v1543
        %v1606 = vunpack.c.l.b16 %v1557
        %v1607 = vunpack.c.l.b16 %v1571
        %v1608 = vunpack.c.l.b16 %v1585
        %v1609 = vunpack.c.l.b16 %v1599
        %v1610 = vpack.c.b16 %v1603, %v1602
        %v1611 = vpack.c.b16 %v1605, %v1604
        %v1612 = vpack.c.b16 %v1607, %v1606
        %v1613 = vpack.c.b16 %v1609, %v1608
        %v1615 = vsel %vm503, %v1610, 0
        %v1618 = vsel %vm503, %v1611, 0
        %v1621 = vsel %vm503, %v1612, 0
        %v1624 = vsel %vm503, %v1613, 0
        %v1627 = vsel %vm516, %v1601, 0
        %1629 = vmatprep.subr.bf16.mxu0 0
        %1630 = vmatpush1.bf16.msra.mxu0 %v1627
        %1631 = vmatprep.subr.bf16.mxu0 0
        %1632 = vmatpush1.bf16.msra.mxu0 0
        %1633 = vmatprep.subr.bf16.mxu0 0
        %1634 = vmatpush1.bf16.msra.mxu0 0
        %1635 = vmatprep.subr.bf16.mxu0 0
        %1636 = vmatpush1.bf16.msra.mxu0 0
        %1637 = vmatprep.subr.bf16.mxu0 0
        %1638 = vmatpush1.bf16.msra.mxu0 0
        %1639 = vmatprep.subr.bf16.mxu0 0
        %1640 = vmatpush1.bf16.msra.mxu0 0
        %1641 = vmatprep.subr.bf16.mxu0 0
        %1642 = vmatpush1.bf16.msra.mxu0 0
        %1643 = vmatprep.subr.bf16.mxu0 0
        %1644 = vmatpush1.bf16.msra.mxu0 0
        %1645 = vmatprep.subr.bf16.mxu0 0
        %1646 = vmatpush1.bf16.msra.mxu0 0
        %1647 = vmatprep.subr.bf16.mxu0 0
        %1648 = vmatpush1.bf16.msra.mxu0 0
        %1649 = vmatprep.subr.bf16.mxu0 0
        %1650 = vmatpush1.bf16.msra.mxu0 0
        %1651 = vmatprep.subr.bf16.mxu0 0
        %1652 = vmatpush1.bf16.msra.mxu0 0
        %1653 = vmatprep.subr.bf16.mxu0 0
        %1654 = vmatpush1.bf16.msra.mxu0 0
        %1655 = vmatprep.subr.bf16.mxu0 0
        %1656 = vmatpush1.bf16.msra.mxu0 0
        %1657 = vmatprep.subr.bf16.mxu0 0
        %1658 = vmatpush1.bf16.msra.mxu0 0
        %1659 = vmatprep.subr.bf16.mxu0 0
        %1660 = vmatpush1.bf16.msra.mxu0 0
        %1661 = vmatprep.mubr.bf16.mxu0 0
        %1662 = vmatmul.mubr.bf16.gmra.mrb[0].mxu0 %v1615
        %v1663 = vpop.f32.mrb[0].mxu0
        %v1664 = vadd.f32 0.0, %v1663
        %v1665 = vpop.f32.mrb[0].mxu0
        %v1666 = vpop.f32.mrb[0].mxu0
        %v1667 = vadd.f32 0.0, %v1666
        %v1668 = vpop.f32.mrb[0].mxu0
        %1669 = vmatprep.mubr.bf16.mxu0 0
        %1670 = vmatmul.mubr.bf16.gmra.mrb[0].mxu0 %v1618
        %v1671 = vpop.f32.mrb[0].mxu0
        %v1672 = vadd.f32 0.0, %v1671
        %v1673 = vpop.f32.mrb[0].mxu0
        %v1674 = vpop.f32.mrb[0].mxu0
        %v1675 = vadd.f32 0.0, %v1674
        %v1676 = vpop.f32.mrb[0].mxu0
        %1677 = vmatprep.mubr.bf16.mxu0 0
        %1678 = vmatmul.mubr.bf16.gmra.mrb[0].mxu0 %v1621
        %v1679 = vpop.f32.mrb[0].mxu0
        %v1680 = vadd.f32 0.0, %v1679
        %v1681 = vpop.f32.mrb[0].mxu0
        %v1682 = vpop.f32.mrb[0].mxu0
        %v1683 = vadd.f32 0.0, %v1682
        %v1684 = vpop.f32.mrb[0].mxu0
        %1685 = vmatprep.mubr.bf16.mxu0 0
        %1686 = vmatmul.mubr.bf16.gmra.mrb[0].mxu0 %v1624
        %v1687 = vpop.f32.mrb[0].mxu0
        %v1688 = vadd.f32 0.0, %v1687
        %v1689 = vpop.f32.mrb[0].mxu0
        %v1690 = vpop.f32.mrb[0].mxu0
        %v1691 = vadd.f32 0.0, %v1690
        %v1692 = vpop.f32.mrb[0].mxu0
        %1693 = vdwg.mxu0
        %v1694 = vadd.f32 %v1464, %v1664
        %v1695 = vadd.f32 %v1465, %v1667
        %v1696 = vadd.f32 %v1466, %v1672
        %v1697 = vadd.f32 %v1467, %v1675
        %v1698 = vadd.f32 %v1468, %v1680
        %v1699 = vadd.f32 %v1469, %v1683
        %v1700 = vadd.f32 %v1470, %v1688
        %v1701 = vadd.f32 %v1471, %v1691
        %v1702 = vld [vmem:[%s1353] sm:$0xe]
        %v1703 = vld [vmem:[%s1353 + $0x8] sm:$0xe]
        %v1704 = vld [vmem:[%s1353 + $0x10] sm:$0xe]
        %v1705 = vld [vmem:[%s1353 + $0x18] sm:$0xe]
        %v1706 = vld [vmem:[%s1353 + $0x20] sm:$0xe]
        %v1707 = vld [vmem:[%s1353 + $0x28] sm:$0xe]
        %v1708 = vld [vmem:[%s1353 + $0x30] sm:$0xe]
        %v1709 = vld [vmem:[%s1353 + $0x38] sm:$0xe]
        %v1726 = vrot.slane %v1702, 5
        %v1727 = vrot.slane %v1726, 4
        %v1728 = vrot.slane %v1473, 5
        %v1729 = vsel %vm711, %v1727, %v1728
        %v1730 = vrot.slane %v1703, 5
        %v1731 = vrot.slane %v1730, 4
        %v1732 = vrot.slane %v1475, 5
        %v1733 = vsel %vm711, %v1731, %v1732
        %v1734 = vrot.slane %v1704, 5
        %v1735 = vrot.slane %v1734, 4
        %v1736 = vrot.slane %v1477, 5
        %v1737 = vsel %vm711, %v1735, %v1736
        %v1738 = vrot.slane %v1705, 5
        %v1739 = vrot.slane %v1738, 4
        %v1740 = vrot.slane %v1479, 5
        %v1741 = vsel %vm711, %v1739, %v1740
        %v1742 = vrot.slane %v1706, 5
        %v1743 = vrot.slane %v1742, 4
        %v1744 = vrot.slane %v1481, 5
        %v1745 = vsel %vm711, %v1743, %v1744
        %v1746 = vrot.slane %v1707, 5
        %v1747 = vrot.slane %v1746, 4
        %v1748 = vrot.slane %v1483, 5
        %v1749 = vsel %vm711, %v1747, %v1748
        %v1750 = vrot.slane %v1708, 5
        %v1751 = vrot.slane %v1750, 4
        %v1752 = vrot.slane %v1485, 5
        %v1753 = vsel %vm711, %v1751, %v1752
        %v1754 = vrot.slane %v1709, 5
        %v1755 = vrot.slane %v1754, 4
        %v1756 = vrot.slane %v1487, 5
        %v1757 = vsel %vm711, %v1755, %v1756
        %s1758 = scalar_lea.vmem %s3, 16
        %v1759 = vld [vmem:[%s1758] sm:$0x3]
        %v1760 = vunpack.c.l.b16 %v1729
        %v1761 = vunpack.c.l.b16 %v1733
        %v1762 = vunpack.c.l.b16 %v1737
        %v1763 = vunpack.c.l.b16 %v1741
        %v1764 = vunpack.c.l.b16 %v1745
        %v1765 = vunpack.c.l.b16 %v1749
        %v1766 = vunpack.c.l.b16 %v1753
        %v1767 = vunpack.c.l.b16 %v1757
        %v1768 = vpack.c.b16 %v1761, %v1760
        %v1769 = vpack.c.b16 %v1763, %v1762
        %v1770 = vpack.c.b16 %v1765, %v1764
        %v1771 = vpack.c.b16 %v1767, %v1766
        %v1773 = vsel %vm503, %v1768, 0
        %v1776 = vsel %vm503, %v1769, 0
        %v1779 = vsel %vm503, %v1770, 0
        %v1782 = vsel %vm503, %v1771, 0
        %v1785 = vsel %vm516, %v1759, 0
        %1787 = vmatprep.subr.bf16.mxu0 0
        %1788 = vmatpush1.bf16.msra.mxu0 %v1785
        %1789 = vmatprep.subr.bf16.mxu0 0
        %1790 = vmatpush1.bf16.msra.mxu0 0
        %1791 = vmatprep.subr.bf16.mxu0 0
        %1792 = vmatpush1.bf16.msra.mxu0 0
        %1793 = vmatprep.subr.bf16.mxu0 0
        %1794 = vmatpush1.bf16.msra.mxu0 0
        %1795 = vmatprep.subr.bf16.mxu0 0
        %1796 = vmatpush1.bf16.msra.mxu0 0
        %1797 = vmatprep.subr.bf16.mxu0 0
        %1798 = vmatpush1.bf16.msra.mxu0 0
        %1799 = vmatprep.subr.bf16.mxu0 0
        %1800 = vmatpush1.bf16.msra.mxu0 0
        %1801 = vmatprep.subr.bf16.mxu0 0
        %1802 = vmatpush1.bf16.msra.mxu0 0
        %1803 = vmatprep.subr.bf16.mxu0 0
        %1804 = vmatpush1.bf16.msra.mxu0 0
        %1805 = vmatprep.subr.bf16.mxu0 0
        %1806 = vmatpush1.bf16.msra.mxu0 0
        %1807 = vmatprep.subr.bf16.mxu0 0
        %1808 = vmatpush1.bf16.msra.mxu0 0
        %1809 = vmatprep.subr.bf16.mxu0 0
        %1810 = vmatpush1.bf16.msra.mxu0 0
        %1811 = vmatprep.subr.bf16.mxu0 0
        %1812 = vmatpush1.bf16.msra.mxu0 0
        %1813 = vmatprep.subr.bf16.mxu0 0
        %1814 = vmatpush1.bf16.msra.mxu0 0
        %1815 = vmatprep.subr.bf16.mxu0 0
        %1816 = vmatpush1.bf16.msra.mxu0 0
        %1817 = vmatprep.subr.bf16.mxu0 0
        %1818 = vmatpush1.bf16.msra.mxu0 0
        %1819 = vmatprep.mubr.bf16.mxu0 0
        %1820 = vmatmul.mubr.bf16.gmra.mrb[0].mxu0 %v1773
        %v1821 = vpop.f32.mrb[0].mxu0
        %v1822 = vadd.f32 0.0, %v1821
        %v1823 = vpop.f32.mrb[0].mxu0
        %v1824 = vpop.f32.mrb[0].mxu0
        %v1825 = vadd.f32 0.0, %v1824
        %v1826 = vpop.f32.mrb[0].mxu0
        %1827 = vmatprep.mubr.bf16.mxu0 0
        %1828 = vmatmul.mubr.bf16.gmra.mrb[0].mxu0 %v1776
        %v1829 = vpop.f32.mrb[0].mxu0
        %v1830 = vadd.f32 0.0, %v1829
        %v1831 = vpop.f32.mrb[0].mxu0
        %v1832 = vpop.f32.mrb[0].mxu0
        %v1833 = vadd.f32 0.0, %v1832
        %v1834 = vpop.f32.mrb[0].mxu0
        %1835 = vmatprep.mubr.bf16.mxu0 0
        %1836 = vmatmul.mubr.bf16.gmra.mrb[0].mxu0 %v1779
        %v1837 = vpop.f32.mrb[0].mxu0
        %v1838 = vadd.f32 0.0, %v1837
        %v1839 = vpop.f32.mrb[0].mxu0
        %v1840 = vpop.f32.mrb[0].mxu0
        %v1841 = vadd.f32 0.0, %v1840
        %v1842 = vpop.f32.mrb[0].mxu0
        %1843 = vmatprep.mubr.bf16.mxu0 0
        %1844 = vmatmul.mubr.bf16.gmra.mrb[0].mxu0 %v1782
        %v1845 = vpop.f32.mrb[0].mxu0
        %v1846 = vadd.f32 0.0, %v1845
        %v1847 = vpop.f32.mrb[0].mxu0
        %v1848 = vpop.f32.mrb[0].mxu0
        %v1849 = vadd.f32 0.0, %v1848
        %v1850 = vpop.f32.mrb[0].mxu0
        %1851 = vdwg.mxu0
        %v1852 = vadd.f32 %v1694, %v1822
        %v1853 = vadd.f32 %v1695, %v1825
        %v1854 = vadd.f32 %v1696, %v1830
        %v1855 = vadd.f32 %v1697, %v1833
        %v1856 = vadd.f32 %v1698, %v1838
        %v1857 = vadd.f32 %v1699, %v1841
        %v1858 = vadd.f32 %v1700, %v1846
        %v1859 = vadd.f32 %v1701, %v1849
        %v1860 = vld [vmem:[%s334] sm:$0xf]
        %v1861 = vld [vmem:[%s334 + $0x8] sm:$0xf]
        %v1862 = vld [vmem:[%s334 + $0x10] sm:$0xf]
        %v1863 = vld [vmem:[%s334 + $0x18] sm:$0xf]
        %v1864 = vld [vmem:[%s334 + $0x20] sm:$0xf]
        %v1865 = vld [vmem:[%s334 + $0x28] sm:$0xf]
        %v1866 = vld [vmem:[%s334 + $0x30] sm:$0xf]
        %v1867 = vld [vmem:[%s334 + $0x38] sm:$0xf]
        %s1868 = scalar_lea.vmem %s3, 18
        %v1869 = vld [vmem:[%s1868] sm:$0x3]
        %v1878 = vunpack.c.l.b16 %v1860
        %v1879 = vunpack.c.l.b16 %v1861
        %v1880 = vunpack.c.l.b16 %v1862
        %v1881 = vunpack.c.l.b16 %v1863
        %v1882 = vunpack.c.l.b16 %v1864
        %v1883 = vunpack.c.l.b16 %v1865
        %v1884 = vunpack.c.l.b16 %v1866
        %v1885 = vunpack.c.l.b16 %v1867
        %v1886 = vpack.c.b16 %v1879, %v1878
        %v1887 = vpack.c.b16 %v1881, %v1880
        %v1888 = vpack.c.b16 %v1883, %v1882
        %v1889 = vpack.c.b16 %v1885, %v1884
        %v1891 = vsel %vm503, %v1886, 0
        %v1894 = vsel %vm503, %v1887, 0
        %v1897 = vsel %vm503, %v1888, 0
        %v1900 = vsel %vm503, %v1889, 0
        %v1903 = vsel %vm516, %v1869, 0
        %1905 = vmatprep.subr.bf16.mxu0 0
        %1906 = vmatpush1.bf16.msra.mxu0 %v1903
        %1907 = vmatprep.subr.bf16.mxu0 0
        %1908 = vmatpush1.bf16.msra.mxu0 0
        %1909 = vmatprep.subr.bf16.mxu0 0
        %1910 = vmatpush1.bf16.msra.mxu0 0
        %1911 = vmatprep.subr.bf16.mxu0 0
        %1912 = vmatpush1.bf16.msra.mxu0 0
        %1913 = vmatprep.subr.bf16.mxu0 0
        %1914 = vmatpush1.bf16.msra.mxu0 0
        %1915 = vmatprep.subr.bf16.mxu0 0
        %1916 = vmatpush1.bf16.msra.mxu0 0
        %1917 = vmatprep.subr.bf16.mxu0 0
        %1918 = vmatpush1.bf16.msra.mxu0 0
        %1919 = vmatprep.subr.bf16.mxu0 0
        %1920 = vmatpush1.bf16.msra.mxu0 0
        %1921 = vmatprep.subr.bf16.mxu0 0
        %1922 = vmatpush1.bf16.msra.mxu0 0
        %1923 = vmatprep.subr.bf16.mxu0 0
        %1924 = vmatpush1.bf16.msra.mxu0 0
        %1925 = vmatprep.subr.bf16.mxu0 0
        %1926 = vmatpush1.bf16.msra.mxu0 0
        %1927 = vmatprep.subr.bf16.mxu0 0
        %1928 = vmatpush1.bf16.msra.mxu0 0
        %1929 = vmatprep.subr.bf16.mxu0 0
        %1930 = vmatpush1.bf16.msra.mxu0 0
        %1931 = vmatprep.subr.bf16.mxu0 0
        %1932 = vmatpush1.bf16.msra.mxu0 0
        %1933 = vmatprep.subr.bf16.mxu0 0
        %1934 = vmatpush1.bf16.msra.mxu0 0
        %1935 = vmatprep.subr.bf16.mxu0 0
        %1936 = vmatpush1.bf16.msra.mxu0 0
        %1937 = vmatprep.mubr.bf16.mxu0 0
        %1938 = vmatmul.mubr.bf16.gmra.mrb[0].mxu0 %v1891
        %v1939 = vpop.f32.mrb[0].mxu0
        %v1940 = vadd.f32 0.0, %v1939
        %v1941 = vpop.f32.mrb[0].mxu0
        %v1942 = vpop.f32.mrb[0].mxu0
        %v1943 = vadd.f32 0.0, %v1942
        %v1944 = vpop.f32.mrb[0].mxu0
        %1945 = vmatprep.mubr.bf16.mxu0 0
        %1946 = vmatmul.mubr.bf16.gmra.mrb[0].mxu0 %v1894
        %v1947 = vpop.f32.mrb[0].mxu0
        %v1948 = vadd.f32 0.0, %v1947
        %v1949 = vpop.f32.mrb[0].mxu0
        %v1950 = vpop.f32.mrb[0].mxu0
        %v1951 = vadd.f32 0.0, %v1950
        %v1952 = vpop.f32.mrb[0].mxu0
        %1953 = vmatprep.mubr.bf16.mxu0 0
        %1954 = vmatmul.mubr.bf16.gmra.mrb[0].mxu0 %v1897
        %v1955 = vpop.f32.mrb[0].mxu0
        %v1956 = vadd.f32 0.0, %v1955
        %v1957 = vpop.f32.mrb[0].mxu0
        %v1958 = vpop.f32.mrb[0].mxu0
        %v1959 = vadd.f32 0.0, %v1958
        %v1960 = vpop.f32.mrb[0].mxu0
        %1961 = vmatprep.mubr.bf16.mxu0 0
        %1962 = vmatmul.mubr.bf16.gmra.mrb[0].mxu0 %v1900
        %v1963 = vpop.f32.mrb[0].mxu0
        %v1964 = vadd.f32 0.0, %v1963
        %v1965 = vpop.f32.mrb[0].mxu0
        %v1966 = vpop.f32.mrb[0].mxu0
        %v1967 = vadd.f32 0.0, %v1966
        %v1968 = vpop.f32.mrb[0].mxu0
        %1969 = vdwg.mxu0
        %v1970 = vadd.f32 %v1852, %v1940
        %v1971 = vadd.f32 %v1853, %v1943
        %v1972 = vadd.f32 %v1854, %v1948
        %v1973 = vadd.f32 %v1855, %v1951
        %v1974 = vadd.f32 %v1856, %v1956
        %v1975 = vadd.f32 %v1857, %v1959
        %v1976 = vadd.f32 %v1858, %v1964
        %v1977 = vadd.f32 %v1859, %v1967
        %v1978 = vld [vmem:[%s334] sm:$0xf]
        %v1979 = vld [vmem:[%s334 + $0x4] sm:$0x1]
        %v1980 = vld [vmem:[%s334 + $0x8] sm:$0xf]
        %v1981 = vld [vmem:[%s334 + $0xc] sm:$0x1]
        %v1982 = vld [vmem:[%s334 + $0x10] sm:$0xf]
        %v1983 = vld [vmem:[%s334 + $0x14] sm:$0x1]
        %v1984 = vld [vmem:[%s334 + $0x18] sm:$0xf]
        %v1985 = vld [vmem:[%s334 + $0x1c] sm:$0x1]
        %v1986 = vld [vmem:[%s334 + $0x20] sm:$0xf]
        %v1987 = vld [vmem:[%s334 + $0x24] sm:$0x1]
        %v1988 = vld [vmem:[%s334 + $0x28] sm:$0xf]
        %v1989 = vld [vmem:[%s334 + $0x2c] sm:$0x1]
        %v1990 = vld [vmem:[%s334 + $0x30] sm:$0xf]
        %v1991 = vld [vmem:[%s334 + $0x34] sm:$0x1]
        %v1992 = vld [vmem:[%s334 + $0x38] sm:$0xf]
        %v1993 = vld [vmem:[%s334 + $0x3c] sm:$0x1]
        %v1995 = vshrl.u32 %v1978, 16
        %v1997 = vrot.slane %v1995, 4
        %v1998 = vshll.u32 %v1978, 16
        %v2000 = vrot.slane %v1998, 5
        %v2001 = vor.u32 %v1997, %v2000
        %v2002 = vrot.slane %v2001, 4
        %v2004 = vshll.u32 %v1979, 16
        %v2006 = vrot.slane %v2004, 5
        %v2007 = vsel %vm376, %v2002, %v2006
        %v2009 = vshrl.u32 %v1980, 16
        %v2011 = vrot.slane %v2009, 4
        %v2012 = vshll.u32 %v1980, 16
        %v2014 = vrot.slane %v2012, 5
        %v2015 = vor.u32 %v2011, %v2014
        %v2016 = vrot.slane %v2015, 4
        %v2018 = vshll.u32 %v1981, 16
        %v2020 = vrot.slane %v2018, 5
        %v2021 = vsel %vm376, %v2016, %v2020
        %v2023 = vshrl.u32 %v1982, 16
        %v2025 = vrot.slane %v2023, 4
        %v2026 = vshll.u32 %v1982, 16
        %v2028 = vrot.slane %v2026, 5
        %v2029 = vor.u32 %v2025, %v2028
        %v2030 = vrot.slane %v2029, 4
        %v2032 = vshll.u32 %v1983, 16
        %v2034 = vrot.slane %v2032, 5
        %v2035 = vsel %vm376, %v2030, %v2034
        %v2037 = vshrl.u32 %v1984, 16
        %v2039 = vrot.slane %v2037, 4
        %v2040 = vshll.u32 %v1984, 16
        %v2042 = vrot.slane %v2040, 5
        %v2043 = vor.u32 %v2039, %v2042
        %v2044 = vrot.slane %v2043, 4
        %v2046 = vshll.u32 %v1985, 16
        %v2048 = vrot.slane %v2046, 5
        %v2049 = vsel %vm376, %v2044, %v2048
        %v2051 = vshrl.u32 %v1986, 16
        %v2053 = vrot.slane %v2051, 4
        %v2054 = vshll.u32 %v1986, 16
        %v2056 = vrot.slane %v2054, 5
        %v2057 = vor.u32 %v2053, %v2056
        %v2058 = vrot.slane %v2057, 4
        %v2060 = vshll.u32 %v1987, 16
        %v2062 = vrot.slane %v2060, 5
        %v2063 = vsel %vm376, %v2058, %v2062
        %v2065 = vshrl.u32 %v1988, 16
        %v2067 = vrot.slane %v2065, 4
        %v2068 = vshll.u32 %v1988, 16
        %v2070 = vrot.slane %v2068, 5
        %v2071 = vor.u32 %v2067, %v2070
        %v2072 = vrot.slane %v2071, 4
        %v2074 = vshll.u32 %v1989, 16
        %v2076 = vrot.slane %v2074, 5
        %v2077 = vsel %vm376, %v2072, %v2076
        %v2079 = vshrl.u32 %v1990, 16
        %v2081 = vrot.slane %v2079, 4
        %v2082 = vshll.u32 %v1990, 16
        %v2084 = vrot.slane %v2082, 5
        %v2085 = vor.u32 %v2081, %v2084
        %v2086 = vrot.slane %v2085, 4
        %v2088 = vshll.u32 %v1991, 16
        %v2090 = vrot.slane %v2088, 5
        %v2091 = vsel %vm376, %v2086, %v2090
        %v2093 = vshrl.u32 %v1992, 16
        %v2095 = vrot.slane %v2093, 4
        %v2096 = vshll.u32 %v1992, 16
        %v2098 = vrot.slane %v2096, 5
        %v2099 = vor.u32 %v2095, %v2098
        %v2100 = vrot.slane %v2099, 4
        %v2102 = vshll.u32 %v1993, 16
        %v2104 = vrot.slane %v2102, 5
        %v2105 = vsel %vm376, %v2100, %v2104
        %s2106 = scalar_lea.vmem %s3, 20
        %v2107 = vld [vmem:[%s2106] sm:$0x3]
        %v2108 = vunpack.c.l.b16 %v2007
        %v2109 = vunpack.c.l.b16 %v2021
        %v2110 = vunpack.c.l.b16 %v2035
        %v2111 = vunpack.c.l.b16 %v2049
        %v2112 = vunpack.c.l.b16 %v2063
        %v2113 = vunpack.c.l.b16 %v2077
        %v2114 = vunpack.c.l.b16 %v2091
        %v2115 = vunpack.c.l.b16 %v2105
        %v2116 = vpack.c.b16 %v2109, %v2108
        %v2117 = vpack.c.b16 %v2111, %v2110
        %v2118 = vpack.c.b16 %v2113, %v2112
        %v2119 = vpack.c.b16 %v2115, %v2114
        %v2121 = vsel %vm503, %v2116, 0
        %v2124 = vsel %vm503, %v2117, 0
        %v2127 = vsel %vm503, %v2118, 0
        %v2130 = vsel %vm503, %v2119, 0
        %v2133 = vsel %vm516, %v2107, 0
        %2135 = vmatprep.subr.bf16.mxu0 0
        %2136 = vmatpush1.bf16.msra.mxu0 %v2133
        %2137 = vmatprep.subr.bf16.mxu0 0
        %2138 = vmatpush1.bf16.msra.mxu0 0
        %2139 = vmatprep.subr.bf16.mxu0 0
        %2140 = vmatpush1.bf16.msra.mxu0 0
        %2141 = vmatprep.subr.bf16.mxu0 0
        %2142 = vmatpush1.bf16.msra.mxu0 0
        %2143 = vmatprep.subr.bf16.mxu0 0
        %2144 = vmatpush1.bf16.msra.mxu0 0
        %2145 = vmatprep.subr.bf16.mxu0 0
        %2146 = vmatpush1.bf16.msra.mxu0 0
        %2147 = vmatprep.subr.bf16.mxu0 0
        %2148 = vmatpush1.bf16.msra.mxu0 0
        %2149 = vmatprep.subr.bf16.mxu0 0
        %2150 = vmatpush1.bf16.msra.mxu0 0
        %2151 = vmatprep.subr.bf16.mxu0 0
        %2152 = vmatpush1.bf16.msra.mxu0 0
        %2153 = vmatprep.subr.bf16.mxu0 0
        %2154 = vmatpush1.bf16.msra.mxu0 0
        %2155 = vmatprep.subr.bf16.mxu0 0
        %2156 = vmatpush1.bf16.msra.mxu0 0
        %2157 = vmatprep.subr.bf16.mxu0 0
        %2158 = vmatpush1.bf16.msra.mxu0 0
        %2159 = vmatprep.subr.bf16.mxu0 0
        %2160 = vmatpush1.bf16.msra.mxu0 0
        %2161 = vmatprep.subr.bf16.mxu0 0
        %2162 = vmatpush1.bf16.msra.mxu0 0
        %2163 = vmatprep.subr.bf16.mxu0 0
        %2164 = vmatpush1.bf16.msra.mxu0 0
        %2165 = vmatprep.subr.bf16.mxu0 0
        %2166 = vmatpush1.bf16.msra.mxu0 0
        %2167 = vmatprep.mubr.bf16.mxu0 0
        %2168 = vmatmul.mubr.bf16.gmra.mrb[0].mxu0 %v2121
        %v2169 = vpop.f32.mrb[0].mxu0
        %v2170 = vadd.f32 0.0, %v2169
        %v2171 = vpop.f32.mrb[0].mxu0
        %v2172 = vpop.f32.mrb[0].mxu0
        %v2173 = vadd.f32 0.0, %v2172
        %v2174 = vpop.f32.mrb[0].mxu0
        %2175 = vmatprep.mubr.bf16.mxu0 0
        %2176 = vmatmul.mubr.bf16.gmra.mrb[0].mxu0 %v2124
        %v2177 = vpop.f32.mrb[0].mxu0
        %v2178 = vadd.f32 0.0, %v2177
        %v2179 = vpop.f32.mrb[0].mxu0
        %v2180 = vpop.f32.mrb[0].mxu0
        %v2181 = vadd.f32 0.0, %v2180
        %v2182 = vpop.f32.mrb[0].mxu0
        %2183 = vmatprep.mubr.bf16.mxu0 0
        %2184 = vmatmul.mubr.bf16.gmra.mrb[0].mxu0 %v2127
        %v2185 = vpop.f32.mrb[0].mxu0
        %v2186 = vadd.f32 0.0, %v2185
        %v2187 = vpop.f32.mrb[0].mxu0
        %v2188 = vpop.f32.mrb[0].mxu0
        %v2189 = vadd.f32 0.0, %v2188
        %v2190 = vpop.f32.mrb[0].mxu0
        %2191 = vmatprep.mubr.bf16.mxu0 0
        %2192 = vmatmul.mubr.bf16.gmra.mrb[0].mxu0 %v2130
        %v2193 = vpop.f32.mrb[0].mxu0
        %v2194 = vadd.f32 0.0, %v2193
        %v2195 = vpop.f32.mrb[0].mxu0
        %v2196 = vpop.f32.mrb[0].mxu0
        %v2197 = vadd.f32 0.0, %v2196
        %v2198 = vpop.f32.mrb[0].mxu0
        %2199 = vdwg.mxu0
        %v2200 = vadd.f32 %v1970, %v2170
        %v2201 = vadd.f32 %v1971, %v2173
        %v2202 = vadd.f32 %v1972, %v2178
        %v2203 = vadd.f32 %v1973, %v2181
        %v2204 = vadd.f32 %v1974, %v2186
        %v2205 = vadd.f32 %v1975, %v2189
        %v2206 = vadd.f32 %v1976, %v2194
        %v2207 = vadd.f32 %v1977, %v2197
        %v2208 = vld [vmem:[%s334] sm:$0xe]
        %v2209 = vld [vmem:[%s334 + $0x8] sm:$0xe]
        %v2210 = vld [vmem:[%s334 + $0x10] sm:$0xe]
        %v2211 = vld [vmem:[%s334 + $0x18] sm:$0xe]
        %v2212 = vld [vmem:[%s334 + $0x20] sm:$0xe]
        %v2213 = vld [vmem:[%s334 + $0x28] sm:$0xe]
        %v2214 = vld [vmem:[%s334 + $0x30] sm:$0xe]
        %v2215 = vld [vmem:[%s334 + $0x38] sm:$0xe]
        %v2232 = vrot.slane %v2208, 5
        %v2233 = vrot.slane %v2232, 4
        %v2234 = vrot.slane %v1979, 5
        %v2235 = vsel %vm711, %v2233, %v2234
        %v2236 = vrot.slane %v2209, 5
        %v2237 = vrot.slane %v2236, 4
        %v2238 = vrot.slane %v1981, 5
        %v2239 = vsel %vm711, %v2237, %v2238
        %v2240 = vrot.slane %v2210, 5
        %v2241 = vrot.slane %v2240, 4
        %v2242 = vrot.slane %v1983, 5
        %v2243 = vsel %vm711, %v2241, %v2242
        %v2244 = vrot.slane %v2211, 5
        %v2245 = vrot.slane %v2244, 4
        %v2246 = vrot.slane %v1985, 5
        %v2247 = vsel %vm711, %v2245, %v2246
        %v2248 = vrot.slane %v2212, 5
        %v2249 = vrot.slane %v2248, 4
        %v2250 = vrot.slane %v1987, 5
        %v2251 = vsel %vm711, %v2249, %v2250
        %v2252 = vrot.slane %v2213, 5
        %v2253 = vrot.slane %v2252, 4
        %v2254 = vrot.slane %v1989, 5
        %v2255 = vsel %vm711, %v2253, %v2254
        %v2256 = vrot.slane %v2214, 5
        %v2257 = vrot.slane %v2256, 4
        %v2258 = vrot.slane %v1991, 5
        %v2259 = vsel %vm711, %v2257, %v2258
        %v2260 = vrot.slane %v2215, 5
        %v2261 = vrot.slane %v2260, 4
        %v2262 = vrot.slane %v1993, 5
        %v2263 = vsel %vm711, %v2261, %v2262
        %s2264 = scalar_lea.vmem %s3, 22
        %v2265 = vld [vmem:[%s2264] sm:$0x3]
        %v2266 = vunpack.c.l.b16 %v2235
        %v2267 = vunpack.c.l.b16 %v2239
        %v2268 = vunpack.c.l.b16 %v2243
        %v2269 = vunpack.c.l.b16 %v2247
        %v2270 = vunpack.c.l.b16 %v2251
        %v2271 = vunpack.c.l.b16 %v2255
        %v2272 = vunpack.c.l.b16 %v2259
        %v2273 = vunpack.c.l.b16 %v2263
        %v2274 = vpack.c.b16 %v2267, %v2266
        %v2275 = vpack.c.b16 %v2269, %v2268
        %v2276 = vpack.c.b16 %v2271, %v2270
        %v2277 = vpack.c.b16 %v2273, %v2272
        %v2279 = vsel %vm503, %v2274, 0
        %v2282 = vsel %vm503, %v2275, 0
        %v2285 = vsel %vm503, %v2276, 0
        %v2288 = vsel %vm503, %v2277, 0
        %v2291 = vsel %vm516, %v2265, 0
        %2293 = vmatprep.subr.bf16.mxu0 0
        %2294 = vmatpush1.bf16.msra.mxu0 %v2291
        %2295 = vmatprep.subr.bf16.mxu0 0
        %2296 = vmatpush1.bf16.msra.mxu0 0
        %2297 = vmatprep.subr.bf16.mxu0 0
        %2298 = vmatpush1.bf16.msra.mxu0 0
        %2299 = vmatprep.subr.bf16.mxu0 0
        %2300 = vmatpush1.bf16.msra.mxu0 0
        %2301 = vmatprep.subr.bf16.mxu0 0
        %2302 = vmatpush1.bf16.msra.mxu0 0
        %2303 = vmatprep.subr.bf16.mxu0 0
        %2304 = vmatpush1.bf16.msra.mxu0 0
        %2305 = vmatprep.subr.bf16.mxu0 0
        %2306 = vmatpush1.bf16.msra.mxu0 0
        %2307 = vmatprep.subr.bf16.mxu0 0
        %2308 = vmatpush1.bf16.msra.mxu0 0
        %2309 = vmatprep.subr.bf16.mxu0 0
        %2310 = vmatpush1.bf16.msra.mxu0 0
        %2311 = vmatprep.subr.bf16.mxu0 0
        %2312 = vmatpush1.bf16.msra.mxu0 0
        %2313 = vmatprep.subr.bf16.mxu0 0
        %2314 = vmatpush1.bf16.msra.mxu0 0
        %2315 = vmatprep.subr.bf16.mxu0 0
        %2316 = vmatpush1.bf16.msra.mxu0 0
        %2317 = vmatprep.subr.bf16.mxu0 0
        %2318 = vmatpush1.bf16.msra.mxu0 0
        %2319 = vmatprep.subr.bf16.mxu0 0
        %2320 = vmatpush1.bf16.msra.mxu0 0
        %2321 = vmatprep.subr.bf16.mxu0 0
        %2322 = vmatpush1.bf16.msra.mxu0 0
        %2323 = vmatprep.subr.bf16.mxu0 0
        %2324 = vmatpush1.bf16.msra.mxu0 0
        %2325 = vmatprep.mubr.bf16.mxu0 0
        %2326 = vmatmul.mubr.bf16.gmra.mrb[0].mxu0 %v2279
        %v2327 = vpop.f32.mrb[0].mxu0
        %v2328 = vadd.f32 0.0, %v2327
        %v2329 = vpop.f32.mrb[0].mxu0
        %v2330 = vpop.f32.mrb[0].mxu0
        %v2331 = vadd.f32 0.0, %v2330
        %v2332 = vpop.f32.mrb[0].mxu0
        %2333 = vmatprep.mubr.bf16.mxu0 0
        %2334 = vmatmul.mubr.bf16.gmra.mrb[0].mxu0 %v2282
        %v2335 = vpop.f32.mrb[0].mxu0
        %v2336 = vadd.f32 0.0, %v2335
        %v2337 = vpop.f32.mrb[0].mxu0
        %v2338 = vpop.f32.mrb[0].mxu0
        %v2339 = vadd.f32 0.0, %v2338
        %v2340 = vpop.f32.mrb[0].mxu0
        %2341 = vmatprep.mubr.bf16.mxu0 0
        %2342 = vmatmul.mubr.bf16.gmra.mrb[0].mxu0 %v2285
        %v2343 = vpop.f32.mrb[0].mxu0
        %v2344 = vadd.f32 0.0, %v2343
        %v2345 = vpop.f32.mrb[0].mxu0
        %v2346 = vpop.f32.mrb[0].mxu0
        %v2347 = vadd.f32 0.0, %v2346
        %v2348 = vpop.f32.mrb[0].mxu0
        %2349 = vmatprep.mubr.bf16.mxu0 0
        %2350 = vmatmul.mubr.bf16.gmra.mrb[0].mxu0 %v2288
        %v2351 = vpop.f32.mrb[0].mxu0
        %v2352 = vadd.f32 0.0, %v2351
        %v2353 = vpop.f32.mrb[0].mxu0
        %v2354 = vpop.f32.mrb[0].mxu0
        %v2355 = vadd.f32 0.0, %v2354
        %v2356 = vpop.f32.mrb[0].mxu0
        %2357 = vdwg.mxu0
        %v2358 = vadd.f32 %v2200, %v2328
        %v2359 = vadd.f32 %v2201, %v2331
        %v2360 = vadd.f32 %v2202, %v2336
        %v2361 = vadd.f32 %v2203, %v2339
        %v2362 = vadd.f32 %v2204, %v2344
        %v2363 = vadd.f32 %v2205, %v2347
        %v2364 = vadd.f32 %v2206, %v2352
        %v2365 = vadd.f32 %v2207, %v2355
        %s2366 = scalar_lea.vmem %s334, 8
        %v2367 = vld [vmem:[%s2366] sm:$0xf]
        %v2368 = vld [vmem:[%s2366 + $0x8] sm:$0xf]
        %v2369 = vld [vmem:[%s2366 + $0x10] sm:$0xf]
        %v2370 = vld [vmem:[%s2366 + $0x18] sm:$0xf]
        %v2371 = vld [vmem:[%s2366 + $0x20] sm:$0xf]
        %v2372 = vld [vmem:[%s2366 + $0x28] sm:$0xf]
        %v2373 = vld [vmem:[%s2366 + $0x30] sm:$0xf]
        %v2374 = vld [vmem:[%s2366 + $0x38] sm:$0xf]
        %s2375 = scalar_lea.vmem %s3, 24
        %v2376 = vld [vmem:[%s2375] sm:$0x3]
        %v2385 = vunpack.c.l.b16 %v2367
        %v2386 = vunpack.c.l.b16 %v2368
        %v2387 = vunpack.c.l.b16 %v2369
        %v2388 = vunpack.c.l.b16 %v2370
        %v2389 = vunpack.c.l.b16 %v2371
        %v2390 = vunpack.c.l.b16 %v2372
        %v2391 = vunpack.c.l.b16 %v2373
        %v2392 = vunpack.c.l.b16 %v2374
        %v2393 = vpack.c.b16 %v2386, %v2385
        %v2394 = vpack.c.b16 %v2388, %v2387
        %v2395 = vpack.c.b16 %v2390, %v2389
        %v2396 = vpack.c.b16 %v2392, %v2391
        %v2398 = vsel %vm503, %v2393, 0
        %v2401 = vsel %vm503, %v2394, 0
        %v2404 = vsel %vm503, %v2395, 0
        %v2407 = vsel %vm503, %v2396, 0
        %v2410 = vsel %vm516, %v2376, 0
        %2412 = vmatprep.subr.bf16.mxu0 0
        %2413 = vmatpush1.bf16.msra.mxu0 %v2410
        %2414 = vmatprep.subr.bf16.mxu0 0
        %2415 = vmatpush1.bf16.msra.mxu0 0
        %2416 = vmatprep.subr.bf16.mxu0 0
        %2417 = vmatpush1.bf16.msra.mxu0 0
        %2418 = vmatprep.subr.bf16.mxu0 0
        %2419 = vmatpush1.bf16.msra.mxu0 0
        %2420 = vmatprep.subr.bf16.mxu0 0
        %2421 = vmatpush1.bf16.msra.mxu0 0
        %2422 = vmatprep.subr.bf16.mxu0 0
        %2423 = vmatpush1.bf16.msra.mxu0 0
        %2424 = vmatprep.subr.bf16.mxu0 0
        %2425 = vmatpush1.bf16.msra.mxu0 0
        %2426 = vmatprep.subr.bf16.mxu0 0
        %2427 = vmatpush1.bf16.msra.mxu0 0
        %2428 = vmatprep.subr.bf16.mxu0 0
        %2429 = vmatpush1.bf16.msra.mxu0 0
        %2430 = vmatprep.subr.bf16.mxu0 0
        %2431 = vmatpush1.bf16.msra.mxu0 0
        %2432 = vmatprep.subr.bf16.mxu0 0
        %2433 = vmatpush1.bf16.msra.mxu0 0
        %2434 = vmatprep.subr.bf16.mxu0 0
        %2435 = vmatpush1.bf16.msra.mxu0 0
        %2436 = vmatprep.subr.bf16.mxu0 0
        %2437 = vmatpush1.bf16.msra.mxu0 0
        %2438 = vmatprep.subr.bf16.mxu0 0
        %2439 = vmatpush1.bf16.msra.mxu0 0
        %2440 = vmatprep.subr.bf16.mxu0 0
        %2441 = vmatpush1.bf16.msra.mxu0 0
        %2442 = vmatprep.subr.bf16.mxu0 0
        %2443 = vmatpush1.bf16.msra.mxu0 0
        %2444 = vmatprep.mubr.bf16.mxu0 0
        %2445 = vmatmul.mubr.bf16.gmra.mrb[0].mxu0 %v2398
        %v2446 = vpop.f32.mrb[0].mxu0
        %v2447 = vadd.f32 0.0, %v2446
        %v2448 = vpop.f32.mrb[0].mxu0
        %v2449 = vpop.f32.mrb[0].mxu0
        %v2450 = vadd.f32 0.0, %v2449
        %v2451 = vpop.f32.mrb[0].mxu0
        %2452 = vmatprep.mubr.bf16.mxu0 0
        %2453 = vmatmul.mubr.bf16.gmra.mrb[0].mxu0 %v2401
        %v2454 = vpop.f32.mrb[0].mxu0
        %v2455 = vadd.f32 0.0, %v2454
        %v2456 = vpop.f32.mrb[0].mxu0
        %v2457 = vpop.f32.mrb[0].mxu0
        %v2458 = vadd.f32 0.0, %v2457
        %v2459 = vpop.f32.mrb[0].mxu0
        %2460 = vmatprep.mubr.bf16.mxu0 0
        %2461 = vmatmul.mubr.bf16.gmra.mrb[0].mxu0 %v2404
        %v2462 = vpop.f32.mrb[0].mxu0
        %v2463 = vadd.f32 0.0, %v2462
        %v2464 = vpop.f32.mrb[0].mxu0
        %v2465 = vpop.f32.mrb[0].mxu0
        %v2466 = vadd.f32 0.0, %v2465
        %v2467 = vpop.f32.mrb[0].mxu0
        %2468 = vmatprep.mubr.bf16.mxu0 0
        %2469 = vmatmul.mubr.bf16.gmra.mrb[0].mxu0 %v2407
        %v2470 = vpop.f32.mrb[0].mxu0
        %v2471 = vadd.f32 0.0, %v2470
        %v2472 = vpop.f32.mrb[0].mxu0
        %v2473 = vpop.f32.mrb[0].mxu0
        %v2474 = vadd.f32 0.0, %v2473
        %v2475 = vpop.f32.mrb[0].mxu0
        %2476 = vdwg.mxu0
        %v2477 = vadd.f32 %v2358, %v2447
        %v2478 = vadd.f32 %v2359, %v2450
        %v2479 = vadd.f32 %v2360, %v2455
        %v2480 = vadd.f32 %v2361, %v2458
        %v2481 = vadd.f32 %v2362, %v2463
        %v2482 = vadd.f32 %v2363, %v2466
        %v2483 = vadd.f32 %v2364, %v2471
        %v2484 = vadd.f32 %v2365, %v2474
        %v2485 = vld [vmem:[%s2366] sm:$0xf]
        %v2486 = vld [vmem:[%s2366 + $0x4] sm:$0x1]
        %v2487 = vld [vmem:[%s2366 + $0x8] sm:$0xf]
        %v2488 = vld [vmem:[%s2366 + $0xc] sm:$0x1]
        %v2489 = vld [vmem:[%s2366 + $0x10] sm:$0xf]
        %v2490 = vld [vmem:[%s2366 + $0x14] sm:$0x1]
        %v2491 = vld [vmem:[%s2366 + $0x18] sm:$0xf]
        %v2492 = vld [vmem:[%s2366 + $0x1c] sm:$0x1]
        %v2493 = vld [vmem:[%s2366 + $0x20] sm:$0xf]
        %v2494 = vld [vmem:[%s2366 + $0x24] sm:$0x1]
        %v2495 = vld [vmem:[%s2366 + $0x28] sm:$0xf]
        %v2496 = vld [vmem:[%s2366 + $0x2c] sm:$0x1]
        %v2497 = vld [vmem:[%s2366 + $0x30] sm:$0xf]
        %v2498 = vld [vmem:[%s2366 + $0x34] sm:$0x1]
        %v2499 = vld [vmem:[%s2366 + $0x38] sm:$0xf]
        %v2500 = vld [vmem:[%s2366 + $0x3c] sm:$0x1]
        %v2502 = vshrl.u32 %v2485, 16
        %v2504 = vrot.slane %v2502, 4
        %v2505 = vshll.u32 %v2485, 16
        %v2507 = vrot.slane %v2505, 5
        %v2508 = vor.u32 %v2504, %v2507
        %v2509 = vrot.slane %v2508, 4
        %v2511 = vshll.u32 %v2486, 16
        %v2513 = vrot.slane %v2511, 5
        %v2514 = vsel %vm376, %v2509, %v2513
        %v2516 = vshrl.u32 %v2487, 16
        %v2518 = vrot.slane %v2516, 4
        %v2519 = vshll.u32 %v2487, 16
        %v2521 = vrot.slane %v2519, 5
        %v2522 = vor.u32 %v2518, %v2521
        %v2523 = vrot.slane %v2522, 4
        %v2525 = vshll.u32 %v2488, 16
        %v2527 = vrot.slane %v2525, 5
        %v2528 = vsel %vm376, %v2523, %v2527
        %v2530 = vshrl.u32 %v2489, 16
        %v2532 = vrot.slane %v2530, 4
        %v2533 = vshll.u32 %v2489, 16
        %v2535 = vrot.slane %v2533, 5
        %v2536 = vor.u32 %v2532, %v2535
        %v2537 = vrot.slane %v2536, 4
        %v2539 = vshll.u32 %v2490, 16
        %v2541 = vrot.slane %v2539, 5
        %v2542 = vsel %vm376, %v2537, %v2541
        %v2544 = vshrl.u32 %v2491, 16
        %v2546 = vrot.slane %v2544, 4
        %v2547 = vshll.u32 %v2491, 16
        %v2549 = vrot.slane %v2547, 5
        %v2550 = vor.u32 %v2546, %v2549
        %v2551 = vrot.slane %v2550, 4
        %v2553 = vshll.u32 %v2492, 16
        %v2555 = vrot.slane %v2553, 5
        %v2556 = vsel %vm376, %v2551, %v2555
        %v2558 = vshrl.u32 %v2493, 16
        %v2560 = vrot.slane %v2558, 4
        %v2561 = vshll.u32 %v2493, 16
        %v2563 = vrot.slane %v2561, 5
        %v2564 = vor.u32 %v2560, %v2563
        %v2565 = vrot.slane %v2564, 4
        %v2567 = vshll.u32 %v2494, 16
        %v2569 = vrot.slane %v2567, 5
        %v2570 = vsel %vm376, %v2565, %v2569
        %v2572 = vshrl.u32 %v2495, 16
        %v2574 = vrot.slane %v2572, 4
        %v2575 = vshll.u32 %v2495, 16
        %v2577 = vrot.slane %v2575, 5
        %v2578 = vor.u32 %v2574, %v2577
        %v2579 = vrot.slane %v2578, 4
        %v2581 = vshll.u32 %v2496, 16
        %v2583 = vrot.slane %v2581, 5
        %v2584 = vsel %vm376, %v2579, %v2583
        %v2586 = vshrl.u32 %v2497, 16
        %v2588 = vrot.slane %v2586, 4
        %v2589 = vshll.u32 %v2497, 16
        %v2591 = vrot.slane %v2589, 5
        %v2592 = vor.u32 %v2588, %v2591
        %v2593 = vrot.slane %v2592, 4
        %v2595 = vshll.u32 %v2498, 16
        %v2597 = vrot.slane %v2595, 5
        %v2598 = vsel %vm376, %v2593, %v2597
        %v2600 = vshrl.u32 %v2499, 16
        %v2602 = vrot.slane %v2600, 4
        %v2603 = vshll.u32 %v2499, 16
        %v2605 = vrot.slane %v2603, 5
        %v2606 = vor.u32 %v2602, %v2605
        %v2607 = vrot.slane %v2606, 4
        %v2609 = vshll.u32 %v2500, 16
        %v2611 = vrot.slane %v2609, 5
        %v2612 = vsel %vm376, %v2607, %v2611
        %s2613 = scalar_lea.vmem %s3, 26
        %v2614 = vld [vmem:[%s2613] sm:$0x3]
        %v2615 = vunpack.c.l.b16 %v2514
        %v2616 = vunpack.c.l.b16 %v2528
        %v2617 = vunpack.c.l.b16 %v2542
        %v2618 = vunpack.c.l.b16 %v2556
        %v2619 = vunpack.c.l.b16 %v2570
        %v2620 = vunpack.c.l.b16 %v2584
        %v2621 = vunpack.c.l.b16 %v2598
        %v2622 = vunpack.c.l.b16 %v2612
        %v2623 = vpack.c.b16 %v2616, %v2615
        %v2624 = vpack.c.b16 %v2618, %v2617
        %v2625 = vpack.c.b16 %v2620, %v2619
        %v2626 = vpack.c.b16 %v2622, %v2621
        %v2628 = vsel %vm503, %v2623, 0
        %v2631 = vsel %vm503, %v2624, 0
        %v2634 = vsel %vm503, %v2625, 0
        %v2637 = vsel %vm503, %v2626, 0
        %v2640 = vsel %vm516, %v2614, 0
        %2642 = vmatprep.subr.bf16.mxu0 0
        %2643 = vmatpush1.bf16.msra.mxu0 %v2640
        %2644 = vmatprep.subr.bf16.mxu0 0
        %2645 = vmatpush1.bf16.msra.mxu0 0
        %2646 = vmatprep.subr.bf16.mxu0 0
        %2647 = vmatpush1.bf16.msra.mxu0 0
        %2648 = vmatprep.subr.bf16.mxu0 0
        %2649 = vmatpush1.bf16.msra.mxu0 0
        %2650 = vmatprep.subr.bf16.mxu0 0
        %2651 = vmatpush1.bf16.msra.mxu0 0
        %2652 = vmatprep.subr.bf16.mxu0 0
        %2653 = vmatpush1.bf16.msra.mxu0 0
        %2654 = vmatprep.subr.bf16.mxu0 0
        %2655 = vmatpush1.bf16.msra.mxu0 0
        %2656 = vmatprep.subr.bf16.mxu0 0
        %2657 = vmatpush1.bf16.msra.mxu0 0
        %2658 = vmatprep.subr.bf16.mxu0 0
        %2659 = vmatpush1.bf16.msra.mxu0 0
        %2660 = vmatprep.subr.bf16.mxu0 0
        %2661 = vmatpush1.bf16.msra.mxu0 0
        %2662 = vmatprep.subr.bf16.mxu0 0
        %2663 = vmatpush1.bf16.msra.mxu0 0
        %2664 = vmatprep.subr.bf16.mxu0 0
        %2665 = vmatpush1.bf16.msra.mxu0 0
        %2666 = vmatprep.subr.bf16.mxu0 0
        %2667 = vmatpush1.bf16.msra.mxu0 0
        %2668 = vmatprep.subr.bf16.mxu0 0
        %2669 = vmatpush1.bf16.msra.mxu0 0
        %2670 = vmatprep.subr.bf16.mxu0 0
        %2671 = vmatpush1.bf16.msra.mxu0 0
        %2672 = vmatprep.subr.bf16.mxu0 0
        %2673 = vmatpush1.bf16.msra.mxu0 0
        %2674 = vmatprep.mubr.bf16.mxu0 0
        %2675 = vmatmul.mubr.bf16.gmra.mrb[0].mxu0 %v2628
        %v2676 = vpop.f32.mrb[0].mxu0
        %v2677 = vadd.f32 0.0, %v2676
        %v2678 = vpop.f32.mrb[0].mxu0
        %v2679 = vpop.f32.mrb[0].mxu0
        %v2680 = vadd.f32 0.0, %v2679
        %v2681 = vpop.f32.mrb[0].mxu0
        %2682 = vmatprep.mubr.bf16.mxu0 0
        %2683 = vmatmul.mubr.bf16.gmra.mrb[0].mxu0 %v2631
        %v2684 = vpop.f32.mrb[0].mxu0
        %v2685 = vadd.f32 0.0, %v2684
        %v2686 = vpop.f32.mrb[0].mxu0
        %v2687 = vpop.f32.mrb[0].mxu0
        %v2688 = vadd.f32 0.0, %v2687
        %v2689 = vpop.f32.mrb[0].mxu0
        %2690 = vmatprep.mubr.bf16.mxu0 0
        %2691 = vmatmul.mubr.bf16.gmra.mrb[0].mxu0 %v2634
        %v2692 = vpop.f32.mrb[0].mxu0
        %v2693 = vadd.f32 0.0, %v2692
        %v2694 = vpop.f32.mrb[0].mxu0
        %v2695 = vpop.f32.mrb[0].mxu0
        %v2696 = vadd.f32 0.0, %v2695
        %v2697 = vpop.f32.mrb[0].mxu0
        %2698 = vmatprep.mubr.bf16.mxu0 0
        %2699 = vmatmul.mubr.bf16.gmra.mrb[0].mxu0 %v2637
        %v2700 = vpop.f32.mrb[0].mxu0
        %v2701 = vadd.f32 0.0, %v2700
        %v2702 = vpop.f32.mrb[0].mxu0
        %v2703 = vpop.f32.mrb[0].mxu0
        %v2704 = vadd.f32 0.0, %v2703
        %v2705 = vpop.f32.mrb[0].mxu0
        %2706 = vdwg.mxu0
        %v2707 = vadd.f32 %v2477, %v2677
        %v2708 = vadd.f32 %v2478, %v2680
        %v2709 = vadd.f32 %v2479, %v2685
        %v2710 = vadd.f32 %v2480, %v2688
        %v2711 = vadd.f32 %v2481, %v2693
        %v2712 = vadd.f32 %v2482, %v2696
        %v2713 = vadd.f32 %v2483, %v2701
        %v2714 = vadd.f32 %v2484, %v2704
        %v2715 = vld [vmem:[%s2366] sm:$0xe]
        %v2716 = vld [vmem:[%s2366 + $0x8] sm:$0xe]
        %v2717 = vld [vmem:[%s2366 + $0x10] sm:$0xe]
        %v2718 = vld [vmem:[%s2366 + $0x18] sm:$0xe]
        %v2719 = vld [vmem:[%s2366 + $0x20] sm:$0xe]
        %v2720 = vld [vmem:[%s2366 + $0x28] sm:$0xe]
        %v2721 = vld [vmem:[%s2366 + $0x30] sm:$0xe]
        %v2722 = vld [vmem:[%s2366 + $0x38] sm:$0xe]
        %v2739 = vrot.slane %v2715, 5
        %v2740 = vrot.slane %v2739, 4
        %v2741 = vrot.slane %v2486, 5
        %v2742 = vsel %vm711, %v2740, %v2741
        %v2743 = vrot.slane %v2716, 5
        %v2744 = vrot.slane %v2743, 4
        %v2745 = vrot.slane %v2488, 5
        %v2746 = vsel %vm711, %v2744, %v2745
        %v2747 = vrot.slane %v2717, 5
        %v2748 = vrot.slane %v2747, 4
        %v2749 = vrot.slane %v2490, 5
        %v2750 = vsel %vm711, %v2748, %v2749
        %v2751 = vrot.slane %v2718, 5
        %v2752 = vrot.slane %v2751, 4
        %v2753 = vrot.slane %v2492, 5
        %v2754 = vsel %vm711, %v2752, %v2753
        %v2755 = vrot.slane %v2719, 5
        %v2756 = vrot.slane %v2755, 4
        %v2757 = vrot.slane %v2494, 5
        %v2758 = vsel %vm711, %v2756, %v2757
        %v2759 = vrot.slane %v2720, 5
        %v2760 = vrot.slane %v2759, 4
        %v2761 = vrot.slane %v2496, 5
        %v2762 = vsel %vm711, %v2760, %v2761
        %v2763 = vrot.slane %v2721, 5
        %v2764 = vrot.slane %v2763, 4
        %v2765 = vrot.slane %v2498, 5
        %v2766 = vsel %vm711, %v2764, %v2765
        %v2767 = vrot.slane %v2722, 5
        %v2768 = vrot.slane %v2767, 4
        %v2769 = vrot.slane %v2500, 5
        %v2770 = vsel %vm711, %v2768, %v2769
        %s2771 = scalar_lea.vmem %s3, 28
        %v2772 = vld [vmem:[%s2771] sm:$0x3]
        %v2773 = vunpack.c.l.b16 %v2742
        %v2774 = vunpack.c.l.b16 %v2746
        %v2775 = vunpack.c.l.b16 %v2750
        %v2776 = vunpack.c.l.b16 %v2754
        %v2777 = vunpack.c.l.b16 %v2758
        %v2778 = vunpack.c.l.b16 %v2762
        %v2779 = vunpack.c.l.b16 %v2766
        %v2780 = vunpack.c.l.b16 %v2770
        %v2781 = vpack.c.b16 %v2774, %v2773
        %v2782 = vpack.c.b16 %v2776, %v2775
        %v2783 = vpack.c.b16 %v2778, %v2777
        %v2784 = vpack.c.b16 %v2780, %v2779
        %v2786 = vsel %vm503, %v2781, 0
        %v2789 = vsel %vm503, %v2782, 0
        %v2792 = vsel %vm503, %v2783, 0
        %v2795 = vsel %vm503, %v2784, 0
        %v2798 = vsel %vm516, %v2772, 0
        %2800 = vmatprep.subr.bf16.mxu0 0
        %2801 = vmatpush1.bf16.msra.mxu0 %v2798
        %2802 = vmatprep.subr.bf16.mxu0 0
        %2803 = vmatpush1.bf16.msra.mxu0 0
        %2804 = vmatprep.subr.bf16.mxu0 0
        %2805 = vmatpush1.bf16.msra.mxu0 0
        %2806 = vmatprep.subr.bf16.mxu0 0
        %2807 = vmatpush1.bf16.msra.mxu0 0
        %2808 = vmatprep.subr.bf16.mxu0 0
        %2809 = vmatpush1.bf16.msra.mxu0 0
        %2810 = vmatprep.subr.bf16.mxu0 0
        %2811 = vmatpush1.bf16.msra.mxu0 0
        %2812 = vmatprep.subr.bf16.mxu0 0
        %2813 = vmatpush1.bf16.msra.mxu0 0
        %2814 = vmatprep.subr.bf16.mxu0 0
        %2815 = vmatpush1.bf16.msra.mxu0 0
        %2816 = vmatprep.subr.bf16.mxu0 0
        %2817 = vmatpush1.bf16.msra.mxu0 0
        %2818 = vmatprep.subr.bf16.mxu0 0
        %2819 = vmatpush1.bf16.msra.mxu0 0
        %2820 = vmatprep.subr.bf16.mxu0 0
        %2821 = vmatpush1.bf16.msra.mxu0 0
        %2822 = vmatprep.subr.bf16.mxu0 0
        %2823 = vmatpush1.bf16.msra.mxu0 0
        %2824 = vmatprep.subr.bf16.mxu0 0
        %2825 = vmatpush1.bf16.msra.mxu0 0
        %2826 = vmatprep.subr.bf16.mxu0 0
        %2827 = vmatpush1.bf16.msra.mxu0 0
        %2828 = vmatprep.subr.bf16.mxu0 0
        %2829 = vmatpush1.bf16.msra.mxu0 0
        %2830 = vmatprep.subr.bf16.mxu0 0
        %2831 = vmatpush1.bf16.msra.mxu0 0
        %2832 = vmatprep.mubr.bf16.mxu0 0
        %2833 = vmatmul.mubr.bf16.gmra.mrb[0].mxu0 %v2786
        %v2834 = vpop.f32.mrb[0].mxu0
        %v2835 = vadd.f32 0.0, %v2834
        %v2836 = vpop.f32.mrb[0].mxu0
        %v2837 = vpop.f32.mrb[0].mxu0
        %v2838 = vadd.f32 0.0, %v2837
        %v2839 = vpop.f32.mrb[0].mxu0
        %2840 = vmatprep.mubr.bf16.mxu0 0
        %2841 = vmatmul.mubr.bf16.gmra.mrb[0].mxu0 %v2789
        %v2842 = vpop.f32.mrb[0].mxu0
        %v2843 = vadd.f32 0.0, %v2842
        %v2844 = vpop.f32.mrb[0].mxu0
        %v2845 = vpop.f32.mrb[0].mxu0
        %v2846 = vadd.f32 0.0, %v2845
        %v2847 = vpop.f32.mrb[0].mxu0
        %2848 = vmatprep.mubr.bf16.mxu0 0
        %2849 = vmatmul.mubr.bf16.gmra.mrb[0].mxu0 %v2792
        %v2850 = vpop.f32.mrb[0].mxu0
        %v2851 = vadd.f32 0.0, %v2850
        %v2852 = vpop.f32.mrb[0].mxu0
        %v2853 = vpop.f32.mrb[0].mxu0
        %v2854 = vadd.f32 0.0, %v2853
        %v2855 = vpop.f32.mrb[0].mxu0
        %2856 = vmatprep.mubr.bf16.mxu0 0
        %2857 = vmatmul.mubr.bf16.gmra.mrb[0].mxu0 %v2795
        %v2858 = vpop.f32.mrb[0].mxu0
        %v2859 = vadd.f32 0.0, %v2858
        %v2860 = vpop.f32.mrb[0].mxu0
        %v2861 = vpop.f32.mrb[0].mxu0
        %v2862 = vadd.f32 0.0, %v2861
        %v2863 = vpop.f32.mrb[0].mxu0
        %2864 = vdwg.mxu0
        %v2865 = vadd.f32 %v2707, %v2835
        %v2866 = vadd.f32 %v2708, %v2838
        %v2867 = vadd.f32 %v2709, %v2843
        %v2868 = vadd.f32 %v2710, %v2846
        %v2869 = vadd.f32 %v2711, %v2851
        %v2870 = vadd.f32 %v2712, %v2854
        %v2871 = vadd.f32 %v2713, %v2859
        %v2872 = vadd.f32 %v2714, %v2862
        %s2873 = scalar_lea.vmem %s334, 16
        %v2874 = vld [vmem:[%s2873] sm:$0xf]
        %v2875 = vld [vmem:[%s2873 + $0x8] sm:$0xf]
        %v2876 = vld [vmem:[%s2873 + $0x10] sm:$0xf]
        %v2877 = vld [vmem:[%s2873 + $0x18] sm:$0xf]
        %v2878 = vld [vmem:[%s2873 + $0x20] sm:$0xf]
        %v2879 = vld [vmem:[%s2873 + $0x28] sm:$0xf]
        %v2880 = vld [vmem:[%s2873 + $0x30] sm:$0xf]
        %v2881 = vld [vmem:[%s2873 + $0x38] sm:$0xf]
        %s2882 = scalar_lea.vmem %s3, 30
        %v2883 = vld [vmem:[%s2882] sm:$0x3]
        %v2892 = vunpack.c.l.b16 %v2874
        %v2893 = vunpack.c.l.b16 %v2875
        %v2894 = vunpack.c.l.b16 %v2876
        %v2895 = vunpack.c.l.b16 %v2877
        %v2896 = vunpack.c.l.b16 %v2878
        %v2897 = vunpack.c.l.b16 %v2879
        %v2898 = vunpack.c.l.b16 %v2880
        %v2899 = vunpack.c.l.b16 %v2881
        %v2900 = vpack.c.b16 %v2893, %v2892
        %v2901 = vpack.c.b16 %v2895, %v2894
        %v2902 = vpack.c.b16 %v2897, %v2896
        %v2903 = vpack.c.b16 %v2899, %v2898
        %v2905 = vsel %vm503, %v2900, 0
        %v2908 = vsel %vm503, %v2901, 0
        %v2911 = vsel %vm503, %v2902, 0
        %v2914 = vsel %vm503, %v2903, 0
        %v2917 = vsel %vm516, %v2883, 0
        %2919 = vmatprep.subr.bf16.mxu0 0
        %2920 = vmatpush1.bf16.msra.mxu0 %v2917
        %2921 = vmatprep.subr.bf16.mxu0 0
        %2922 = vmatpush1.bf16.msra.mxu0 0
        %2923 = vmatprep.subr.bf16.mxu0 0
        %2924 = vmatpush1.bf16.msra.mxu0 0
        %2925 = vmatprep.subr.bf16.mxu0 0
        %2926 = vmatpush1.bf16.msra.mxu0 0
        %2927 = vmatprep.subr.bf16.mxu0 0
        %2928 = vmatpush1.bf16.msra.mxu0 0
        %2929 = vmatprep.subr.bf16.mxu0 0
        %2930 = vmatpush1.bf16.msra.mxu0 0
        %2931 = vmatprep.subr.bf16.mxu0 0
        %2932 = vmatpush1.bf16.msra.mxu0 0
        %2933 = vmatprep.subr.bf16.mxu0 0
        %2934 = vmatpush1.bf16.msra.mxu0 0
        %2935 = vmatprep.subr.bf16.mxu0 0
        %2936 = vmatpush1.bf16.msra.mxu0 0
        %2937 = vmatprep.subr.bf16.mxu0 0
        %2938 = vmatpush1.bf16.msra.mxu0 0
        %2939 = vmatprep.subr.bf16.mxu0 0
        %2940 = vmatpush1.bf16.msra.mxu0 0
        %2941 = vmatprep.subr.bf16.mxu0 0
        %2942 = vmatpush1.bf16.msra.mxu0 0
        %2943 = vmatprep.subr.bf16.mxu0 0
        %2944 = vmatpush1.bf16.msra.mxu0 0
        %2945 = vmatprep.subr.bf16.mxu0 0
        %2946 = vmatpush1.bf16.msra.mxu0 0
        %2947 = vmatprep.subr.bf16.mxu0 0
        %2948 = vmatpush1.bf16.msra.mxu0 0
        %2949 = vmatprep.subr.bf16.mxu0 0
        %2950 = vmatpush1.bf16.msra.mxu0 0
        %2951 = vmatprep.mubr.bf16.mxu0 0
        %2952 = vmatmul.mubr.bf16.gmra.mrb[0].mxu0 %v2905
        %v2953 = vpop.f32.mrb[0].mxu0
        %v2954 = vadd.f32 0.0, %v2953
        %v2955 = vpop.f32.mrb[0].mxu0
        %v2956 = vpop.f32.mrb[0].mxu0
        %v2957 = vadd.f32 0.0, %v2956
        %v2958 = vpop.f32.mrb[0].mxu0
        %2959 = vmatprep.mubr.bf16.mxu0 0
        %2960 = vmatmul.mubr.bf16.gmra.mrb[0].mxu0 %v2908
        %v2961 = vpop.f32.mrb[0].mxu0
        %v2962 = vadd.f32 0.0, %v2961
        %v2963 = vpop.f32.mrb[0].mxu0
        %v2964 = vpop.f32.mrb[0].mxu0
        %v2965 = vadd.f32 0.0, %v2964
        %v2966 = vpop.f32.mrb[0].mxu0
        %2967 = vmatprep.mubr.bf16.mxu0 0
        %2968 = vmatmul.mubr.bf16.gmra.mrb[0].mxu0 %v2911
        %v2969 = vpop.f32.mrb[0].mxu0
        %v2970 = vadd.f32 0.0, %v2969
        %v2971 = vpop.f32.mrb[0].mxu0
        %v2972 = vpop.f32.mrb[0].mxu0
        %v2973 = vadd.f32 0.0, %v2972
        %v2974 = vpop.f32.mrb[0].mxu0
        %2975 = vmatprep.mubr.bf16.mxu0 0
        %2976 = vmatmul.mubr.bf16.gmra.mrb[0].mxu0 %v2914
        %v2977 = vpop.f32.mrb[0].mxu0
        %v2978 = vadd.f32 0.0, %v2977
        %v2979 = vpop.f32.mrb[0].mxu0
        %v2980 = vpop.f32.mrb[0].mxu0
        %v2981 = vadd.f32 0.0, %v2980
        %v2982 = vpop.f32.mrb[0].mxu0
        %2983 = vdwg.mxu0
        %v2984 = vadd.f32 %v2865, %v2954
        %v2985 = vadd.f32 %v2866, %v2957
        %v2986 = vadd.f32 %v2867, %v2962
        %v2987 = vadd.f32 %v2868, %v2965
        %v2988 = vadd.f32 %v2869, %v2970
        %v2989 = vadd.f32 %v2870, %v2973
        %v2990 = vadd.f32 %v2871, %v2978
        %v2991 = vadd.f32 %v2872, %v2981
        %v2992 = vld [vmem:[%s2873] sm:$0xf]
        %v2993 = vld [vmem:[%s2873 + $0x4] sm:$0x1]
        %v2994 = vld [vmem:[%s2873 + $0x8] sm:$0xf]
        %v2995 = vld [vmem:[%s2873 + $0xc] sm:$0x1]
        %v2996 = vld [vmem:[%s2873 + $0x10] sm:$0xf]
        %v2997 = vld [vmem:[%s2873 + $0x14] sm:$0x1]
        %v2998 = vld [vmem:[%s2873 + $0x18] sm:$0xf]
        %v2999 = vld [vmem:[%s2873 + $0x1c] sm:$0x1]
        %v3000 = vld [vmem:[%s2873 + $0x20] sm:$0xf]
        %v3001 = vld [vmem:[%s2873 + $0x24] sm:$0x1]
        %v3002 = vld [vmem:[%s2873 + $0x28] sm:$0xf]
        %v3003 = vld [vmem:[%s2873 + $0x2c] sm:$0x1]
        %v3004 = vld [vmem:[%s2873 + $0x30] sm:$0xf]
        %v3005 = vld [vmem:[%s2873 + $0x34] sm:$0x1]
        %v3006 = vld [vmem:[%s2873 + $0x38] sm:$0xf]
        %v3007 = vld [vmem:[%s2873 + $0x3c] sm:$0x1]
        %v3009 = vshrl.u32 %v2992, 16
        %v3011 = vrot.slane %v3009, 4
        %v3012 = vshll.u32 %v2992, 16
        %v3014 = vrot.slane %v3012, 5
        %v3015 = vor.u32 %v3011, %v3014
        %v3016 = vrot.slane %v3015, 4
        %v3018 = vshll.u32 %v2993, 16
        %v3020 = vrot.slane %v3018, 5
        %v3021 = vsel %vm376, %v3016, %v3020
        %v3023 = vshrl.u32 %v2994, 16
        %v3025 = vrot.slane %v3023, 4
        %v3026 = vshll.u32 %v2994, 16
        %v3028 = vrot.slane %v3026, 5
        %v3029 = vor.u32 %v3025, %v3028
        %v3030 = vrot.slane %v3029, 4
        %v3032 = vshll.u32 %v2995, 16
        %v3034 = vrot.slane %v3032, 5
        %v3035 = vsel %vm376, %v3030, %v3034
        %v3037 = vshrl.u32 %v2996, 16
        %v3039 = vrot.slane %v3037, 4
        %v3040 = vshll.u32 %v2996, 16
        %v3042 = vrot.slane %v3040, 5
        %v3043 = vor.u32 %v3039, %v3042
        %v3044 = vrot.slane %v3043, 4
        %v3046 = vshll.u32 %v2997, 16
        %v3048 = vrot.slane %v3046, 5
        %v3049 = vsel %vm376, %v3044, %v3048
        %v3051 = vshrl.u32 %v2998, 16
        %v3053 = vrot.slane %v3051, 4
        %v3054 = vshll.u32 %v2998, 16
        %v3056 = vrot.slane %v3054, 5
        %v3057 = vor.u32 %v3053, %v3056
        %v3058 = vrot.slane %v3057, 4
        %v3060 = vshll.u32 %v2999, 16
        %v3062 = vrot.slane %v3060, 5
        %v3063 = vsel %vm376, %v3058, %v3062
        %v3065 = vshrl.u32 %v3000, 16
        %v3067 = vrot.slane %v3065, 4
        %v3068 = vshll.u32 %v3000, 16
        %v3070 = vrot.slane %v3068, 5
        %v3071 = vor.u32 %v3067, %v3070
        %v3072 = vrot.slane %v3071, 4
        %v3074 = vshll.u32 %v3001, 16
        %v3076 = vrot.slane %v3074, 5
        %v3077 = vsel %vm376, %v3072, %v3076
        %v3079 = vshrl.u32 %v3002, 16
        %v3081 = vrot.slane %v3079, 4
        %v3082 = vshll.u32 %v3002, 16
        %v3084 = vrot.slane %v3082, 5
        %v3085 = vor.u32 %v3081, %v3084
        %v3086 = vrot.slane %v3085, 4
        %v3088 = vshll.u32 %v3003, 16
        %v3090 = vrot.slane %v3088, 5
        %v3091 = vsel %vm376, %v3086, %v3090
        %v3093 = vshrl.u32 %v3004, 16
        %v3095 = vrot.slane %v3093, 4
        %v3096 = vshll.u32 %v3004, 16
        %v3098 = vrot.slane %v3096, 5
        %v3099 = vor.u32 %v3095, %v3098
        %v3100 = vrot.slane %v3099, 4
        %v3102 = vshll.u32 %v3005, 16
        %v3104 = vrot.slane %v3102, 5
        %v3105 = vsel %vm376, %v3100, %v3104
        %v3107 = vshrl.u32 %v3006, 16
        %v3109 = vrot.slane %v3107, 4
        %v3110 = vshll.u32 %v3006, 16
        %v3112 = vrot.slane %v3110, 5
        %v3113 = vor.u32 %v3109, %v3112
        %v3114 = vrot.slane %v3113, 4
        %v3116 = vshll.u32 %v3007, 16
        %v3118 = vrot.slane %v3116, 5
        %v3119 = vsel %vm376, %v3114, %v3118
        %s3120 = scalar_lea.vmem %s3, 32
        %v3121 = vld [vmem:[%s3120] sm:$0x3]
        %v3122 = vunpack.c.l.b16 %v3021
        %v3123 = vunpack.c.l.b16 %v3035
        %v3124 = vunpack.c.l.b16 %v3049
        %v3125 = vunpack.c.l.b16 %v3063
        %v3126 = vunpack.c.l.b16 %v3077
        %v3127 = vunpack.c.l.b16 %v3091
        %v3128 = vunpack.c.l.b16 %v3105
        %v3129 = vunpack.c.l.b16 %v3119
        %v3130 = vpack.c.b16 %v3123, %v3122
        %v3131 = vpack.c.b16 %v3125, %v3124
        %v3132 = vpack.c.b16 %v3127, %v3126
        %v3133 = vpack.c.b16 %v3129, %v3128
        %v3135 = vsel %vm503, %v3130, 0
        %v3138 = vsel %vm503, %v3131, 0
        %v3141 = vsel %vm503, %v3132, 0
        %v3144 = vsel %vm503, %v3133, 0
        %v3147 = vsel %vm516, %v3121, 0
        %3149 = vmatprep.subr.bf16.mxu0 0
        %3150 = vmatpush1.bf16.msra.mxu0 %v3147
        %3151 = vmatprep.subr.bf16.mxu0 0
        %3152 = vmatpush1.bf16.msra.mxu0 0
        %3153 = vmatprep.subr.bf16.mxu0 0
        %3154 = vmatpush1.bf16.msra.mxu0 0
        %3155 = vmatprep.subr.bf16.mxu0 0
        %3156 = vmatpush1.bf16.msra.mxu0 0
        %3157 = vmatprep.subr.bf16.mxu0 0
        %3158 = vmatpush1.bf16.msra.mxu0 0
        %3159 = vmatprep.subr.bf16.mxu0 0
        %3160 = vmatpush1.bf16.msra.mxu0 0
        %3161 = vmatprep.subr.bf16.mxu0 0
        %3162 = vmatpush1.bf16.msra.mxu0 0
        %3163 = vmatprep.subr.bf16.mxu0 0
        %3164 = vmatpush1.bf16.msra.mxu0 0
        %3165 = vmatprep.subr.bf16.mxu0 0
        %3166 = vmatpush1.bf16.msra.mxu0 0
        %3167 = vmatprep.subr.bf16.mxu0 0
        %3168 = vmatpush1.bf16.msra.mxu0 0
        %3169 = vmatprep.subr.bf16.mxu0 0
        %3170 = vmatpush1.bf16.msra.mxu0 0
        %3171 = vmatprep.subr.bf16.mxu0 0
        %3172 = vmatpush1.bf16.msra.mxu0 0
        %3173 = vmatprep.subr.bf16.mxu0 0
        %3174 = vmatpush1.bf16.msra.mxu0 0
        %3175 = vmatprep.subr.bf16.mxu0 0
        %3176 = vmatpush1.bf16.msra.mxu0 0
        %3177 = vmatprep.subr.bf16.mxu0 0
        %3178 = vmatpush1.bf16.msra.mxu0 0
        %3179 = vmatprep.subr.bf16.mxu0 0
        %3180 = vmatpush1.bf16.msra.mxu0 0
        %3181 = vmatprep.mubr.bf16.mxu0 0
        %3182 = vmatmul.mubr.bf16.gmra.mrb[0].mxu0 %v3135
        %v3183 = vpop.f32.mrb[0].mxu0
        %v3184 = vadd.f32 0.0, %v3183
        %v3185 = vpop.f32.mrb[0].mxu0
        %v3186 = vpop.f32.mrb[0].mxu0
        %v3187 = vadd.f32 0.0, %v3186
        %v3188 = vpop.f32.mrb[0].mxu0
        %3189 = vmatprep.mubr.bf16.mxu0 0
        %3190 = vmatmul.mubr.bf16.gmra.mrb[0].mxu0 %v3138
        %v3191 = vpop.f32.mrb[0].mxu0
        %v3192 = vadd.f32 0.0, %v3191
        %v3193 = vpop.f32.mrb[0].mxu0
        %v3194 = vpop.f32.mrb[0].mxu0
        %v3195 = vadd.f32 0.0, %v3194
        %v3196 = vpop.f32.mrb[0].mxu0
        %3197 = vmatprep.mubr.bf16.mxu0 0
        %3198 = vmatmul.mubr.bf16.gmra.mrb[0].mxu0 %v3141
        %v3199 = vpop.f32.mrb[0].mxu0
        %v3200 = vadd.f32 0.0, %v3199
        %v3201 = vpop.f32.mrb[0].mxu0
        %v3202 = vpop.f32.mrb[0].mxu0
        %v3203 = vadd.f32 0.0, %v3202
        %v3204 = vpop.f32.mrb[0].mxu0
        %3205 = vmatprep.mubr.bf16.mxu0 0
        %3206 = vmatmul.mubr.bf16.gmra.mrb[0].mxu0 %v3144
        %v3207 = vpop.f32.mrb[0].mxu0
        %v3208 = vadd.f32 0.0, %v3207
        %v3209 = vpop.f32.mrb[0].mxu0
        %v3210 = vpop.f32.mrb[0].mxu0
        %v3211 = vadd.f32 0.0, %v3210
        %v3212 = vpop.f32.mrb[0].mxu0
        %3213 = vdwg.mxu0
        %v3214 = vadd.f32 %v2984, %v3184
        %v3215 = vadd.f32 %v2985, %v3187
        %v3216 = vadd.f32 %v2986, %v3192
        %v3217 = vadd.f32 %v2987, %v3195
        %v3218 = vadd.f32 %v2988, %v3200
        %v3219 = vadd.f32 %v2989, %v3203
        %v3220 = vadd.f32 %v2990, %v3208
        %v3221 = vadd.f32 %v2991, %v3211
        %v3222 = vld [vmem:[%s2873] sm:$0xe]
        %v3223 = vld [vmem:[%s2873 + $0x8] sm:$0xe]
        %v3224 = vld [vmem:[%s2873 + $0x10] sm:$0xe]
        %v3225 = vld [vmem:[%s2873 + $0x18] sm:$0xe]
        %v3226 = vld [vmem:[%s2873 + $0x20] sm:$0xe]
        %v3227 = vld [vmem:[%s2873 + $0x28] sm:$0xe]
        %v3228 = vld [vmem:[%s2873 + $0x30] sm:$0xe]
        %v3229 = vld [vmem:[%s2873 + $0x38] sm:$0xe]
        %v3246 = vrot.slane %v3222, 5
        %v3247 = vrot.slane %v3246, 4
        %v3248 = vrot.slane %v2993, 5
        %v3249 = vsel %vm711, %v3247, %v3248
        %v3250 = vrot.slane %v3223, 5
        %v3251 = vrot.slane %v3250, 4
        %v3252 = vrot.slane %v2995, 5
        %v3253 = vsel %vm711, %v3251, %v3252
        %v3254 = vrot.slane %v3224, 5
        %v3255 = vrot.slane %v3254, 4
        %v3256 = vrot.slane %v2997, 5
        %v3257 = vsel %vm711, %v3255, %v3256
        %v3258 = vrot.slane %v3225, 5
        %v3259 = vrot.slane %v3258, 4
        %v3260 = vrot.slane %v2999, 5
        %v3261 = vsel %vm711, %v3259, %v3260
        %v3262 = vrot.slane %v3226, 5
        %v3263 = vrot.slane %v3262, 4
        %v3264 = vrot.slane %v3001, 5
        %v3265 = vsel %vm711, %v3263, %v3264
        %v3266 = vrot.slane %v3227, 5
        %v3267 = vrot.slane %v3266, 4
        %v3268 = vrot.slane %v3003, 5
        %v3269 = vsel %vm711, %v3267, %v3268
        %v3270 = vrot.slane %v3228, 5
        %v3271 = vrot.slane %v3270, 4
        %v3272 = vrot.slane %v3005, 5
        %v3273 = vsel %vm711, %v3271, %v3272
        %v3274 = vrot.slane %v3229, 5
        %v3275 = vrot.slane %v3274, 4
        %v3276 = vrot.slane %v3007, 5
        %v3277 = vsel %vm711, %v3275, %v3276
        %s3278 = scalar_lea.vmem %s3, 34
        %v3279 = vld [vmem:[%s3278] sm:$0x3]
        %v3280 = vunpack.c.l.b16 %v3249
        %v3281 = vunpack.c.l.b16 %v3253
        %v3282 = vunpack.c.l.b16 %v3257
        %v3283 = vunpack.c.l.b16 %v3261
        %v3284 = vunpack.c.l.b16 %v3265
        %v3285 = vunpack.c.l.b16 %v3269
        %v3286 = vunpack.c.l.b16 %v3273
        %v3287 = vunpack.c.l.b16 %v3277
        %v3288 = vpack.c.b16 %v3281, %v3280
        %v3289 = vpack.c.b16 %v3283, %v3282
        %v3290 = vpack.c.b16 %v3285, %v3284
        %v3291 = vpack.c.b16 %v3287, %v3286
        %v3293 = vsel %vm503, %v3288, 0
        %v3296 = vsel %vm503, %v3289, 0
        %v3299 = vsel %vm503, %v3290, 0
        %v3302 = vsel %vm503, %v3291, 0
        %v3305 = vsel %vm516, %v3279, 0
        %3307 = vmatprep.subr.bf16.mxu0 0
        %3308 = vmatpush1.bf16.msra.mxu0 %v3305
        %3309 = vmatprep.subr.bf16.mxu0 0
        %3310 = vmatpush1.bf16.msra.mxu0 0
        %3311 = vmatprep.subr.bf16.mxu0 0
        %3312 = vmatpush1.bf16.msra.mxu0 0
        %3313 = vmatprep.subr.bf16.mxu0 0
        %3314 = vmatpush1.bf16.msra.mxu0 0
        %3315 = vmatprep.subr.bf16.mxu0 0
        %3316 = vmatpush1.bf16.msra.mxu0 0
        %3317 = vmatprep.subr.bf16.mxu0 0
        %3318 = vmatpush1.bf16.msra.mxu0 0
        %3319 = vmatprep.subr.bf16.mxu0 0
        %3320 = vmatpush1.bf16.msra.mxu0 0
        %3321 = vmatprep.subr.bf16.mxu0 0
        %3322 = vmatpush1.bf16.msra.mxu0 0
        %3323 = vmatprep.subr.bf16.mxu0 0
        %3324 = vmatpush1.bf16.msra.mxu0 0
        %3325 = vmatprep.subr.bf16.mxu0 0
        %3326 = vmatpush1.bf16.msra.mxu0 0
        %3327 = vmatprep.subr.bf16.mxu0 0
        %3328 = vmatpush1.bf16.msra.mxu0 0
        %3329 = vmatprep.subr.bf16.mxu0 0
        %3330 = vmatpush1.bf16.msra.mxu0 0
        %3331 = vmatprep.subr.bf16.mxu0 0
        %3332 = vmatpush1.bf16.msra.mxu0 0
        %3333 = vmatprep.subr.bf16.mxu0 0
        %3334 = vmatpush1.bf16.msra.mxu0 0
        %3335 = vmatprep.subr.bf16.mxu0 0
        %3336 = vmatpush1.bf16.msra.mxu0 0
        %3337 = vmatprep.subr.bf16.mxu0 0
        %3338 = vmatpush1.bf16.msra.mxu0 0
        %3339 = vmatprep.mubr.bf16.mxu0 0
        %3340 = vmatmul.mubr.bf16.gmra.mrb[0].mxu0 %v3293
        %v3341 = vpop.f32.mrb[0].mxu0
        %v3342 = vadd.f32 0.0, %v3341
        %v3343 = vpop.f32.mrb[0].mxu0
        %v3344 = vpop.f32.mrb[0].mxu0
        %v3345 = vadd.f32 0.0, %v3344
        %v3346 = vpop.f32.mrb[0].mxu0
        %3347 = vmatprep.mubr.bf16.mxu0 0
        %3348 = vmatmul.mubr.bf16.gmra.mrb[0].mxu0 %v3296
        %v3349 = vpop.f32.mrb[0].mxu0
        %v3350 = vadd.f32 0.0, %v3349
        %v3351 = vpop.f32.mrb[0].mxu0
        %v3352 = vpop.f32.mrb[0].mxu0
        %v3353 = vadd.f32 0.0, %v3352
        %v3354 = vpop.f32.mrb[0].mxu0
        %3355 = vmatprep.mubr.bf16.mxu0 0
        %3356 = vmatmul.mubr.bf16.gmra.mrb[0].mxu0 %v3299
        %v3357 = vpop.f32.mrb[0].mxu0
        %v3358 = vadd.f32 0.0, %v3357
        %v3359 = vpop.f32.mrb[0].mxu0
        %v3360 = vpop.f32.mrb[0].mxu0
        %v3361 = vadd.f32 0.0, %v3360
        %v3362 = vpop.f32.mrb[0].mxu0
        %3363 = vmatprep.mubr.bf16.mxu0 0
        %3364 = vmatmul.mubr.bf16.gmra.mrb[0].mxu0 %v3302
        %v3365 = vpop.f32.mrb[0].mxu0
        %v3366 = vadd.f32 0.0, %v3365
        %v3367 = vpop.f32.mrb[0].mxu0
        %v3368 = vpop.f32.mrb[0].mxu0
        %v3369 = vadd.f32 0.0, %v3368
        %v3370 = vpop.f32.mrb[0].mxu0
        %3371 = vdwg.mxu0
        %v3372 = vadd.f32 %v3214, %v3342
        %v3373 = vadd.f32 %v3215, %v3345
        %v3374 = vadd.f32 %v3216, %v3350
        %v3375 = vadd.f32 %v3217, %v3353
        %v3376 = vadd.f32 %v3218, %v3358
        %v3377 = vadd.f32 %v3219, %v3361
        %v3378 = vadd.f32 %v3220, %v3366
        %v3379 = vadd.f32 %v3221, %v3369
        %v3380 = vld [vmem:[%s345] sm:$0xf]
        %v3381 = vld [vmem:[%s345 + $0x8] sm:$0xf]
        %v3382 = vld [vmem:[%s345 + $0x10] sm:$0xf]
        %v3383 = vld [vmem:[%s345 + $0x18] sm:$0xf]
        %v3384 = vld [vmem:[%s345 + $0x20] sm:$0xf]
        %v3385 = vld [vmem:[%s345 + $0x28] sm:$0xf]
        %v3386 = vld [vmem:[%s345 + $0x30] sm:$0xf]
        %v3387 = vld [vmem:[%s345 + $0x38] sm:$0xf]
        %s3388 = scalar_lea.vmem %s3, 36
        %v3389 = vld [vmem:[%s3388] sm:$0x3]
        %v3398 = vunpack.c.l.b16 %v3380
        %v3399 = vunpack.c.l.b16 %v3381
        %v3400 = vunpack.c.l.b16 %v3382
        %v3401 = vunpack.c.l.b16 %v3383
        %v3402 = vunpack.c.l.b16 %v3384
        %v3403 = vunpack.c.l.b16 %v3385
        %v3404 = vunpack.c.l.b16 %v3386
        %v3405 = vunpack.c.l.b16 %v3387
        %v3406 = vpack.c.b16 %v3399, %v3398
        %v3407 = vpack.c.b16 %v3401, %v3400
        %v3408 = vpack.c.b16 %v3403, %v3402
        %v3409 = vpack.c.b16 %v3405, %v3404
        %v3411 = vsel %vm503, %v3406, 0
        %v3414 = vsel %vm503, %v3407, 0
        %v3417 = vsel %vm503, %v3408, 0
        %v3420 = vsel %vm503, %v3409, 0
        %v3423 = vsel %vm516, %v3389, 0
        %3425 = vmatprep.subr.bf16.mxu0 0
        %3426 = vmatpush1.bf16.msra.mxu0 %v3423
        %3427 = vmatprep.subr.bf16.mxu0 0
        %3428 = vmatpush1.bf16.msra.mxu0 0
        %3429 = vmatprep.subr.bf16.mxu0 0
        %3430 = vmatpush1.bf16.msra.mxu0 0
        %3431 = vmatprep.subr.bf16.mxu0 0
        %3432 = vmatpush1.bf16.msra.mxu0 0
        %3433 = vmatprep.subr.bf16.mxu0 0
        %3434 = vmatpush1.bf16.msra.mxu0 0
        %3435 = vmatprep.subr.bf16.mxu0 0
        %3436 = vmatpush1.bf16.msra.mxu0 0
        %3437 = vmatprep.subr.bf16.mxu0 0
        %3438 = vmatpush1.bf16.msra.mxu0 0
        %3439 = vmatprep.subr.bf16.mxu0 0
        %3440 = vmatpush1.bf16.msra.mxu0 0
        %3441 = vmatprep.subr.bf16.mxu0 0
        %3442 = vmatpush1.bf16.msra.mxu0 0
        %3443 = vmatprep.subr.bf16.mxu0 0
        %3444 = vmatpush1.bf16.msra.mxu0 0
        %3445 = vmatprep.subr.bf16.mxu0 0
        %3446 = vmatpush1.bf16.msra.mxu0 0
        %3447 = vmatprep.subr.bf16.mxu0 0
        %3448 = vmatpush1.bf16.msra.mxu0 0
        %3449 = vmatprep.subr.bf16.mxu0 0
        %3450 = vmatpush1.bf16.msra.mxu0 0
        %3451 = vmatprep.subr.bf16.mxu0 0
        %3452 = vmatpush1.bf16.msra.mxu0 0
        %3453 = vmatprep.subr.bf16.mxu0 0
        %3454 = vmatpush1.bf16.msra.mxu0 0
        %3455 = vmatprep.subr.bf16.mxu0 0
        %3456 = vmatpush1.bf16.msra.mxu0 0
        %3457 = vmatprep.mubr.bf16.mxu0 0
        %3458 = vmatmul.mubr.bf16.gmra.mrb[0].mxu0 %v3411
        %v3459 = vpop.f32.mrb[0].mxu0
        %v3460 = vadd.f32 0.0, %v3459
        %v3461 = vpop.f32.mrb[0].mxu0
        %v3462 = vpop.f32.mrb[0].mxu0
        %v3463 = vadd.f32 0.0, %v3462
        %v3464 = vpop.f32.mrb[0].mxu0
        %3465 = vmatprep.mubr.bf16.mxu0 0
        %3466 = vmatmul.mubr.bf16.gmra.mrb[0].mxu0 %v3414
        %v3467 = vpop.f32.mrb[0].mxu0
        %v3468 = vadd.f32 0.0, %v3467
        %v3469 = vpop.f32.mrb[0].mxu0
        %v3470 = vpop.f32.mrb[0].mxu0
        %v3471 = vadd.f32 0.0, %v3470
        %v3472 = vpop.f32.mrb[0].mxu0
        %3473 = vmatprep.mubr.bf16.mxu0 0
        %3474 = vmatmul.mubr.bf16.gmra.mrb[0].mxu0 %v3417
        %v3475 = vpop.f32.mrb[0].mxu0
        %v3476 = vadd.f32 0.0, %v3475
        %v3477 = vpop.f32.mrb[0].mxu0
        %v3478 = vpop.f32.mrb[0].mxu0
        %v3479 = vadd.f32 0.0, %v3478
        %v3480 = vpop.f32.mrb[0].mxu0
        %3481 = vmatprep.mubr.bf16.mxu0 0
        %3482 = vmatmul.mubr.bf16.gmra.mrb[0].mxu0 %v3420
        %v3483 = vpop.f32.mrb[0].mxu0
        %v3484 = vadd.f32 0.0, %v3483
        %v3485 = vpop.f32.mrb[0].mxu0
        %v3486 = vpop.f32.mrb[0].mxu0
        %v3487 = vadd.f32 0.0, %v3486
        %v3488 = vpop.f32.mrb[0].mxu0
        %3489 = vdwg.mxu0
        %v3490 = vadd.f32 %v3372, %v3460
        %v3491 = vadd.f32 %v3373, %v3463
        %v3492 = vadd.f32 %v3374, %v3468
        %v3493 = vadd.f32 %v3375, %v3471
        %v3494 = vadd.f32 %v3376, %v3476
        %v3495 = vadd.f32 %v3377, %v3479
        %v3496 = vadd.f32 %v3378, %v3484
        %v3497 = vadd.f32 %v3379, %v3487
        %v3498 = vld [vmem:[%s345] sm:$0xf]
        %v3499 = vld [vmem:[%s345 + $0x4] sm:$0x1]
        %v3500 = vld [vmem:[%s345 + $0x8] sm:$0xf]
        %v3501 = vld [vmem:[%s345 + $0xc] sm:$0x1]
        %v3502 = vld [vmem:[%s345 + $0x10] sm:$0xf]
        %v3503 = vld [vmem:[%s345 + $0x14] sm:$0x1]
        %v3504 = vld [vmem:[%s345 + $0x18] sm:$0xf]
        %v3505 = vld [vmem:[%s345 + $0x1c] sm:$0x1]
        %v3506 = vld [vmem:[%s345 + $0x20] sm:$0xf]
        %v3507 = vld [vmem:[%s345 + $0x24] sm:$0x1]
        %v3508 = vld [vmem:[%s345 + $0x28] sm:$0xf]
        %v3509 = vld [vmem:[%s345 + $0x2c] sm:$0x1]
        %v3510 = vld [vmem:[%s345 + $0x30] sm:$0xf]
        %v3511 = vld [vmem:[%s345 + $0x34] sm:$0x1]
        %v3512 = vld [vmem:[%s345 + $0x38] sm:$0xf]
        %v3513 = vld [vmem:[%s345 + $0x3c] sm:$0x1]
        %v3515 = vshrl.u32 %v3498, 16
        %v3517 = vrot.slane %v3515, 4
        %v3518 = vshll.u32 %v3498, 16
        %v3520 = vrot.slane %v3518, 5
        %v3521 = vor.u32 %v3517, %v3520
        %v3522 = vrot.slane %v3521, 4
        %v3524 = vshll.u32 %v3499, 16
        %v3526 = vrot.slane %v3524, 5
        %v3527 = vsel %vm376, %v3522, %v3526
        %v3529 = vshrl.u32 %v3500, 16
        %v3531 = vrot.slane %v3529, 4
        %v3532 = vshll.u32 %v3500, 16
        %v3534 = vrot.slane %v3532, 5
        %v3535 = vor.u32 %v3531, %v3534
        %v3536 = vrot.slane %v3535, 4
        %v3538 = vshll.u32 %v3501, 16
        %v3540 = vrot.slane %v3538, 5
        %v3541 = vsel %vm376, %v3536, %v3540
        %v3543 = vshrl.u32 %v3502, 16
        %v3545 = vrot.slane %v3543, 4
        %v3546 = vshll.u32 %v3502, 16
        %v3548 = vrot.slane %v3546, 5
        %v3549 = vor.u32 %v3545, %v3548
        %v3550 = vrot.slane %v3549, 4
        %v3552 = vshll.u32 %v3503, 16
        %v3554 = vrot.slane %v3552, 5
        %v3555 = vsel %vm376, %v3550, %v3554
        %v3557 = vshrl.u32 %v3504, 16
        %v3559 = vrot.slane %v3557, 4
        %v3560 = vshll.u32 %v3504, 16
        %v3562 = vrot.slane %v3560, 5
        %v3563 = vor.u32 %v3559, %v3562
        %v3564 = vrot.slane %v3563, 4
        %v3566 = vshll.u32 %v3505, 16
        %v3568 = vrot.slane %v3566, 5
        %v3569 = vsel %vm376, %v3564, %v3568
        %v3571 = vshrl.u32 %v3506, 16
        %v3573 = vrot.slane %v3571, 4
        %v3574 = vshll.u32 %v3506, 16
        %v3576 = vrot.slane %v3574, 5
        %v3577 = vor.u32 %v3573, %v3576
        %v3578 = vrot.slane %v3577, 4
        %v3580 = vshll.u32 %v3507, 16
        %v3582 = vrot.slane %v3580, 5
        %v3583 = vsel %vm376, %v3578, %v3582
        %v3585 = vshrl.u32 %v3508, 16
        %v3587 = vrot.slane %v3585, 4
        %v3588 = vshll.u32 %v3508, 16
        %v3590 = vrot.slane %v3588, 5
        %v3591 = vor.u32 %v3587, %v3590
        %v3592 = vrot.slane %v3591, 4
        %v3594 = vshll.u32 %v3509, 16
        %v3596 = vrot.slane %v3594, 5
        %v3597 = vsel %vm376, %v3592, %v3596
        %v3599 = vshrl.u32 %v3510, 16
        %v3601 = vrot.slane %v3599, 4
        %v3602 = vshll.u32 %v3510, 16
        %v3604 = vrot.slane %v3602, 5
        %v3605 = vor.u32 %v3601, %v3604
        %v3606 = vrot.slane %v3605, 4
        %v3608 = vshll.u32 %v3511, 16
        %v3610 = vrot.slane %v3608, 5
        %v3611 = vsel %vm376, %v3606, %v3610
        %v3613 = vshrl.u32 %v3512, 16
        %v3615 = vrot.slane %v3613, 4
        %v3616 = vshll.u32 %v3512, 16
        %v3618 = vrot.slane %v3616, 5
        %v3619 = vor.u32 %v3615, %v3618
        %v3620 = vrot.slane %v3619, 4
        %v3622 = vshll.u32 %v3513, 16
        %v3624 = vrot.slane %v3622, 5
        %v3625 = vsel %vm376, %v3620, %v3624
        %s3626 = scalar_lea.vmem %s3, 38
        %v3627 = vld [vmem:[%s3626] sm:$0x3]
        %v3628 = vunpack.c.l.b16 %v3527
        %v3629 = vunpack.c.l.b16 %v3541
        %v3630 = vunpack.c.l.b16 %v3555
        %v3631 = vunpack.c.l.b16 %v3569
        %v3632 = vunpack.c.l.b16 %v3583
        %v3633 = vunpack.c.l.b16 %v3597
        %v3634 = vunpack.c.l.b16 %v3611
        %v3635 = vunpack.c.l.b16 %v3625
        %v3636 = vpack.c.b16 %v3629, %v3628
        %v3637 = vpack.c.b16 %v3631, %v3630
        %v3638 = vpack.c.b16 %v3633, %v3632
        %v3639 = vpack.c.b16 %v3635, %v3634
        %v3641 = vsel %vm503, %v3636, 0
        %v3644 = vsel %vm503, %v3637, 0
        %v3647 = vsel %vm503, %v3638, 0
        %v3650 = vsel %vm503, %v3639, 0
        %v3653 = vsel %vm516, %v3627, 0
        %3655 = vmatprep.subr.bf16.mxu0 0
        %3656 = vmatpush1.bf16.msra.mxu0 %v3653
        %3657 = vmatprep.subr.bf16.mxu0 0
        %3658 = vmatpush1.bf16.msra.mxu0 0
        %3659 = vmatprep.subr.bf16.mxu0 0
        %3660 = vmatpush1.bf16.msra.mxu0 0
        %3661 = vmatprep.subr.bf16.mxu0 0
        %3662 = vmatpush1.bf16.msra.mxu0 0
        %3663 = vmatprep.subr.bf16.mxu0 0
        %3664 = vmatpush1.bf16.msra.mxu0 0
        %3665 = vmatprep.subr.bf16.mxu0 0
        %3666 = vmatpush1.bf16.msra.mxu0 0
        %3667 = vmatprep.subr.bf16.mxu0 0
        %3668 = vmatpush1.bf16.msra.mxu0 0
        %3669 = vmatprep.subr.bf16.mxu0 0
        %3670 = vmatpush1.bf16.msra.mxu0 0
        %3671 = vmatprep.subr.bf16.mxu0 0
        %3672 = vmatpush1.bf16.msra.mxu0 0
        %3673 = vmatprep.subr.bf16.mxu0 0
        %3674 = vmatpush1.bf16.msra.mxu0 0
        %3675 = vmatprep.subr.bf16.mxu0 0
        %3676 = vmatpush1.bf16.msra.mxu0 0
        %3677 = vmatprep.subr.bf16.mxu0 0
        %3678 = vmatpush1.bf16.msra.mxu0 0
        %3679 = vmatprep.subr.bf16.mxu0 0
        %3680 = vmatpush1.bf16.msra.mxu0 0
        %3681 = vmatprep.subr.bf16.mxu0 0
        %3682 = vmatpush1.bf16.msra.mxu0 0
        %3683 = vmatprep.subr.bf16.mxu0 0
        %3684 = vmatpush1.bf16.msra.mxu0 0
        %3685 = vmatprep.subr.bf16.mxu0 0
        %3686 = vmatpush1.bf16.msra.mxu0 0
        %3687 = vmatprep.mubr.bf16.mxu0 0
        %3688 = vmatmul.mubr.bf16.gmra.mrb[0].mxu0 %v3641
        %v3689 = vpop.f32.mrb[0].mxu0
        %v3690 = vadd.f32 0.0, %v3689
        %v3691 = vpop.f32.mrb[0].mxu0
        %v3692 = vpop.f32.mrb[0].mxu0
        %v3693 = vadd.f32 0.0, %v3692
        %v3694 = vpop.f32.mrb[0].mxu0
        %3695 = vmatprep.mubr.bf16.mxu0 0
        %3696 = vmatmul.mubr.bf16.gmra.mrb[0].mxu0 %v3644
        %v3697 = vpop.f32.mrb[0].mxu0
        %v3698 = vadd.f32 0.0, %v3697
        %v3699 = vpop.f32.mrb[0].mxu0
        %v3700 = vpop.f32.mrb[0].mxu0
        %v3701 = vadd.f32 0.0, %v3700
        %v3702 = vpop.f32.mrb[0].mxu0
        %3703 = vmatprep.mubr.bf16.mxu0 0
        %3704 = vmatmul.mubr.bf16.gmra.mrb[0].mxu0 %v3647
        %v3705 = vpop.f32.mrb[0].mxu0
        %v3706 = vadd.f32 0.0, %v3705
        %v3707 = vpop.f32.mrb[0].mxu0
        %v3708 = vpop.f32.mrb[0].mxu0
        %v3709 = vadd.f32 0.0, %v3708
        %v3710 = vpop.f32.mrb[0].mxu0
        %3711 = vmatprep.mubr.bf16.mxu0 0
        %3712 = vmatmul.mubr.bf16.gmra.mrb[0].mxu0 %v3650
        %v3713 = vpop.f32.mrb[0].mxu0
        %v3714 = vadd.f32 0.0, %v3713
        %v3715 = vpop.f32.mrb[0].mxu0
        %v3716 = vpop.f32.mrb[0].mxu0
        %v3717 = vadd.f32 0.0, %v3716
        %v3718 = vpop.f32.mrb[0].mxu0
        %3719 = vdwg.mxu0
        %v3720 = vadd.f32 %v3490, %v3690
        %v3721 = vadd.f32 %v3491, %v3693
        %v3722 = vadd.f32 %v3492, %v3698
        %v3723 = vadd.f32 %v3493, %v3701
        %v3724 = vadd.f32 %v3494, %v3706
        %v3725 = vadd.f32 %v3495, %v3709
        %v3726 = vadd.f32 %v3496, %v3714
        %v3727 = vadd.f32 %v3497, %v3717
        %v3728 = vld [vmem:[%s345] sm:$0xe]
        %v3729 = vld [vmem:[%s345 + $0x8] sm:$0xe]
        %v3730 = vld [vmem:[%s345 + $0x10] sm:$0xe]
        %v3731 = vld [vmem:[%s345 + $0x18] sm:$0xe]
        %v3732 = vld [vmem:[%s345 + $0x20] sm:$0xe]
        %v3733 = vld [vmem:[%s345 + $0x28] sm:$0xe]
        %v3734 = vld [vmem:[%s345 + $0x30] sm:$0xe]
        %v3735 = vld [vmem:[%s345 + $0x38] sm:$0xe]
        %v3752 = vrot.slane %v3728, 5
        %v3753 = vrot.slane %v3752, 4
        %v3754 = vrot.slane %v3499, 5
        %v3755 = vsel %vm711, %v3753, %v3754
        %v3756 = vrot.slane %v3729, 5
        %v3757 = vrot.slane %v3756, 4
        %v3758 = vrot.slane %v3501, 5
        %v3759 = vsel %vm711, %v3757, %v3758
        %v3760 = vrot.slane %v3730, 5
        %v3761 = vrot.slane %v3760, 4
        %v3762 = vrot.slane %v3503, 5
        %v3763 = vsel %vm711, %v3761, %v3762
        %v3764 = vrot.slane %v3731, 5
        %v3765 = vrot.slane %v3764, 4
        %v3766 = vrot.slane %v3505, 5
        %v3767 = vsel %vm711, %v3765, %v3766
        %v3768 = vrot.slane %v3732, 5
        %v3769 = vrot.slane %v3768, 4
        %v3770 = vrot.slane %v3507, 5
        %v3771 = vsel %vm711, %v3769, %v3770
        %v3772 = vrot.slane %v3733, 5
        %v3773 = vrot.slane %v3772, 4
        %v3774 = vrot.slane %v3509, 5
        %v3775 = vsel %vm711, %v3773, %v3774
        %v3776 = vrot.slane %v3734, 5
        %v3777 = vrot.slane %v3776, 4
        %v3778 = vrot.slane %v3511, 5
        %v3779 = vsel %vm711, %v3777, %v3778
        %v3780 = vrot.slane %v3735, 5
        %v3781 = vrot.slane %v3780, 4
        %v3782 = vrot.slane %v3513, 5
        %v3783 = vsel %vm711, %v3781, %v3782
        %s3784 = scalar_lea.vmem %s3, 40
        %v3785 = vld [vmem:[%s3784] sm:$0x3]
        %v3786 = vunpack.c.l.b16 %v3755
        %v3787 = vunpack.c.l.b16 %v3759
        %v3788 = vunpack.c.l.b16 %v3763
        %v3789 = vunpack.c.l.b16 %v3767
        %v3790 = vunpack.c.l.b16 %v3771
        %v3791 = vunpack.c.l.b16 %v3775
        %v3792 = vunpack.c.l.b16 %v3779
        %v3793 = vunpack.c.l.b16 %v3783
        %v3794 = vpack.c.b16 %v3787, %v3786
        %v3795 = vpack.c.b16 %v3789, %v3788
        %v3796 = vpack.c.b16 %v3791, %v3790
        %v3797 = vpack.c.b16 %v3793, %v3792
        %v3799 = vsel %vm503, %v3794, 0
        %v3802 = vsel %vm503, %v3795, 0
        %v3805 = vsel %vm503, %v3796, 0
        %v3808 = vsel %vm503, %v3797, 0
        %v3811 = vsel %vm516, %v3785, 0
        %3813 = vmatprep.subr.bf16.mxu0 0
        %3814 = vmatpush1.bf16.msra.mxu0 %v3811
        %3815 = vmatprep.subr.bf16.mxu0 0
        %3816 = vmatpush1.bf16.msra.mxu0 0
        %3817 = vmatprep.subr.bf16.mxu0 0
        %3818 = vmatpush1.bf16.msra.mxu0 0
        %3819 = vmatprep.subr.bf16.mxu0 0
        %3820 = vmatpush1.bf16.msra.mxu0 0
        %3821 = vmatprep.subr.bf16.mxu0 0
        %3822 = vmatpush1.bf16.msra.mxu0 0
        %3823 = vmatprep.subr.bf16.mxu0 0
        %3824 = vmatpush1.bf16.msra.mxu0 0
        %3825 = vmatprep.subr.bf16.mxu0 0
        %3826 = vmatpush1.bf16.msra.mxu0 0
        %3827 = vmatprep.subr.bf16.mxu0 0
        %3828 = vmatpush1.bf16.msra.mxu0 0
        %3829 = vmatprep.subr.bf16.mxu0 0
        %3830 = vmatpush1.bf16.msra.mxu0 0
        %3831 = vmatprep.subr.bf16.mxu0 0
        %3832 = vmatpush1.bf16.msra.mxu0 0
        %3833 = vmatprep.subr.bf16.mxu0 0
        %3834 = vmatpush1.bf16.msra.mxu0 0
        %3835 = vmatprep.subr.bf16.mxu0 0
        %3836 = vmatpush1.bf16.msra.mxu0 0
        %3837 = vmatprep.subr.bf16.mxu0 0
        %3838 = vmatpush1.bf16.msra.mxu0 0
        %3839 = vmatprep.subr.bf16.mxu0 0
        %3840 = vmatpush1.bf16.msra.mxu0 0
        %3841 = vmatprep.subr.bf16.mxu0 0
        %3842 = vmatpush1.bf16.msra.mxu0 0
        %3843 = vmatprep.subr.bf16.mxu0 0
        %3844 = vmatpush1.bf16.msra.mxu0 0
        %3845 = vmatprep.mubr.bf16.mxu0 0
        %3846 = vmatmul.mubr.bf16.gmra.mrb[0].mxu0 %v3799
        %v3847 = vpop.f32.mrb[0].mxu0
        %v3848 = vadd.f32 0.0, %v3847
        %v3849 = vpop.f32.mrb[0].mxu0
        %v3850 = vpop.f32.mrb[0].mxu0
        %v3851 = vadd.f32 0.0, %v3850
        %v3852 = vpop.f32.mrb[0].mxu0
        %3853 = vmatprep.mubr.bf16.mxu0 0
        %3854 = vmatmul.mubr.bf16.gmra.mrb[0].mxu0 %v3802
        %v3855 = vpop.f32.mrb[0].mxu0
        %v3856 = vadd.f32 0.0, %v3855
        %v3857 = vpop.f32.mrb[0].mxu0
        %v3858 = vpop.f32.mrb[0].mxu0
        %v3859 = vadd.f32 0.0, %v3858
        %v3860 = vpop.f32.mrb[0].mxu0
        %3861 = vmatprep.mubr.bf16.mxu0 0
        %3862 = vmatmul.mubr.bf16.gmra.mrb[0].mxu0 %v3805
        %v3863 = vpop.f32.mrb[0].mxu0
        %v3864 = vadd.f32 0.0, %v3863
        %v3865 = vpop.f32.mrb[0].mxu0
        %v3866 = vpop.f32.mrb[0].mxu0
        %v3867 = vadd.f32 0.0, %v3866
        %v3868 = vpop.f32.mrb[0].mxu0
        %3869 = vmatprep.mubr.bf16.mxu0 0
        %3870 = vmatmul.mubr.bf16.gmra.mrb[0].mxu0 %v3808
        %v3871 = vpop.f32.mrb[0].mxu0
        %v3872 = vadd.f32 0.0, %v3871
        %v3873 = vpop.f32.mrb[0].mxu0
        %v3874 = vpop.f32.mrb[0].mxu0
        %v3875 = vadd.f32 0.0, %v3874
        %v3876 = vpop.f32.mrb[0].mxu0
        %3877 = vdwg.mxu0
        %v3878 = vadd.f32 %v3720, %v3848
        %v3879 = vadd.f32 %v3721, %v3851
        %v3880 = vadd.f32 %v3722, %v3856
        %v3881 = vadd.f32 %v3723, %v3859
        %v3882 = vadd.f32 %v3724, %v3864
        %v3883 = vadd.f32 %v3725, %v3867
        %v3884 = vadd.f32 %v3726, %v3872
        %v3885 = vadd.f32 %v3727, %v3875
        %s3886 = scalar_lea.vmem %s345, 8
        %v3887 = vld [vmem:[%s3886] sm:$0xf]
        %v3888 = vld [vmem:[%s3886 + $0x8] sm:$0xf]
        %v3889 = vld [vmem:[%s3886 + $0x10] sm:$0xf]
        %v3890 = vld [vmem:[%s3886 + $0x18] sm:$0xf]
        %v3891 = vld [vmem:[%s3886 + $0x20] sm:$0xf]
        %v3892 = vld [vmem:[%s3886 + $0x28] sm:$0xf]
        %v3893 = vld [vmem:[%s3886 + $0x30] sm:$0xf]
        %v3894 = vld [vmem:[%s3886 + $0x38] sm:$0xf]
        %s3895 = scalar_lea.vmem %s3, 42
        %v3896 = vld [vmem:[%s3895] sm:$0x3]
        %v3905 = vunpack.c.l.b16 %v3887
        %v3906 = vunpack.c.l.b16 %v3888
        %v3907 = vunpack.c.l.b16 %v3889
        %v3908 = vunpack.c.l.b16 %v3890
        %v3909 = vunpack.c.l.b16 %v3891
        %v3910 = vunpack.c.l.b16 %v3892
        %v3911 = vunpack.c.l.b16 %v3893
        %v3912 = vunpack.c.l.b16 %v3894
        %v3913 = vpack.c.b16 %v3906, %v3905
        %v3914 = vpack.c.b16 %v3908, %v3907
        %v3915 = vpack.c.b16 %v3910, %v3909
        %v3916 = vpack.c.b16 %v3912, %v3911
        %v3918 = vsel %vm503, %v3913, 0
        %v3921 = vsel %vm503, %v3914, 0
        %v3924 = vsel %vm503, %v3915, 0
        %v3927 = vsel %vm503, %v3916, 0
        %v3930 = vsel %vm516, %v3896, 0
        %3932 = vmatprep.subr.bf16.mxu0 0
        %3933 = vmatpush1.bf16.msra.mxu0 %v3930
        %3934 = vmatprep.subr.bf16.mxu0 0
        %3935 = vmatpush1.bf16.msra.mxu0 0
        %3936 = vmatprep.subr.bf16.mxu0 0
        %3937 = vmatpush1.bf16.msra.mxu0 0
        %3938 = vmatprep.subr.bf16.mxu0 0
        %3939 = vmatpush1.bf16.msra.mxu0 0
        %3940 = vmatprep.subr.bf16.mxu0 0
        %3941 = vmatpush1.bf16.msra.mxu0 0
        %3942 = vmatprep.subr.bf16.mxu0 0
        %3943 = vmatpush1.bf16.msra.mxu0 0
        %3944 = vmatprep.subr.bf16.mxu0 0
        %3945 = vmatpush1.bf16.msra.mxu0 0
        %3946 = vmatprep.subr.bf16.mxu0 0
        %3947 = vmatpush1.bf16.msra.mxu0 0
        %3948 = vmatprep.subr.bf16.mxu0 0
        %3949 = vmatpush1.bf16.msra.mxu0 0
        %3950 = vmatprep.subr.bf16.mxu0 0
        %3951 = vmatpush1.bf16.msra.mxu0 0
        %3952 = vmatprep.subr.bf16.mxu0 0
        %3953 = vmatpush1.bf16.msra.mxu0 0
        %3954 = vmatprep.subr.bf16.mxu0 0
        %3955 = vmatpush1.bf16.msra.mxu0 0
        %3956 = vmatprep.subr.bf16.mxu0 0
        %3957 = vmatpush1.bf16.msra.mxu0 0
        %3958 = vmatprep.subr.bf16.mxu0 0
        %3959 = vmatpush1.bf16.msra.mxu0 0
        %3960 = vmatprep.subr.bf16.mxu0 0
        %3961 = vmatpush1.bf16.msra.mxu0 0
        %3962 = vmatprep.subr.bf16.mxu0 0
        %3963 = vmatpush1.bf16.msra.mxu0 0
        %3964 = vmatprep.mubr.bf16.mxu0 0
        %3965 = vmatmul.mubr.bf16.gmra.mrb[0].mxu0 %v3918
        %v3966 = vpop.f32.mrb[0].mxu0
        %v3967 = vadd.f32 0.0, %v3966
        %v3968 = vpop.f32.mrb[0].mxu0
        %v3969 = vpop.f32.mrb[0].mxu0
        %v3970 = vadd.f32 0.0, %v3969
        %v3971 = vpop.f32.mrb[0].mxu0
        %3972 = vmatprep.mubr.bf16.mxu0 0
        %3973 = vmatmul.mubr.bf16.gmra.mrb[0].mxu0 %v3921
        %v3974 = vpop.f32.mrb[0].mxu0
        %v3975 = vadd.f32 0.0, %v3974
        %v3976 = vpop.f32.mrb[0].mxu0
        %v3977 = vpop.f32.mrb[0].mxu0
        %v3978 = vadd.f32 0.0, %v3977
        %v3979 = vpop.f32.mrb[0].mxu0
        %3980 = vmatprep.mubr.bf16.mxu0 0
        %3981 = vmatmul.mubr.bf16.gmra.mrb[0].mxu0 %v3924
        %v3982 = vpop.f32.mrb[0].mxu0
        %v3983 = vadd.f32 0.0, %v3982
        %v3984 = vpop.f32.mrb[0].mxu0
        %v3985 = vpop.f32.mrb[0].mxu0
        %v3986 = vadd.f32 0.0, %v3985
        %v3987 = vpop.f32.mrb[0].mxu0
        %3988 = vmatprep.mubr.bf16.mxu0 0
        %3989 = vmatmul.mubr.bf16.gmra.mrb[0].mxu0 %v3927
        %v3990 = vpop.f32.mrb[0].mxu0
        %v3991 = vadd.f32 0.0, %v3990
        %v3992 = vpop.f32.mrb[0].mxu0
        %v3993 = vpop.f32.mrb[0].mxu0
        %v3994 = vadd.f32 0.0, %v3993
        %v3995 = vpop.f32.mrb[0].mxu0
        %3996 = vdwg.mxu0
        %v3997 = vadd.f32 %v3878, %v3967
        %v3998 = vadd.f32 %v3879, %v3970
        %v3999 = vadd.f32 %v3880, %v3975
        %v4000 = vadd.f32 %v3881, %v3978
        %v4001 = vadd.f32 %v3882, %v3983
        %v4002 = vadd.f32 %v3883, %v3986
        %v4003 = vadd.f32 %v3884, %v3991
        %v4004 = vadd.f32 %v3885, %v3994
        %v4005 = vld [vmem:[%s3886] sm:$0xf]
        %v4006 = vld [vmem:[%s3886 + $0x4] sm:$0x1]
        %v4007 = vld [vmem:[%s3886 + $0x8] sm:$0xf]
        %v4008 = vld [vmem:[%s3886 + $0xc] sm:$0x1]
        %v4009 = vld [vmem:[%s3886 + $0x10] sm:$0xf]
        %v4010 = vld [vmem:[%s3886 + $0x14] sm:$0x1]
        %v4011 = vld [vmem:[%s3886 + $0x18] sm:$0xf]
        %v4012 = vld [vmem:[%s3886 + $0x1c] sm:$0x1]
        %v4013 = vld [vmem:[%s3886 + $0x20] sm:$0xf]
        %v4014 = vld [vmem:[%s3886 + $0x24] sm:$0x1]
        %v4015 = vld [vmem:[%s3886 + $0x28] sm:$0xf]
        %v4016 = vld [vmem:[%s3886 + $0x2c] sm:$0x1]
        %v4017 = vld [vmem:[%s3886 + $0x30] sm:$0xf]
        %v4018 = vld [vmem:[%s3886 + $0x34] sm:$0x1]
        %v4019 = vld [vmem:[%s3886 + $0x38] sm:$0xf]
        %v4020 = vld [vmem:[%s3886 + $0x3c] sm:$0x1]
        %v4022 = vshrl.u32 %v4005, 16
        %v4024 = vrot.slane %v4022, 4
        %v4025 = vshll.u32 %v4005, 16
        %v4027 = vrot.slane %v4025, 5
        %v4028 = vor.u32 %v4024, %v4027
        %v4029 = vrot.slane %v4028, 4
        %v4031 = vshll.u32 %v4006, 16
        %v4033 = vrot.slane %v4031, 5
        %v4034 = vsel %vm376, %v4029, %v4033
        %v4036 = vshrl.u32 %v4007, 16
        %v4038 = vrot.slane %v4036, 4
        %v4039 = vshll.u32 %v4007, 16
        %v4041 = vrot.slane %v4039, 5
        %v4042 = vor.u32 %v4038, %v4041
        %v4043 = vrot.slane %v4042, 4
        %v4045 = vshll.u32 %v4008, 16
        %v4047 = vrot.slane %v4045, 5
        %v4048 = vsel %vm376, %v4043, %v4047
        %v4050 = vshrl.u32 %v4009, 16
        %v4052 = vrot.slane %v4050, 4
        %v4053 = vshll.u32 %v4009, 16
        %v4055 = vrot.slane %v4053, 5
        %v4056 = vor.u32 %v4052, %v4055
        %v4057 = vrot.slane %v4056, 4
        %v4059 = vshll.u32 %v4010, 16
        %v4061 = vrot.slane %v4059, 5
        %v4062 = vsel %vm376, %v4057, %v4061
        %v4064 = vshrl.u32 %v4011, 16
        %v4066 = vrot.slane %v4064, 4
        %v4067 = vshll.u32 %v4011, 16
        %v4069 = vrot.slane %v4067, 5
        %v4070 = vor.u32 %v4066, %v4069
        %v4071 = vrot.slane %v4070, 4
        %v4073 = vshll.u32 %v4012, 16
        %v4075 = vrot.slane %v4073, 5
        %v4076 = vsel %vm376, %v4071, %v4075
        %v4078 = vshrl.u32 %v4013, 16
        %v4080 = vrot.slane %v4078, 4
        %v4081 = vshll.u32 %v4013, 16
        %v4083 = vrot.slane %v4081, 5
        %v4084 = vor.u32 %v4080, %v4083
        %v4085 = vrot.slane %v4084, 4
        %v4087 = vshll.u32 %v4014, 16
        %v4089 = vrot.slane %v4087, 5
        %v4090 = vsel %vm376, %v4085, %v4089
        %v4092 = vshrl.u32 %v4015, 16
        %v4094 = vrot.slane %v4092, 4
        %v4095 = vshll.u32 %v4015, 16
        %v4097 = vrot.slane %v4095, 5
        %v4098 = vor.u32 %v4094, %v4097
        %v4099 = vrot.slane %v4098, 4
        %v4101 = vshll.u32 %v4016, 16
        %v4103 = vrot.slane %v4101, 5
        %v4104 = vsel %vm376, %v4099, %v4103
        %v4106 = vshrl.u32 %v4017, 16
        %v4108 = vrot.slane %v4106, 4
        %v4109 = vshll.u32 %v4017, 16
        %v4111 = vrot.slane %v4109, 5
        %v4112 = vor.u32 %v4108, %v4111
        %v4113 = vrot.slane %v4112, 4
        %v4115 = vshll.u32 %v4018, 16
        %v4117 = vrot.slane %v4115, 5
        %v4118 = vsel %vm376, %v4113, %v4117
        %v4120 = vshrl.u32 %v4019, 16
        %v4122 = vrot.slane %v4120, 4
        %v4123 = vshll.u32 %v4019, 16
        %v4125 = vrot.slane %v4123, 5
        %v4126 = vor.u32 %v4122, %v4125
        %v4127 = vrot.slane %v4126, 4
        %v4129 = vshll.u32 %v4020, 16
        %v4131 = vrot.slane %v4129, 5
        %v4132 = vsel %vm376, %v4127, %v4131
        %s4133 = scalar_lea.vmem %s3, 44
        %v4134 = vld [vmem:[%s4133] sm:$0x3]
        %v4135 = vunpack.c.l.b16 %v4034
        %v4136 = vunpack.c.l.b16 %v4048
        %v4137 = vunpack.c.l.b16 %v4062
        %v4138 = vunpack.c.l.b16 %v4076
        %v4139 = vunpack.c.l.b16 %v4090
        %v4140 = vunpack.c.l.b16 %v4104
        %v4141 = vunpack.c.l.b16 %v4118
        %v4142 = vunpack.c.l.b16 %v4132
        %v4143 = vpack.c.b16 %v4136, %v4135
        %v4144 = vpack.c.b16 %v4138, %v4137
        %v4145 = vpack.c.b16 %v4140, %v4139
        %v4146 = vpack.c.b16 %v4142, %v4141
        %v4148 = vsel %vm503, %v4143, 0
        %v4151 = vsel %vm503, %v4144, 0
        %v4154 = vsel %vm503, %v4145, 0
        %v4157 = vsel %vm503, %v4146, 0
        %v4160 = vsel %vm516, %v4134, 0
        %4162 = vmatprep.subr.bf16.mxu0 0
        %4163 = vmatpush1.bf16.msra.mxu0 %v4160
        %4164 = vmatprep.subr.bf16.mxu0 0
        %4165 = vmatpush1.bf16.msra.mxu0 0
        %4166 = vmatprep.subr.bf16.mxu0 0
        %4167 = vmatpush1.bf16.msra.mxu0 0
        %4168 = vmatprep.subr.bf16.mxu0 0
        %4169 = vmatpush1.bf16.msra.mxu0 0
        %4170 = vmatprep.subr.bf16.mxu0 0
        %4171 = vmatpush1.bf16.msra.mxu0 0
        %4172 = vmatprep.subr.bf16.mxu0 0
        %4173 = vmatpush1.bf16.msra.mxu0 0
        %4174 = vmatprep.subr.bf16.mxu0 0
        %4175 = vmatpush1.bf16.msra.mxu0 0
        %4176 = vmatprep.subr.bf16.mxu0 0
        %4177 = vmatpush1.bf16.msra.mxu0 0
        %4178 = vmatprep.subr.bf16.mxu0 0
        %4179 = vmatpush1.bf16.msra.mxu0 0
        %4180 = vmatprep.subr.bf16.mxu0 0
        %4181 = vmatpush1.bf16.msra.mxu0 0
        %4182 = vmatprep.subr.bf16.mxu0 0
        %4183 = vmatpush1.bf16.msra.mxu0 0
        %4184 = vmatprep.subr.bf16.mxu0 0
        %4185 = vmatpush1.bf16.msra.mxu0 0
        %4186 = vmatprep.subr.bf16.mxu0 0
        %4187 = vmatpush1.bf16.msra.mxu0 0
        %4188 = vmatprep.subr.bf16.mxu0 0
        %4189 = vmatpush1.bf16.msra.mxu0 0
        %4190 = vmatprep.subr.bf16.mxu0 0
        %4191 = vmatpush1.bf16.msra.mxu0 0
        %4192 = vmatprep.subr.bf16.mxu0 0
        %4193 = vmatpush1.bf16.msra.mxu0 0
        %4194 = vmatprep.mubr.bf16.mxu0 0
        %4195 = vmatmul.mubr.bf16.gmra.mrb[0].mxu0 %v4148
        %v4196 = vpop.f32.mrb[0].mxu0
        %v4197 = vadd.f32 0.0, %v4196
        %v4198 = vpop.f32.mrb[0].mxu0
        %v4199 = vpop.f32.mrb[0].mxu0
        %v4200 = vadd.f32 0.0, %v4199
        %v4201 = vpop.f32.mrb[0].mxu0
        %4202 = vmatprep.mubr.bf16.mxu0 0
        %4203 = vmatmul.mubr.bf16.gmra.mrb[0].mxu0 %v4151
        %v4204 = vpop.f32.mrb[0].mxu0
        %v4205 = vadd.f32 0.0, %v4204
        %v4206 = vpop.f32.mrb[0].mxu0
        %v4207 = vpop.f32.mrb[0].mxu0
        %v4208 = vadd.f32 0.0, %v4207
        %v4209 = vpop.f32.mrb[0].mxu0
        %4210 = vmatprep.mubr.bf16.mxu0 0
        %4211 = vmatmul.mubr.bf16.gmra.mrb[0].mxu0 %v4154
        %v4212 = vpop.f32.mrb[0].mxu0
        %v4213 = vadd.f32 0.0, %v4212
        %v4214 = vpop.f32.mrb[0].mxu0
        %v4215 = vpop.f32.mrb[0].mxu0
        %v4216 = vadd.f32 0.0, %v4215
        %v4217 = vpop.f32.mrb[0].mxu0
        %4218 = vmatprep.mubr.bf16.mxu0 0
        %4219 = vmatmul.mubr.bf16.gmra.mrb[0].mxu0 %v4157
        %v4220 = vpop.f32.mrb[0].mxu0
        %v4221 = vadd.f32 0.0, %v4220
        %v4222 = vpop.f32.mrb[0].mxu0
        %v4223 = vpop.f32.mrb[0].mxu0
        %v4224 = vadd.f32 0.0, %v4223
        %v4225 = vpop.f32.mrb[0].mxu0
        %4226 = vdwg.mxu0
        %v4227 = vadd.f32 %v3997, %v4197
        %v4228 = vadd.f32 %v3998, %v4200
        %v4229 = vadd.f32 %v3999, %v4205
        %v4230 = vadd.f32 %v4000, %v4208
        %v4231 = vadd.f32 %v4001, %v4213
        %v4232 = vadd.f32 %v4002, %v4216
        %v4233 = vadd.f32 %v4003, %v4221
        %v4234 = vadd.f32 %v4004, %v4224
        %v4235 = vld [vmem:[%s3886] sm:$0xe]
        %v4236 = vld [vmem:[%s3886 + $0x8] sm:$0xe]
        %v4237 = vld [vmem:[%s3886 + $0x10] sm:$0xe]
        %v4238 = vld [vmem:[%s3886 + $0x18] sm:$0xe]
        %v4239 = vld [vmem:[%s3886 + $0x20] sm:$0xe]
        %v4240 = vld [vmem:[%s3886 + $0x28] sm:$0xe]
        %v4241 = vld [vmem:[%s3886 + $0x30] sm:$0xe]
        %v4242 = vld [vmem:[%s3886 + $0x38] sm:$0xe]
        %v4259 = vrot.slane %v4235, 5
        %v4260 = vrot.slane %v4259, 4
        %v4261 = vrot.slane %v4006, 5
        %v4262 = vsel %vm711, %v4260, %v4261
        %v4263 = vrot.slane %v4236, 5
        %v4264 = vrot.slane %v4263, 4
        %v4265 = vrot.slane %v4008, 5
        %v4266 = vsel %vm711, %v4264, %v4265
        %v4267 = vrot.slane %v4237, 5
        %v4268 = vrot.slane %v4267, 4
        %v4269 = vrot.slane %v4010, 5
        %v4270 = vsel %vm711, %v4268, %v4269
        %v4271 = vrot.slane %v4238, 5
        %v4272 = vrot.slane %v4271, 4
        %v4273 = vrot.slane %v4012, 5
        %v4274 = vsel %vm711, %v4272, %v4273
        %v4275 = vrot.slane %v4239, 5
        %v4276 = vrot.slane %v4275, 4
        %v4277 = vrot.slane %v4014, 5
        %v4278 = vsel %vm711, %v4276, %v4277
        %v4279 = vrot.slane %v4240, 5
        %v4280 = vrot.slane %v4279, 4
        %v4281 = vrot.slane %v4016, 5
        %v4282 = vsel %vm711, %v4280, %v4281
        %v4283 = vrot.slane %v4241, 5
        %v4284 = vrot.slane %v4283, 4
        %v4285 = vrot.slane %v4018, 5
        %v4286 = vsel %vm711, %v4284, %v4285
        %v4287 = vrot.slane %v4242, 5
        %v4288 = vrot.slane %v4287, 4
        %v4289 = vrot.slane %v4020, 5
        %v4290 = vsel %vm711, %v4288, %v4289
        %s4291 = scalar_lea.vmem %s3, 46
        %v4292 = vld [vmem:[%s4291] sm:$0x3]
        %v4293 = vunpack.c.l.b16 %v4262
        %v4294 = vunpack.c.l.b16 %v4266
        %v4295 = vunpack.c.l.b16 %v4270
        %v4296 = vunpack.c.l.b16 %v4274
        %v4297 = vunpack.c.l.b16 %v4278
        %v4298 = vunpack.c.l.b16 %v4282
        %v4299 = vunpack.c.l.b16 %v4286
        %v4300 = vunpack.c.l.b16 %v4290
        %v4301 = vpack.c.b16 %v4294, %v4293
        %v4302 = vpack.c.b16 %v4296, %v4295
        %v4303 = vpack.c.b16 %v4298, %v4297
        %v4304 = vpack.c.b16 %v4300, %v4299
        %v4306 = vsel %vm503, %v4301, 0
        %v4309 = vsel %vm503, %v4302, 0
        %v4312 = vsel %vm503, %v4303, 0
        %v4315 = vsel %vm503, %v4304, 0
        %v4318 = vsel %vm516, %v4292, 0
        %4320 = vmatprep.subr.bf16.mxu0 0
        %4321 = vmatpush1.bf16.msra.mxu0 %v4318
        %4322 = vmatprep.subr.bf16.mxu0 0
        %4323 = vmatpush1.bf16.msra.mxu0 0
        %4324 = vmatprep.subr.bf16.mxu0 0
        %4325 = vmatpush1.bf16.msra.mxu0 0
        %4326 = vmatprep.subr.bf16.mxu0 0
        %4327 = vmatpush1.bf16.msra.mxu0 0
        %4328 = vmatprep.subr.bf16.mxu0 0
        %4329 = vmatpush1.bf16.msra.mxu0 0
        %4330 = vmatprep.subr.bf16.mxu0 0
        %4331 = vmatpush1.bf16.msra.mxu0 0
        %4332 = vmatprep.subr.bf16.mxu0 0
        %4333 = vmatpush1.bf16.msra.mxu0 0
        %4334 = vmatprep.subr.bf16.mxu0 0
        %4335 = vmatpush1.bf16.msra.mxu0 0
        %4336 = vmatprep.subr.bf16.mxu0 0
        %4337 = vmatpush1.bf16.msra.mxu0 0
        %4338 = vmatprep.subr.bf16.mxu0 0
        %4339 = vmatpush1.bf16.msra.mxu0 0
        %4340 = vmatprep.subr.bf16.mxu0 0
        %4341 = vmatpush1.bf16.msra.mxu0 0
        %4342 = vmatprep.subr.bf16.mxu0 0
        %4343 = vmatpush1.bf16.msra.mxu0 0
        %4344 = vmatprep.subr.bf16.mxu0 0
        %4345 = vmatpush1.bf16.msra.mxu0 0
        %4346 = vmatprep.subr.bf16.mxu0 0
        %4347 = vmatpush1.bf16.msra.mxu0 0
        %4348 = vmatprep.subr.bf16.mxu0 0
        %4349 = vmatpush1.bf16.msra.mxu0 0
        %4350 = vmatprep.subr.bf16.mxu0 0
        %4351 = vmatpush1.bf16.msra.mxu0 0
        %4352 = vmatprep.mubr.bf16.mxu0 0
        %4353 = vmatmul.mubr.bf16.gmra.mrb[0].mxu0 %v4306
        %v4354 = vpop.f32.mrb[0].mxu0
        %v4355 = vadd.f32 0.0, %v4354
        %v4356 = vpop.f32.mrb[0].mxu0
        %v4357 = vpop.f32.mrb[0].mxu0
        %v4358 = vadd.f32 0.0, %v4357
        %v4359 = vpop.f32.mrb[0].mxu0
        %4360 = vmatprep.mubr.bf16.mxu0 0
        %4361 = vmatmul.mubr.bf16.gmra.mrb[0].mxu0 %v4309
        %v4362 = vpop.f32.mrb[0].mxu0
        %v4363 = vadd.f32 0.0, %v4362
        %v4364 = vpop.f32.mrb[0].mxu0
        %v4365 = vpop.f32.mrb[0].mxu0
        %v4366 = vadd.f32 0.0, %v4365
        %v4367 = vpop.f32.mrb[0].mxu0
        %4368 = vmatprep.mubr.bf16.mxu0 0
        %4369 = vmatmul.mubr.bf16.gmra.mrb[0].mxu0 %v4312
        %v4370 = vpop.f32.mrb[0].mxu0
        %v4371 = vadd.f32 0.0, %v4370
        %v4372 = vpop.f32.mrb[0].mxu0
        %v4373 = vpop.f32.mrb[0].mxu0
        %v4374 = vadd.f32 0.0, %v4373
        %v4375 = vpop.f32.mrb[0].mxu0
        %4376 = vmatprep.mubr.bf16.mxu0 0
        %4377 = vmatmul.mubr.bf16.gmra.mrb[0].mxu0 %v4315
        %v4378 = vpop.f32.mrb[0].mxu0
        %v4379 = vadd.f32 0.0, %v4378
        %v4380 = vpop.f32.mrb[0].mxu0
        %v4381 = vpop.f32.mrb[0].mxu0
        %v4382 = vadd.f32 0.0, %v4381
        %v4383 = vpop.f32.mrb[0].mxu0
        %4384 = vdwg.mxu0
        %v4385 = vadd.f32 %v4227, %v4355
        %v4386 = vadd.f32 %v4228, %v4358
        %v4387 = vadd.f32 %v4229, %v4363
        %v4388 = vadd.f32 %v4230, %v4366
        %v4389 = vadd.f32 %v4231, %v4371
        %v4390 = vadd.f32 %v4232, %v4374
        %v4391 = vadd.f32 %v4233, %v4379
        %v4392 = vadd.f32 %v4234, %v4382
        %s4393 = scalar_lea.vmem %s345, 16
        %v4394 = vld [vmem:[%s4393] sm:$0xf]
        %v4395 = vld [vmem:[%s4393 + $0x8] sm:$0xf]
        %v4396 = vld [vmem:[%s4393 + $0x10] sm:$0xf]
        %v4397 = vld [vmem:[%s4393 + $0x18] sm:$0xf]
        %v4398 = vld [vmem:[%s4393 + $0x20] sm:$0xf]
        %v4399 = vld [vmem:[%s4393 + $0x28] sm:$0xf]
        %v4400 = vld [vmem:[%s4393 + $0x30] sm:$0xf]
        %v4401 = vld [vmem:[%s4393 + $0x38] sm:$0xf]
        %s4402 = scalar_lea.vmem %s3, 48
        %v4403 = vld [vmem:[%s4402] sm:$0x3]
        %v4412 = vunpack.c.l.b16 %v4394
        %v4413 = vunpack.c.l.b16 %v4395
        %v4414 = vunpack.c.l.b16 %v4396
        %v4415 = vunpack.c.l.b16 %v4397
        %v4416 = vunpack.c.l.b16 %v4398
        %v4417 = vunpack.c.l.b16 %v4399
        %v4418 = vunpack.c.l.b16 %v4400
        %v4419 = vunpack.c.l.b16 %v4401
        %v4420 = vpack.c.b16 %v4413, %v4412
        %v4421 = vpack.c.b16 %v4415, %v4414
        %v4422 = vpack.c.b16 %v4417, %v4416
        %v4423 = vpack.c.b16 %v4419, %v4418
        %v4425 = vsel %vm503, %v4420, 0
        %v4428 = vsel %vm503, %v4421, 0
        %v4431 = vsel %vm503, %v4422, 0
        %v4434 = vsel %vm503, %v4423, 0
        %v4437 = vsel %vm516, %v4403, 0
        %4439 = vmatprep.subr.bf16.mxu0 0
        %4440 = vmatpush1.bf16.msra.mxu0 %v4437
        %4441 = vmatprep.subr.bf16.mxu0 0
        %4442 = vmatpush1.bf16.msra.mxu0 0
        %4443 = vmatprep.subr.bf16.mxu0 0
        %4444 = vmatpush1.bf16.msra.mxu0 0
        %4445 = vmatprep.subr.bf16.mxu0 0
        %4446 = vmatpush1.bf16.msra.mxu0 0
        %4447 = vmatprep.subr.bf16.mxu0 0
        %4448 = vmatpush1.bf16.msra.mxu0 0
        %4449 = vmatprep.subr.bf16.mxu0 0
        %4450 = vmatpush1.bf16.msra.mxu0 0
        %4451 = vmatprep.subr.bf16.mxu0 0
        %4452 = vmatpush1.bf16.msra.mxu0 0
        %4453 = vmatprep.subr.bf16.mxu0 0
        %4454 = vmatpush1.bf16.msra.mxu0 0
        %4455 = vmatprep.subr.bf16.mxu0 0
        %4456 = vmatpush1.bf16.msra.mxu0 0
        %4457 = vmatprep.subr.bf16.mxu0 0
        %4458 = vmatpush1.bf16.msra.mxu0 0
        %4459 = vmatprep.subr.bf16.mxu0 0
        %4460 = vmatpush1.bf16.msra.mxu0 0
        %4461 = vmatprep.subr.bf16.mxu0 0
        %4462 = vmatpush1.bf16.msra.mxu0 0
        %4463 = vmatprep.subr.bf16.mxu0 0
        %4464 = vmatpush1.bf16.msra.mxu0 0
        %4465 = vmatprep.subr.bf16.mxu0 0
        %4466 = vmatpush1.bf16.msra.mxu0 0
        %4467 = vmatprep.subr.bf16.mxu0 0
        %4468 = vmatpush1.bf16.msra.mxu0 0
        %4469 = vmatprep.subr.bf16.mxu0 0
        %4470 = vmatpush1.bf16.msra.mxu0 0
        %4471 = vmatprep.mubr.bf16.mxu0 0
        %4472 = vmatmul.mubr.bf16.gmra.mrb[0].mxu0 %v4425
        %v4473 = vpop.f32.mrb[0].mxu0
        %v4474 = vadd.f32 0.0, %v4473
        %v4475 = vpop.f32.mrb[0].mxu0
        %v4476 = vpop.f32.mrb[0].mxu0
        %v4477 = vadd.f32 0.0, %v4476
        %v4478 = vpop.f32.mrb[0].mxu0
        %4479 = vmatprep.mubr.bf16.mxu0 0
        %4480 = vmatmul.mubr.bf16.gmra.mrb[0].mxu0 %v4428
        %v4481 = vpop.f32.mrb[0].mxu0
        %v4482 = vadd.f32 0.0, %v4481
        %v4483 = vpop.f32.mrb[0].mxu0
        %v4484 = vpop.f32.mrb[0].mxu0
        %v4485 = vadd.f32 0.0, %v4484
        %v4486 = vpop.f32.mrb[0].mxu0
        %4487 = vmatprep.mubr.bf16.mxu0 0
        %4488 = vmatmul.mubr.bf16.gmra.mrb[0].mxu0 %v4431
        %v4489 = vpop.f32.mrb[0].mxu0
        %v4490 = vadd.f32 0.0, %v4489
        %v4491 = vpop.f32.mrb[0].mxu0
        %v4492 = vpop.f32.mrb[0].mxu0
        %v4493 = vadd.f32 0.0, %v4492
        %v4494 = vpop.f32.mrb[0].mxu0
        %4495 = vmatprep.mubr.bf16.mxu0 0
        %4496 = vmatmul.mubr.bf16.gmra.mrb[0].mxu0 %v4434
        %v4497 = vpop.f32.mrb[0].mxu0
        %v4498 = vadd.f32 0.0, %v4497
        %v4499 = vpop.f32.mrb[0].mxu0
        %v4500 = vpop.f32.mrb[0].mxu0
        %v4501 = vadd.f32 0.0, %v4500
        %v4502 = vpop.f32.mrb[0].mxu0
        %4503 = vdwg.mxu0
        %v4504 = vadd.f32 %v4385, %v4474
        %v4505 = vadd.f32 %v4386, %v4477
        %v4506 = vadd.f32 %v4387, %v4482
        %v4507 = vadd.f32 %v4388, %v4485
        %v4508 = vadd.f32 %v4389, %v4490
        %v4509 = vadd.f32 %v4390, %v4493
        %v4510 = vadd.f32 %v4391, %v4498
        %v4511 = vadd.f32 %v4392, %v4501
        %v4512 = vld [vmem:[%s4393] sm:$0xf]
        %v4513 = vld [vmem:[%s4393 + $0x4] sm:$0x1]
        %v4514 = vld [vmem:[%s4393 + $0x8] sm:$0xf]
        %v4515 = vld [vmem:[%s4393 + $0xc] sm:$0x1]
        %v4516 = vld [vmem:[%s4393 + $0x10] sm:$0xf]
        %v4517 = vld [vmem:[%s4393 + $0x14] sm:$0x1]
        %v4518 = vld [vmem:[%s4393 + $0x18] sm:$0xf]
        %v4519 = vld [vmem:[%s4393 + $0x1c] sm:$0x1]
        %v4520 = vld [vmem:[%s4393 + $0x20] sm:$0xf]
        %v4521 = vld [vmem:[%s4393 + $0x24] sm:$0x1]
        %v4522 = vld [vmem:[%s4393 + $0x28] sm:$0xf]
        %v4523 = vld [vmem:[%s4393 + $0x2c] sm:$0x1]
        %v4524 = vld [vmem:[%s4393 + $0x30] sm:$0xf]
        %v4525 = vld [vmem:[%s4393 + $0x34] sm:$0x1]
        %v4526 = vld [vmem:[%s4393 + $0x38] sm:$0xf]
        %v4527 = vld [vmem:[%s4393 + $0x3c] sm:$0x1]
        %v4529 = vshrl.u32 %v4512, 16
        %v4531 = vrot.slane %v4529, 4
        %v4532 = vshll.u32 %v4512, 16
        %v4534 = vrot.slane %v4532, 5
        %v4535 = vor.u32 %v4531, %v4534
        %v4536 = vrot.slane %v4535, 4
        %v4538 = vshll.u32 %v4513, 16
        %v4540 = vrot.slane %v4538, 5
        %v4541 = vsel %vm376, %v4536, %v4540
        %v4543 = vshrl.u32 %v4514, 16
        %v4545 = vrot.slane %v4543, 4
        %v4546 = vshll.u32 %v4514, 16
        %v4548 = vrot.slane %v4546, 5
        %v4549 = vor.u32 %v4545, %v4548
        %v4550 = vrot.slane %v4549, 4
        %v4552 = vshll.u32 %v4515, 16
        %v4554 = vrot.slane %v4552, 5
        %v4555 = vsel %vm376, %v4550, %v4554
        %v4557 = vshrl.u32 %v4516, 16
        %v4559 = vrot.slane %v4557, 4
        %v4560 = vshll.u32 %v4516, 16
        %v4562 = vrot.slane %v4560, 5
        %v4563 = vor.u32 %v4559, %v4562
        %v4564 = vrot.slane %v4563, 4
        %v4566 = vshll.u32 %v4517, 16
        %v4568 = vrot.slane %v4566, 5
        %v4569 = vsel %vm376, %v4564, %v4568
        %v4571 = vshrl.u32 %v4518, 16
        %v4573 = vrot.slane %v4571, 4
        %v4574 = vshll.u32 %v4518, 16
        %v4576 = vrot.slane %v4574, 5
        %v4577 = vor.u32 %v4573, %v4576
        %v4578 = vrot.slane %v4577, 4
        %v4580 = vshll.u32 %v4519, 16
        %v4582 = vrot.slane %v4580, 5
        %v4583 = vsel %vm376, %v4578, %v4582
        %v4585 = vshrl.u32 %v4520, 16
        %v4587 = vrot.slane %v4585, 4
        %v4588 = vshll.u32 %v4520, 16
        %v4590 = vrot.slane %v4588, 5
        %v4591 = vor.u32 %v4587, %v4590
        %v4592 = vrot.slane %v4591, 4
        %v4594 = vshll.u32 %v4521, 16
        %v4596 = vrot.slane %v4594, 5
        %v4597 = vsel %vm376, %v4592, %v4596
        %v4599 = vshrl.u32 %v4522, 16
        %v4601 = vrot.slane %v4599, 4
        %v4602 = vshll.u32 %v4522, 16
        %v4604 = vrot.slane %v4602, 5
        %v4605 = vor.u32 %v4601, %v4604
        %v4606 = vrot.slane %v4605, 4
        %v4608 = vshll.u32 %v4523, 16
        %v4610 = vrot.slane %v4608, 5
        %v4611 = vsel %vm376, %v4606, %v4610
        %v4613 = vshrl.u32 %v4524, 16
        %v4615 = vrot.slane %v4613, 4
        %v4616 = vshll.u32 %v4524, 16
        %v4618 = vrot.slane %v4616, 5
        %v4619 = vor.u32 %v4615, %v4618
        %v4620 = vrot.slane %v4619, 4
        %v4622 = vshll.u32 %v4525, 16
        %v4624 = vrot.slane %v4622, 5
        %v4625 = vsel %vm376, %v4620, %v4624
        %v4627 = vshrl.u32 %v4526, 16
        %v4629 = vrot.slane %v4627, 4
        %v4630 = vshll.u32 %v4526, 16
        %v4632 = vrot.slane %v4630, 5
        %v4633 = vor.u32 %v4629, %v4632
        %v4634 = vrot.slane %v4633, 4
        %v4636 = vshll.u32 %v4527, 16
        %v4638 = vrot.slane %v4636, 5
        %v4639 = vsel %vm376, %v4634, %v4638
        %s4640 = scalar_lea.vmem %s3, 50
        %v4641 = vld [vmem:[%s4640] sm:$0x3]
        %v4642 = vunpack.c.l.b16 %v4541
        %v4643 = vunpack.c.l.b16 %v4555
        %v4644 = vunpack.c.l.b16 %v4569
        %v4645 = vunpack.c.l.b16 %v4583
        %v4646 = vunpack.c.l.b16 %v4597
        %v4647 = vunpack.c.l.b16 %v4611
        %v4648 = vunpack.c.l.b16 %v4625
        %v4649 = vunpack.c.l.b16 %v4639
        %v4650 = vpack.c.b16 %v4643, %v4642
        %v4651 = vpack.c.b16 %v4645, %v4644
        %v4652 = vpack.c.b16 %v4647, %v4646
        %v4653 = vpack.c.b16 %v4649, %v4648
        %v4655 = vsel %vm503, %v4650, 0
        %v4658 = vsel %vm503, %v4651, 0
        %v4661 = vsel %vm503, %v4652, 0
        %v4664 = vsel %vm503, %v4653, 0
        %v4667 = vsel %vm516, %v4641, 0
        %4669 = vmatprep.subr.bf16.mxu0 0
        %4670 = vmatpush1.bf16.msra.mxu0 %v4667
        %4671 = vmatprep.subr.bf16.mxu0 0
        %4672 = vmatpush1.bf16.msra.mxu0 0
        %4673 = vmatprep.subr.bf16.mxu0 0
        %4674 = vmatpush1.bf16.msra.mxu0 0
        %4675 = vmatprep.subr.bf16.mxu0 0
        %4676 = vmatpush1.bf16.msra.mxu0 0
        %4677 = vmatprep.subr.bf16.mxu0 0
        %4678 = vmatpush1.bf16.msra.mxu0 0
        %4679 = vmatprep.subr.bf16.mxu0 0
        %4680 = vmatpush1.bf16.msra.mxu0 0
        %4681 = vmatprep.subr.bf16.mxu0 0
        %4682 = vmatpush1.bf16.msra.mxu0 0
        %4683 = vmatprep.subr.bf16.mxu0 0
        %4684 = vmatpush1.bf16.msra.mxu0 0
        %4685 = vmatprep.subr.bf16.mxu0 0
        %4686 = vmatpush1.bf16.msra.mxu0 0
        %4687 = vmatprep.subr.bf16.mxu0 0
        %4688 = vmatpush1.bf16.msra.mxu0 0
        %4689 = vmatprep.subr.bf16.mxu0 0
        %4690 = vmatpush1.bf16.msra.mxu0 0
        %4691 = vmatprep.subr.bf16.mxu0 0
        %4692 = vmatpush1.bf16.msra.mxu0 0
        %4693 = vmatprep.subr.bf16.mxu0 0
        %4694 = vmatpush1.bf16.msra.mxu0 0
        %4695 = vmatprep.subr.bf16.mxu0 0
        %4696 = vmatpush1.bf16.msra.mxu0 0
        %4697 = vmatprep.subr.bf16.mxu0 0
        %4698 = vmatpush1.bf16.msra.mxu0 0
        %4699 = vmatprep.subr.bf16.mxu0 0
        %4700 = vmatpush1.bf16.msra.mxu0 0
        %4701 = vmatprep.mubr.bf16.mxu0 0
        %4702 = vmatmul.mubr.bf16.gmra.mrb[0].mxu0 %v4655
        %v4703 = vpop.f32.mrb[0].mxu0
        %v4704 = vadd.f32 0.0, %v4703
        %v4705 = vpop.f32.mrb[0].mxu0
        %v4706 = vpop.f32.mrb[0].mxu0
        %v4707 = vadd.f32 0.0, %v4706
        %v4708 = vpop.f32.mrb[0].mxu0
        %4709 = vmatprep.mubr.bf16.mxu0 0
        %4710 = vmatmul.mubr.bf16.gmra.mrb[0].mxu0 %v4658
        %v4711 = vpop.f32.mrb[0].mxu0
        %v4712 = vadd.f32 0.0, %v4711
        %v4713 = vpop.f32.mrb[0].mxu0
        %v4714 = vpop.f32.mrb[0].mxu0
        %v4715 = vadd.f32 0.0, %v4714
        %v4716 = vpop.f32.mrb[0].mxu0
        %4717 = vmatprep.mubr.bf16.mxu0 0
        %4718 = vmatmul.mubr.bf16.gmra.mrb[0].mxu0 %v4661
        %v4719 = vpop.f32.mrb[0].mxu0
        %v4720 = vadd.f32 0.0, %v4719
        %v4721 = vpop.f32.mrb[0].mxu0
        %v4722 = vpop.f32.mrb[0].mxu0
        %v4723 = vadd.f32 0.0, %v4722
        %v4724 = vpop.f32.mrb[0].mxu0
        %4725 = vmatprep.mubr.bf16.mxu0 0
        %4726 = vmatmul.mubr.bf16.gmra.mrb[0].mxu0 %v4664
        %v4727 = vpop.f32.mrb[0].mxu0
        %v4728 = vadd.f32 0.0, %v4727
        %v4729 = vpop.f32.mrb[0].mxu0
        %v4730 = vpop.f32.mrb[0].mxu0
        %v4731 = vadd.f32 0.0, %v4730
        %v4732 = vpop.f32.mrb[0].mxu0
        %4733 = vdwg.mxu0
        %v4734 = vadd.f32 %v4504, %v4704
        %v4735 = vadd.f32 %v4505, %v4707
        %v4736 = vadd.f32 %v4506, %v4712
        %v4737 = vadd.f32 %v4507, %v4715
        %v4738 = vadd.f32 %v4508, %v4720
        %v4739 = vadd.f32 %v4509, %v4723
        %v4740 = vadd.f32 %v4510, %v4728
        %v4741 = vadd.f32 %v4511, %v4731
        %v4742 = vld [vmem:[%s4393] sm:$0xe]
        %v4743 = vld [vmem:[%s4393 + $0x8] sm:$0xe]
        %v4744 = vld [vmem:[%s4393 + $0x10] sm:$0xe]
        %v4745 = vld [vmem:[%s4393 + $0x18] sm:$0xe]
        %v4746 = vld [vmem:[%s4393 + $0x20] sm:$0xe]
        %v4747 = vld [vmem:[%s4393 + $0x28] sm:$0xe]
        %v4748 = vld [vmem:[%s4393 + $0x30] sm:$0xe]
        %v4749 = vld [vmem:[%s4393 + $0x38] sm:$0xe]
        %v4766 = vrot.slane %v4742, 5
        %v4767 = vrot.slane %v4766, 4
        %v4768 = vrot.slane %v4513, 5
        %v4769 = vsel %vm711, %v4767, %v4768
        %v4770 = vrot.slane %v4743, 5
        %v4771 = vrot.slane %v4770, 4
        %v4772 = vrot.slane %v4515, 5
        %v4773 = vsel %vm711, %v4771, %v4772
        %v4774 = vrot.slane %v4744, 5
        %v4775 = vrot.slane %v4774, 4
        %v4776 = vrot.slane %v4517, 5
        %v4777 = vsel %vm711, %v4775, %v4776
        %v4778 = vrot.slane %v4745, 5
        %v4779 = vrot.slane %v4778, 4
        %v4780 = vrot.slane %v4519, 5
        %v4781 = vsel %vm711, %v4779, %v4780
        %v4782 = vrot.slane %v4746, 5
        %v4783 = vrot.slane %v4782, 4
        %v4784 = vrot.slane %v4521, 5
        %v4785 = vsel %vm711, %v4783, %v4784
        %v4786 = vrot.slane %v4747, 5
        %v4787 = vrot.slane %v4786, 4
        %v4788 = vrot.slane %v4523, 5
        %v4789 = vsel %vm711, %v4787, %v4788
        %v4790 = vrot.slane %v4748, 5
        %v4791 = vrot.slane %v4790, 4
        %v4792 = vrot.slane %v4525, 5
        %v4793 = vsel %vm711, %v4791, %v4792
        %v4794 = vrot.slane %v4749, 5
        %v4795 = vrot.slane %v4794, 4
        %v4796 = vrot.slane %v4527, 5
        %v4797 = vsel %vm711, %v4795, %v4796
        %s4798 = scalar_lea.vmem %s3, 52
        %v4799 = vld [vmem:[%s4798] sm:$0x3]
        %v4800 = vunpack.c.l.b16 %v4769
        %v4801 = vunpack.c.l.b16 %v4773
        %v4802 = vunpack.c.l.b16 %v4777
        %v4803 = vunpack.c.l.b16 %v4781
        %v4804 = vunpack.c.l.b16 %v4785
        %v4805 = vunpack.c.l.b16 %v4789
        %v4806 = vunpack.c.l.b16 %v4793
        %v4807 = vunpack.c.l.b16 %v4797
        %v4808 = vpack.c.b16 %v4801, %v4800
        %v4809 = vpack.c.b16 %v4803, %v4802
        %v4810 = vpack.c.b16 %v4805, %v4804
        %v4811 = vpack.c.b16 %v4807, %v4806
        %v4813 = vsel %vm503, %v4808, 0
        %v4816 = vsel %vm503, %v4809, 0
        %v4819 = vsel %vm503, %v4810, 0
        %v4822 = vsel %vm503, %v4811, 0
        %v4825 = vsel %vm516, %v4799, 0
        %4827 = vmatprep.subr.bf16.mxu0 0
        %4828 = vmatpush1.bf16.msra.mxu0 %v4825
        %4829 = vmatprep.subr.bf16.mxu0 0
        %4830 = vmatpush1.bf16.msra.mxu0 0
        %4831 = vmatprep.subr.bf16.mxu0 0
        %4832 = vmatpush1.bf16.msra.mxu0 0
        %4833 = vmatprep.subr.bf16.mxu0 0
        %4834 = vmatpush1.bf16.msra.mxu0 0
        %4835 = vmatprep.subr.bf16.mxu0 0
        %4836 = vmatpush1.bf16.msra.mxu0 0
        %4837 = vmatprep.subr.bf16.mxu0 0
        %4838 = vmatpush1.bf16.msra.mxu0 0
        %4839 = vmatprep.subr.bf16.mxu0 0
        %4840 = vmatpush1.bf16.msra.mxu0 0
        %4841 = vmatprep.subr.bf16.mxu0 0
        %4842 = vmatpush1.bf16.msra.mxu0 0
        %4843 = vmatprep.subr.bf16.mxu0 0
        %4844 = vmatpush1.bf16.msra.mxu0 0
        %4845 = vmatprep.subr.bf16.mxu0 0
        %4846 = vmatpush1.bf16.msra.mxu0 0
        %4847 = vmatprep.subr.bf16.mxu0 0
        %4848 = vmatpush1.bf16.msra.mxu0 0
        %4849 = vmatprep.subr.bf16.mxu0 0
        %4850 = vmatpush1.bf16.msra.mxu0 0
        %4851 = vmatprep.subr.bf16.mxu0 0
        %4852 = vmatpush1.bf16.msra.mxu0 0
        %4853 = vmatprep.subr.bf16.mxu0 0
        %4854 = vmatpush1.bf16.msra.mxu0 0
        %4855 = vmatprep.subr.bf16.mxu0 0
        %4856 = vmatpush1.bf16.msra.mxu0 0
        %4857 = vmatprep.subr.bf16.mxu0 0
        %4858 = vmatpush1.bf16.msra.mxu0 0
        %4859 = vmatprep.mubr.bf16.mxu0 0
        %4860 = vmatmul.mubr.bf16.gmra.mrb[0].mxu0 %v4813
        %v4861 = vpop.f32.mrb[0].mxu0
        %v4862 = vadd.f32 0.0, %v4861
        %v4863 = vpop.f32.mrb[0].mxu0
        %v4864 = vpop.f32.mrb[0].mxu0
        %v4865 = vadd.f32 0.0, %v4864
        %v4866 = vpop.f32.mrb[0].mxu0
        %4867 = vmatprep.mubr.bf16.mxu0 0
        %4868 = vmatmul.mubr.bf16.gmra.mrb[0].mxu0 %v4816
        %v4869 = vpop.f32.mrb[0].mxu0
        %v4870 = vadd.f32 0.0, %v4869
        %v4871 = vpop.f32.mrb[0].mxu0
        %v4872 = vpop.f32.mrb[0].mxu0
        %v4873 = vadd.f32 0.0, %v4872
        %v4874 = vpop.f32.mrb[0].mxu0
        %4875 = vmatprep.mubr.bf16.mxu0 0
        %4876 = vmatmul.mubr.bf16.gmra.mrb[0].mxu0 %v4819
        %v4877 = vpop.f32.mrb[0].mxu0
        %v4878 = vadd.f32 0.0, %v4877
        %v4879 = vpop.f32.mrb[0].mxu0
        %v4880 = vpop.f32.mrb[0].mxu0
        %v4881 = vadd.f32 0.0, %v4880
        %v4882 = vpop.f32.mrb[0].mxu0
        %4883 = vmatprep.mubr.bf16.mxu0 0
        %4884 = vmatmul.mubr.bf16.gmra.mrb[0].mxu0 %v4822
        %v4885 = vpop.f32.mrb[0].mxu0
        %v4886 = vadd.f32 0.0, %v4885
        %v4887 = vpop.f32.mrb[0].mxu0
        %v4888 = vpop.f32.mrb[0].mxu0
        %v4889 = vadd.f32 0.0, %v4888
        %v4890 = vpop.f32.mrb[0].mxu0
        %4891 = vdwg.mxu0
        %v4892 = vadd.f32 %v4734, %v4862
        %v4893 = vadd.f32 %v4735, %v4865
        %v4894 = vadd.f32 %v4736, %v4870
        %v4895 = vadd.f32 %v4737, %v4873
        %v4896 = vadd.f32 %v4738, %v4878
        %v4897 = vadd.f32 %v4739, %v4881
        %v4898 = vadd.f32 %v4740, %v4886
        %v4899 = vadd.f32 %v4741, %v4889
        %vm4900 = vcmask 261120
        %v4901 = vsel %vm4900, %v4892, 0.0
        %v4902 = vsel %vm4900, %v4893, 0.0
        %v4903 = vadd.f32 %v4901, %v4902
        %v4904 = vsel %vm4900, %v4894, 0.0
        %v4905 = vadd.f32 %v4903, %v4904
        %v4906 = vsel %vm4900, %v4895, 0.0
        %v4907 = vadd.f32 %v4905, %v4906
        %v4908 = vsel %vm4900, %v4896, 0.0
        %v4909 = vadd.f32 %v4907, %v4908
        %v4910 = vsel %vm4900, %v4897, 0.0
        %v4911 = vadd.f32 %v4909, %v4910
        %v4912 = vsel %vm4900, %v4898, 0.0
        %v4913 = vadd.f32 %v4911, %v4912
        %v4914 = vsel %vm4900, %v4899, 0.0
        %v4915 = vadd.f32 %v4913, %v4914
        %v4916 = vrot.slane %v4915, 4
        %v4917 = vadd.f32 %v4915, %v4916
        %v4918 = vrot.slane %v4917, 2
        %v4919 = vadd.f32 %v4917, %v4918
        %v4920 = vrot.slane %v4919, 1
        %v4921 = vadd.f32 %v4919, %v4920
        %v4922 = vadd.f32 %v4921, 0.0
        %v4923 = vmul.f32 %v4892, %v4892
        %v4924 = vmul.f32 %v4893, %v4893
        %v4925 = vmul.f32 %v4894, %v4894
        %v4926 = vmul.f32 %v4895, %v4895
        %v4927 = vmul.f32 %v4896, %v4896
        %v4928 = vmul.f32 %v4897, %v4897
        %v4929 = vmul.f32 %v4898, %v4898
        %v4930 = vmul.f32 %v4899, %v4899
        %v4931 = vsel %vm4900, %v4923, 0.0
        %v4932 = vsel %vm4900, %v4924, 0.0
        %v4933 = vadd.f32 %v4931, %v4932
        %v4934 = vsel %vm4900, %v4925, 0.0
        %v4935 = vadd.f32 %v4933, %v4934
        %v4936 = vsel %vm4900, %v4926, 0.0
        %v4937 = vadd.f32 %v4935, %v4936
        %v4938 = vsel %vm4900, %v4927, 0.0
        %v4939 = vadd.f32 %v4937, %v4938
        %v4940 = vsel %vm4900, %v4928, 0.0
        %v4941 = vadd.f32 %v4939, %v4940
        %v4942 = vsel %vm4900, %v4929, 0.0
        %v4943 = vadd.f32 %v4941, %v4942
        %v4944 = vsel %vm4900, %v4930, 0.0
        %v4945 = vadd.f32 %v4943, %v4944
        %v4946 = vrot.slane %v4945, 4
        %v4947 = vadd.f32 %v4945, %v4946
        %v4948 = vrot.slane %v4947, 2
        %v4949 = vadd.f32 %v4947, %v4948
        %v4950 = vrot.slane %v4949, 1
        %v4951 = vadd.f32 %v4949, %v4950
        %v4952 = vadd.f32 %v4951, 0.0
        %v4953 = vpack.c.bf16 %v4893, %v4892
        %v4954 = vpack.c.bf16 %v4895, %v4894
        %v4955 = vpack.c.bf16 %v4897, %v4896
        %v4956 = vpack.c.bf16 %v4899, %v4898
        %v4961 = vunpack.c.l.b16 %v4953
        %v4962 = vunpack.c.h.b16 %v4953
        %v4963 = vunpack.c.l.b16 %v4954
        %v4964 = vunpack.c.h.b16 %v4954
        %v4965 = vunpack.c.l.b16 %v4955
        %v4966 = vunpack.c.h.b16 %v4955
        %v4967 = vunpack.c.l.b16 %v4956
        %v4968 = vunpack.c.h.b16 %v4956
        %v4969 = vpack.c.b16 %v4961, %v4961
        %v4970 = vpack.c.b16 %v4962, %v4962
        %v4971 = vpack.c.b16 %v4963, %v4963
        %v4972 = vpack.c.b16 %v4964, %v4964
        %v4973 = vpack.c.b16 %v4965, %v4965
        %v4974 = vpack.c.b16 %v4966, %v4966
        %v4975 = vpack.c.b16 %v4967, %v4967
        %v4976 = vpack.c.b16 %v4968, %v4968
        %vm4985 = vcmask 257024
        %4986 = vst.msk [vmem:[%s355] sm:$0xf] %vm4985, %v4969
        %4987 = vst.msk [vmem:[%s355 + $0x4] sm:$0xf] %vm4985, %v4970
        %4988 = vst.msk [vmem:[%s355 + $0x8] sm:$0xf] %vm4985, %v4971
        %4989 = vst.msk [vmem:[%s355 + $0xc] sm:$0xf] %vm4985, %v4972
        %4990 = vst.msk [vmem:[%s355 + $0x10] sm:$0xf] %vm4985, %v4973
        %4991 = vst.msk [vmem:[%s355 + $0x14] sm:$0xf] %vm4985, %v4974
        %4992 = vst.msk [vmem:[%s355 + $0x18] sm:$0xf] %vm4985, %v4975
        %4993 = vst.msk [vmem:[%s355 + $0x1c] sm:$0xf] %vm4985, %v4976
        %vm4994 = vcmask 253952
        %4995 = vst.msk [vmem:[%s315] sm:$0x1] %vm4994, %v4922
        %4996 = vst.msk [vmem:[%s315 + $0x1] sm:$0x1] %vm4994, %v4952
        %p4997 = scmp.lt.s32.totalorder %s24, 1
        %s4998 = scalar_select %p4997, %s24, 1
        %p4999 = scmp.lt.s32.totalorder %s25, 3
        %s5000 = scalar_select %p4999, %s25, 3
        %s5001 = smul.addr %s5000, 8
        %s5002 = smul.addr %s4998, 32
        %s5003 = sadd.s32 %s5001, %s5002
        %s5004 = smul.addr %s5003, 4
        %s5005 = scalar_lea.vmem %s4, %s5004
        %s5006 = sand.u32 %s179, 1
        %s5007 = scalar_lea.sflag [#allocation3], %s5006
        %s5008 = sand.u32 %s179, 1
        %s5009 = smul.addr %s5008, 2
        %s5010 = scalar_lea.vmem [#allocation2], %s5009
        // Predicated region
        $region37: #{tpu_custom_call.1} parent=35 // pred_check
          %p5011 = pneg %p161
        $region38: #{tpu_custom_call.1} parent=35 // pred_check_branch
          %5013 = sbr.rel (%p5011) target = $region40
        $region39: #{tpu_custom_call.1} parent=35 // pred_region
          _
        $region40: #{tpu_custom_call.1} parent=35 // pred_fallthru
          _
        // Predicated region
        $region41: #{tpu_custom_call.1} parent=35 // pred_check
          %p5014 = pneg %p189
        $region42: #{tpu_custom_call.1} parent=35 // pred_check_branch
          %5016 = sbr.rel (%p5014) target = $region44
        $region43: #{tpu_custom_call.1} parent=35 // pred_region
          %s5018 = ssub.s32 32, 32
          %5019 = vsyncadd %s5007, %s5018
          %s5020 = smul.addr %s24, 4
          %s5021 = sadd.s32 %s25, %s5020
          %s5022 = smul.addr %s5021, 32
          %s5023 = scalar_lea.hbm %s5, %s5022
          %s5025 = sshll.u32 %s5010, 4
          %s5026 = int_to_ptr.vmem [resolvable:$true] %s5025
          %5028 = dma.vmem_to_hbm [thread:$0]  %s5026, 32, %s5023, %s5007
        $region44: #{tpu_custom_call.1} parent=35 // pred_fallthru
          _
      $region36: #{tpu_custom_call.1} parent=5 // pred_fallthru
        _
      %p5029 = scmp.le.s32.totalorder 2, %s15
      // Predicated region
      $region45: #{tpu_custom_call.1} parent=5 // pred_check
        %p5030 = pneg %p5029
      $region46: #{tpu_custom_call.1} parent=5 // pred_check_branch
        %5032 = sbr.rel (%p5030) target = $region48
      $region47: #{tpu_custom_call.1} parent=5 // pred_region
        %s5033 = ssub.s32 %s15, 2
        // Predicated region
        $region49: #{tpu_custom_call.1} parent=47 // pred_check
          %p5034 = pneg %p167
        $region50: #{tpu_custom_call.1} parent=47 // pred_check_branch
          %5036 = sbr.rel (%p5034) target = $region52
        $region51: #{tpu_custom_call.1} parent=47 // pred_region
          %p5037 = scmp.lt.s32.totalorder %s26, 1
          %s5038 = scalar_select %p5037, %s26, 1
          %p5039 = scmp.lt.s32.totalorder %s27, 3
          %s5040 = scalar_select %p5039, %s27, 3
          %s5041 = smul.addr %s5040, 8
          %s5042 = smul.addr %s5038, 32
          %s5043 = sadd.s32 %s5041, %s5042
          %s5044 = smul.addr %s5043, 4
          %s5045 = scalar_lea.vmem %s4, %s5044
        $region52: #{tpu_custom_call.1} parent=47 // pred_fallthru
          _
        // Predicated region
        $region53: #{tpu_custom_call.1} parent=47 // pred_check
          %p5046 = pneg %p195
        $region54: #{tpu_custom_call.1} parent=47 // pred_check_branch
          %5048 = sbr.rel (%p5046) target = $region56
        $region55: #{tpu_custom_call.1} parent=47 // pred_region
          %s5049 = sand.u32 %s180, 1
          %s5050 = scalar_lea.sflag [#allocation3], %s5049
          %s5051 = sand.u32 %s180, 1
          %s5052 = smul.addr %s5051, 2
          %s5053 = scalar_lea.vmem [#allocation2], %s5052
          %5054 = dma.done %s5050, 32
        $region56: #{tpu_custom_call.1} parent=47 // pred_fallthru
          _
      $region48: #{tpu_custom_call.1} parent=5 // pred_fallthru
        _
    $region6: #{tpu_custom_call.1} parent=1 // loop_footer
      %s19 = sadd.s32 1, %s15
    $region7: #{tpu_custom_call.1} parent=1 // loop_footer_branch
      %14 = sbr.rel target = $region3
    $region8: #{tpu_custom_call.1} parent=1 // loop_exit
      _
    %5055 = vsyncpa [#allocation3], 1
    %s5056 = scalar_lea.sflag [#allocation3], 1
    %5057 = vsyncpa %s5056, 1

</llo_original>
